<compile_context>
chip_gen: v6e
topology: v6e:2x2x1
jax: 0.10.0
libtpu: 0.0.40
codegen_flags: <defaults>
</compile_context>

<pallas_src>
import jax
import jax.numpy as jnp
import numpy as np
from jax.experimental import pallas as pl
from jax.experimental.pallas import tpu as pltpu

HIGH = jax.lax.Precision.HIGHEST


# --------------------------------------------------------------------------
# Fused per-layer GAT kernel, tiled over edges.
# --------------------------------------------------------------------------
def _make_gat_layer_kernel(heads, f_out, apply_elu):
    hf = heads * f_out

    def kernel(x_ref, w_ref, wskip_ref, acat_ref, S_ref, T_ref, b_ref,
               out_ref, lift_src, strg_s, skip_s, acc_s):
        step = pl.program_id(0)

        # ---------------- step 0: node-level projections / scores ----------
        @pl.when(step == 0)
        def _init():
            x = x_ref[...]
            p = jnp.dot(x, w_ref[...], preferred_element_type=jnp.float32,
                        precision=HIGH)                                  # (N, HF)
            skip_s[...] = jnp.dot(x, wskip_ref[...],
                                  preferred_element_type=jnp.float32,
                                  precision=HIGH)                        # (N, HF)
            sc = jnp.dot(p, acat_ref[...], preferred_element_type=jnp.float32,
                         precision=HIGH)                                 # (N, 2H) = [ssrc | strg]
            # fused source-lift table: [proj | ssrc], bf16 (native MXU path)
            lift_src[...] = jnp.concatenate(
                [p, sc[:, :heads]], axis=-1).astype(jnp.bfloat16)        # (N, HF+H)
            strg_s[...] = sc[:, heads:].astype(jnp.bfloat16)             # (N, H)
            acc_s[...] = jnp.zeros_like(acc_s)                           # (N, HF+H)

        # ---------------- per edge-tile work --------------------------------
        S = S_ref[...]                                                   # (te, N) bf16
        T = T_ref[...]                                                   # (te, N) bf16

        # gather (lift) from source / target nodes: one-hot matmuls,
        # default precision (exact 0/1 operands), bf16 x bf16 -> f32
        src_g = jnp.dot(S, lift_src[...],
                        preferred_element_type=jnp.float32)              # (te, HF+H)
        strg_l = jnp.dot(T, strg_s[...],
                         preferred_element_type=jnp.float32)             # (te, H)
        proj_l = src_g[:, :hf]                                           # (te, HF)
        ssrc_l = src_g[:, hf:]                                           # (te, H)

        s = ssrc_l + strg_l
        s = jnp.where(s >= 0.0, s, 0.2 * s)                              # LeakyReLU(0.2)

        # per-head upper bound on the edge scores (softmax shift; constant per
        # head so it cancels in the normalization -> matches the reference)
        ssrc_n = lift_src[:, hf:].astype(jnp.float32)                    # (N, H)
        strg_n = strg_s[...].astype(jnp.float32)                         # (N, H)
        m = (jnp.max(ssrc_n, axis=0, keepdims=True)
             + jnp.max(strg_n, axis=0, keepdims=True))                   # (1, H)
        c = jnp.where(m >= 0.0, m, 0.2 * m)
        e = jnp.exp(s - c)                                               # (te, H)

        # broadcast the per-head attention numerator across features (VPU)
        weighted = jnp.concatenate(
            [proj_l[:, h * f_out:(h + 1) * f_out] * e[:, h:h + 1]
             for h in range(heads)], axis=-1)                            # (te, HF)

        # scatter-add over target nodes: one fused matmul accumulates both the
        # un-normalized aggregate and the per-node softmax denominator
        cat = jnp.concatenate([weighted, e], axis=-1).astype(jnp.bfloat16)
        contract_e = (((0,), (0,)), ((), ()))                            # contract edge axis
        acc_s[...] += jax.lax.dot_general(
            T, cat, contract_e, preferred_element_type=jnp.float32)      # (N, HF+H)

        # ---------------- last step: normalize, skip, mean, bias, ELU -------
        @pl.when(step == pl.num_programs(0) - 1)
        def _finalize():
            agg = acc_s[:, :hf]                                          # (N, HF)
            denom = acc_s[:, hf:]                                        # (N, H)
            inv = 1.0 / (denom + 1e-16)
            skip = skip_s[...]
            out = agg[:, :f_out] * inv[:, 0:1] + skip[:, :f_out]
            for h in range(1, heads):
                sl = slice(h * f_out, (h + 1) * f_out)
                out = out + (agg[:, sl] * inv[:, h:h + 1] + skip[:, sl])
            out = out * (1.0 / heads) + b_ref[...]                       # head mean + bias
            if apply_elu:
                out = jnp.where(out > 0.0, out, jnp.exp(out) - 1.0)      # ELU(alpha=1)
            out_ref[...] = out

    return kernel


def gat_layer_forward(x, S, T, params, *, apply_elu, edge_tile=512):
    n, f_in = x.shape
    n_edges = S.shape[0]
    hf = params["w"].shape[1]
    heads = params["a_cat"].shape[1] // 2
    f_out = hf // heads

    te = min(edge_tile, n_edges)
    assert n_edges % te == 0, "pad edge count to a multiple of the edge tile"
    assert te == n_edges or te % 8 == 0, "edge tile must be a multiple of 8"
    grid = (n_edges // te,)

    kernel = _make_gat_layer_kernel(heads, f_out, apply_elu)
    return pl.pallas_call(
        kernel,
        grid=grid,
        in_specs=[
            pl.BlockSpec((n, f_in), lambda i: (0, 0)),        # x        (resident)
            pl.BlockSpec((f_in, hf), lambda i: (0, 0)),       # w        (resident)
            pl.BlockSpec((f_in, hf), lambda i: (0, 0)),       # wskip    (resident)
            pl.BlockSpec((hf, 2 * heads), lambda i: (0, 0)),  # [a_src|a_trg]
            pl.BlockSpec((te, n), lambda i: (i, 0)),          # S edge tile
            pl.BlockSpec((te, n), lambda i: (i, 0)),          # T edge tile
            pl.BlockSpec((1, f_out), lambda i: (0, 0)),       # bias
        ],
        out_specs=pl.BlockSpec((n, f_out), lambda i: (0, 0)),
        out_shape=jax.ShapeDtypeStruct((n, f_out), jnp.float32),
        scratch_shapes=[
            pltpu.VMEM((n, hf + heads), jnp.bfloat16),        # [proj | ssrc]
            pltpu.VMEM((n, heads), jnp.bfloat16),             # strg
            pltpu.VMEM((n, hf), jnp.float32),                 # skip projection
            pltpu.VMEM((n, hf + heads), jnp.float32),         # [agg | denom] accumulator
        ],
        compiler_params=pltpu.CompilerParams(
            dimension_semantics=("arbitrary",)),              # accumulator carried
    )(x, params["w"], params["wskip"], params["a_cat"], S, T, params["bias"])


# --------------------------------------------------------------------------
# Parameter init (deterministic, xavier-uniform like the torch module)
# --------------------------------------------------------------------------
def _xavier(key, shape, fan_in, fan_out):
    bound = float(np.sqrt(6.0 / (fan_in + fan_out)))
    return jax.random.uniform(key, shape, jnp.float32, -bound, bound)


def init_gat_layer_params(key, f_in, f_out, heads, *, skip_identity):
    hf = heads * f_out
    k1, k2, k3, k4 = jax.random.split(key, 4)
    # torch linear weight is (hf, f_in); we store its transpose (f_in, hf)
    w = _xavier(k1, (f_in, hf), f_in, hf)
    a_src = _xavier(k2, (heads, f_out), heads * f_out, f_out)
    a_trg = _xavier(k3, (heads, f_out), heads * f_out, f_out)
    if skip_identity:
        # F_out == F_in: skip = x broadcast over heads  ==  x @ [I | I | ... | I]
        wskip = jnp.tile(jnp.eye(f_in, dtype=jnp.float32), (1, heads))
    else:
        wskip = _xavier(k4, (f_in, hf), f_in, hf)

    eye_h = jnp.eye(heads, dtype=jnp.float32)
    # A_src_mat[h*F + f, h] = a_src[h, f]   (so proj2d @ A_src == per-head dot)
    a_src_mat = (a_src[:, :, None] * eye_h[:, None, :]).reshape(hf, heads)
    a_trg_mat = (a_trg[:, :, None] * eye_h[:, None, :]).reshape(hf, heads)
    a_cat = jnp.concatenate([a_src_mat, a_trg_mat], axis=1)     # (hf, 2H)
    bias = jnp.zeros((1, f_out), jnp.float32)
    return dict(w=w, wskip=wskip, a_src=a_src, a_trg=a_trg, a_cat=a_cat,
                bias=bias, skip_identity=skip_identity)


# --------------------------------------------------------------------------
# Pure-JAX reference (mirrors the torch forward) for correctness checking
# --------------------------------------------------------------------------
def reference_layer(x, src, trg, params, heads, f_out, *, apply_elu):
    n = x.shape[0]
    proj = jnp.dot(x, params["w"], precision=HIGH).reshape(n, heads, f_out)
    s_src = (proj * params["a_src"][None]).sum(-1)
    s_trg = (proj * params["a_trg"][None]).sum(-1)
    s = s_src[src] + s_trg[trg]
    s = jnp.where(s >= 0, s, 0.2 * s)
    s = s - s.max()
    e = jnp.exp(s)
    denom = jax.ops.segment_sum(e, trg, num_segments=n)[trg]
    attn = e / (denom + 1e-16)
    weighted = proj[src] * attn[..., None]
    agg = jax.ops.segment_sum(weighted, trg, num_segments=n)
    if params["skip_identity"]:
        agg = agg + x[:, None, :]
    else:
        agg = agg + jnp.dot(x, params["wskip"],
                            precision=HIGH).reshape(n, heads, f_out)
    out = agg.mean(axis=1) + params["bias"].reshape(-1)
    if apply_elu:
        out = jnp.where(out > 0, out, jnp.exp(out) - 1.0)
    return out


# --------------------------------------------------------------------------
if __name__ == "__main__":
    key = jax.random.PRNGKey(0)
    N, E = 64, 256
    num_heads_per_layer = [2, 2]
    num_features_per_layer = [8, 16, 16]

    k_x, k_s, k_t, k_p0, k_p1 = jax.random.split(key, 5)
    x = jax.random.normal(k_x, (N, num_features_per_layer[0]), jnp.float32)
    src = jax.random.randint(k_s, (E,), 0, N, dtype=jnp.int32)
    trg = jax.random.randint(k_t, (E,), 0, N, dtype=jnp.int32)

    # dense one-hots in bf16: native single-pass MXU path, halved footprint
    S = jax.nn.one_hot(src, N, dtype=jnp.bfloat16)          # (E, N) source one-hot
    T = jax.nn.one_hot(trg, N, dtype=jnp.bfloat16)          # (E, N) target one-hot

    # layer 0: in=8 -> out=16, heads=2, ELU, skip via skip_proj (dims differ)
    p0 = init_gat_layer_params(k_p0, num_features_per_layer[0],
                               num_features_per_layer[1],
                               num_heads_per_layer[0], skip_identity=False)
    # layer 1: in=16 -> out=16, heads=2, no activation, skip via identity bcast
    p1 = init_gat_layer_params(k_p1, num_features_per_layer[1],
                               num_features_per_layer[2],
                               num_heads_per_layer[1], skip_identity=True)

    out0 = gat_layer_forward(x, S, T, p0, apply_elu=True, edge_tile=128)
    out1 = gat_layer_forward(out0, S, T, p1, apply_elu=False, edge_tile=128)
    out0, out1 = jax.block_until_ready((out0, out1))

    # correctness check against pure-JAX reference of the torch forward
    ref0 = reference_layer(x, src, trg, p0, num_heads_per_layer[0],
                           num_features_per_layer[1], apply_elu=True)
    ref1 = reference_layer(ref0, src, trg, p1, num_heads_per_layer[1],
                           num_features_per_layer[2], apply_elu=False)
    np.testing.assert_allclose(np.asarray(out0), np.asarray(ref0),
                               rtol=2e-2, atol=2e-2)
    np.testing.assert_allclose(np.asarray(out1), np.asarray(ref1),
                               rtol=2e-2, atol=2e-2)

    print("KERNEL_OK")
</pallas_src>

<mosaic_0001>
module attributes {stable_mosaic.version = 11 : i64} {
  func.func @kernel(%arg0: i32, %arg1: memref<64x8xf32, #tpu.memory_space<vmem>>, %arg2: memref<8x32xf32, #tpu.memory_space<vmem>>, %arg3: memref<8x32xf32, #tpu.memory_space<vmem>>, %arg4: memref<32x4xf32, #tpu.memory_space<vmem>>, %arg5: memref<128x64xbf16, #tpu.memory_space<vmem>>, %arg6: memref<128x64xbf16, #tpu.memory_space<vmem>>, %arg7: memref<1x16xf32, #tpu.memory_space<vmem>>, %arg8: memref<64x16xf32, #tpu.memory_space<vmem>>, %arg9: memref<64x34xbf16, #tpu.memory_space<vmem>>, %arg10: memref<64x2xbf16, #tpu.memory_space<vmem>>, %arg11: memref<64x32xf32, #tpu.memory_space<vmem>>, %arg12: memref<64x34xf32, #tpu.memory_space<vmem>>) attributes {dimension_semantics = [#tpu.dimension_semantics<arbitrary>], iteration_bounds = array<i64: 2>, scalar_prefetch = 0 : i64, scratch_operands = 4 : i64, tpu.core_type = #tpu.core_type<tc>, window_params = [{pipeline_mode = #tpu.pipeline_mode<synchronous>, transform_indices = @transform_0, window_bounds = array<i64: 64, 8>}, {pipeline_mode = #tpu.pipeline_mode<synchronous>, transform_indices = @transform_1, window_bounds = array<i64: 8, 32>}, {pipeline_mode = #tpu.pipeline_mode<synchronous>, transform_indices = @transform_2, window_bounds = array<i64: 8, 32>}, {pipeline_mode = #tpu.pipeline_mode<synchronous>, transform_indices = @transform_3, window_bounds = array<i64: 32, 4>}, {transform_indices = @transform_4, window_bounds = array<i64: 128, 64>}, {transform_indices = @transform_5, window_bounds = array<i64: 128, 64>}, {pipeline_mode = #tpu.pipeline_mode<synchronous>, transform_indices = @transform_6, window_bounds = array<i64: 1, 16>}, {pipeline_mode = #tpu.pipeline_mode<synchronous>, transform_indices = @transform_7, window_bounds = array<i64: 64, 16>}]} {
    %c0_i32 = arith.constant 0 : i32
    %0 = arith.cmpi eq, %arg0, %c0_i32 : i32
    %1 = arith.extui %0 : i1 to i32
    %c0_i32_0 = arith.constant 0 : i32
    %2 = arith.cmpi ne, %1, %c0_i32_0 : i32
    scf.if %2 {
      %c0_24 = arith.constant 0 : index
      %c0_25 = arith.constant 0 : index
      %52 = vector.load %arg1[%c0_24, %c0_25] : memref<64x8xf32, #tpu.memory_space<vmem>>, vector<64x8xf32>
      %c0_26 = arith.constant 0 : index
      %c0_27 = arith.constant 0 : index
      %53 = vector.load %arg2[%c0_26, %c0_27] : memref<8x32xf32, #tpu.memory_space<vmem>>, vector<8x32xf32>
      %cst_28 = arith.constant dense<0.000000e+00> : vector<64x32xf32>
      %54 = tpu.matmul %52, %53, %cst_28 {dimension_numbers = #tpu.dot_dimension_numbers<[1], [0], [0], [1], [0, 0, 1, 1], [], []>, precision = #tpu.contract_precision<fp32>} : vector<64x8xf32>, vector<8x32xf32>, vector<64x32xf32> -> vector<64x32xf32>
      %c0_29 = arith.constant 0 : index
      %c0_30 = arith.constant 0 : index
      %55 = vector.load %arg3[%c0_29, %c0_30] : memref<8x32xf32, #tpu.memory_space<vmem>>, vector<8x32xf32>
      %cst_31 = arith.constant dense<0.000000e+00> : vector<64x32xf32>
      %56 = tpu.matmul %52, %55, %cst_31 {dimension_numbers = #tpu.dot_dimension_numbers<[1], [0], [0], [1], [0, 0, 1, 1], [], []>, precision = #tpu.contract_precision<fp32>} : vector<64x8xf32>, vector<8x32xf32>, vector<64x32xf32> -> vector<64x32xf32>
      %c0_32 = arith.constant 0 : index
      %c0_33 = arith.constant 0 : index
      %57 = vector.load %arg11[%c0_32, %c0_33] : memref<64x32xf32, #tpu.memory_space<vmem>>, vector<64x32xf32>
      tpu.vector_store %arg11[%c0_32, %c0_33], %56 {strides = array<i32>} : memref<64x32xf32, #tpu.memory_space<vmem>>, vector<64x32xf32>,
      %c0_34 = arith.constant 0 : index
      %c0_35 = arith.constant 0 : index
      %58 = vector.load %arg4[%c0_34, %c0_35] : memref<32x4xf32, #tpu.memory_space<vmem>>, vector<32x4xf32>
      %cst_36 = arith.constant dense<0.000000e+00> : vector<64x4xf32>
      %59 = tpu.matmul %54, %58, %cst_36 {dimension_numbers = #tpu.dot_dimension_numbers<[1], [0], [0], [1], [0, 0, 1, 1], [], []>, precision = #tpu.contract_precision<fp32>} : vector<64x32xf32>, vector<32x4xf32>, vector<64x4xf32> -> vector<64x4xf32>
      %60 = vector.extract_strided_slice %59 {offsets = [0, 0], sizes = [64, 2], strides = [1, 1]} : vector<64x4xf32> to vector<64x2xf32>
      %61 = tpu.concatenate %54, %60 in 1 : vector<64x32xf32>, vector<64x2xf32> -> vector<64x34xf32>
      %62 = arith.truncf %61 : vector<64x34xf32> to vector<64x34xbf16>
      %c0_37 = arith.constant 0 : index
      %c0_38 = arith.constant 0 : index
      %63 = vector.load %arg9[%c0_37, %c0_38] : memref<64x34xbf16, #tpu.memory_space<vmem>>, vector<64x34xbf16>
      tpu.vector_store %arg9[%c0_37, %c0_38], %62 {strides = array<i32>} : memref<64x34xbf16, #tpu.memory_space<vmem>>, vector<64x34xbf16>,
      %64 = vector.extract_strided_slice %59 {offsets = [0, 2], sizes = [64, 2], strides = [1, 1]} : vector<64x4xf32> to vector<64x2xf32>
      %65 = arith.truncf %64 : vector<64x2xf32> to vector<64x2xbf16>
      %c0_39 = arith.constant 0 : index
      %c0_40 = arith.constant 0 : index
      %66 = vector.load %arg10[%c0_39, %c0_40] : memref<64x2xbf16, #tpu.memory_space<vmem>>, vector<64x2xbf16>
      tpu.vector_store %arg10[%c0_39, %c0_40], %65 {strides = array<i32>} : memref<64x2xbf16, #tpu.memory_space<vmem>>, vector<64x2xbf16>,
      %cst_41 = arith.constant 0.000000e+00 : f32
      %67 = vector.broadcast %cst_41 : f32 to vector<64x34xf32>
      %c0_42 = arith.constant 0 : index
      %c0_43 = arith.constant 0 : index
      %68 = vector.load %arg12[%c0_42, %c0_43] : memref<64x34xf32, #tpu.memory_space<vmem>>, vector<64x34xf32>
      tpu.vector_store %arg12[%c0_42, %c0_43], %67 {strides = array<i32>} : memref<64x34xf32, #tpu.memory_space<vmem>>, vector<64x34xf32>,
    } else {
    }
    %c0 = arith.constant 0 : index
    %c0_1 = arith.constant 0 : index
    %3 = vector.load %arg5[%c0, %c0_1] : memref<128x64xbf16, #tpu.memory_space<vmem>>, vector<128x64xbf16>
    %c0_2 = arith.constant 0 : index
    %c0_3 = arith.constant 0 : index
    %4 = vector.load %arg6[%c0_2, %c0_3] : memref<128x64xbf16, #tpu.memory_space<vmem>>, vector<128x64xbf16>
    %c0_4 = arith.constant 0 : index
    %c0_5 = arith.constant 0 : index
    %5 = vector.load %arg9[%c0_4, %c0_5] : memref<64x34xbf16, #tpu.memory_space<vmem>>, vector<64x34xbf16>
    %cst = arith.constant dense<0.000000e+00> : vector<128x34xf32>
    %6 = tpu.matmul %3, %5, %cst {dimension_numbers = #tpu.dot_dimension_numbers<[1], [0], [0], [1], [0, 0, 1, 1], [], []>} : vector<128x64xbf16>, vector<64x34xbf16>, vector<128x34xf32> -> vector<128x34xf32>
    %c0_6 = arith.constant 0 : index
    %c0_7 = arith.constant 0 : index
    %7 = vector.load %arg10[%c0_6, %c0_7] : memref<64x2xbf16, #tpu.memory_space<vmem>>, vector<64x2xbf16>
    %cst_8 = arith.constant dense<0.000000e+00> : vector<128x2xf32>
    %8 = tpu.matmul %4, %7, %cst_8 {dimension_numbers = #tpu.dot_dimension_numbers<[1], [0], [0], [1], [0, 0, 1, 1], [], []>} : vector<128x64xbf16>, vector<64x2xbf16>, vector<128x2xf32> -> vector<128x2xf32>
    %9 = vector.extract_strided_slice %6 {offsets = [0, 0], sizes = [128, 32], strides = [1, 1]} : vector<128x34xf32> to vector<128x32xf32>
    %10 = vector.extract_strided_slice %6 {offsets = [0, 32], sizes = [128, 2], strides = [1, 1]} : vector<128x34xf32> to vector<128x2xf32>
    %11 = arith.addf %10, %8 : vector<128x2xf32>
    %cst_9 = arith.constant 0.000000e+00 : f32
    %12 = vector.broadcast %cst_9 : f32 to vector<128x2xf32>
    %13 = arith.cmpf oge, %11, %12 : vector<128x2xf32>
    %cst_10 = arith.constant 2.000000e-01 : f32
    %14 = vector.broadcast %cst_10 : f32 to vector<128x2xf32>
    %15 = arith.mulf %14, %11 : vector<128x2xf32>
    %16 = arith.select %13, %11, %15 : vector<128x2xi1>, vector<128x2xf32>
    %c0_11 = arith.constant 0 : index
    %c32 = arith.constant 32 : index
    %17 = vector.load %arg9[%c0_11, %c32] : memref<64x34xbf16, #tpu.memory_space<vmem>>, vector<64x2xbf16>
    %18 = arith.extf %17 : vector<64x2xbf16> to vector<64x2xf32>
    %c0_12 = arith.constant 0 : index
    %c0_13 = arith.constant 0 : index
    %19 = vector.load %arg10[%c0_12, %c0_13] : memref<64x2xbf16, #tpu.memory_space<vmem>>, vector<64x2xbf16>
    %20 = arith.extf %19 : vector<64x2xbf16> to vector<64x2xf32>
    %cst_14 = arith.constant dense<0xFF800000> : vector<2xf32>
    %21 = vector.multi_reduction <maximumf>, %18, %cst_14 [0] : vector<64x2xf32> to vector<2xf32>
    %22 = vector.shape_cast %21 : vector<2xf32> to vector<1x2xf32>
    %cst_15 = arith.constant dense<0xFF800000> : vector<2xf32>
    %23 = vector.multi_reduction <maximumf>, %20, %cst_15 [0] : vector<64x2xf32> to vector<2xf32>
    %24 = vector.shape_cast %23 : vector<2xf32> to vector<1x2xf32>
    %25 = arith.addf %22, %24 : vector<1x2xf32>
    %cst_16 = arith.constant 0.000000e+00 : f32
    %26 = vector.broadcast %cst_16 : f32 to vector<1x2xf32>
    %27 = arith.cmpf oge, %25, %26 : vector<1x2xf32>
    %cst_17 = arith.constant 2.000000e-01 : f32
    %28 = vector.broadcast %cst_17 : f32 to vector<1x2xf32>
    %29 = arith.mulf %28, %25 : vector<1x2xf32>
    %30 = arith.select %27, %25, %29 : vector<1x2xi1>, vector<1x2xf32>
    %31 = vector.broadcast %30 : vector<1x2xf32> to vector<128x2xf32>
    %32 = arith.subf %16, %31 : vector<128x2xf32>
    %33 = math.exp %32 : vector<128x2xf32>
    %34 = vector.extract_strided_slice %9 {offsets = [0, 0], sizes = [128, 16], strides = [1, 1]} : vector<128x32xf32> to vector<128x16xf32>
    %35 = vector.extract_strided_slice %33 {offsets = [0, 0], sizes = [128, 1], strides = [1, 1]} : vector<128x2xf32> to vector<128x1xf32>
    %36 = vector.broadcast %35 : vector<128x1xf32> to vector<128x16xf32>
    %37 = arith.mulf %34, %36 : vector<128x16xf32>
    %38 = vector.extract_strided_slice %9 {offsets = [0, 16], sizes = [128, 16], strides = [1, 1]} : vector<128x32xf32> to vector<128x16xf32>
    %39 = vector.extract_strided_slice %33 {offsets = [0, 1], sizes = [128, 1], strides = [1, 1]} : vector<128x2xf32> to vector<128x1xf32>
    %40 = vector.broadcast %39 : vector<128x1xf32> to vector<128x16xf32>
    %41 = arith.mulf %38, %40 : vector<128x16xf32>
    %42 = tpu.concatenate %37, %41 in 1 : vector<128x16xf32>, vector<128x16xf32> -> vector<128x32xf32>
    %43 = tpu.concatenate %42, %33 in 1 : vector<128x32xf32>, vector<128x2xf32> -> vector<128x34xf32>
    %44 = arith.truncf %43 : vector<128x34xf32> to vector<128x34xbf16>
    %c0_18 = arith.constant 0 : index
    %c0_19 = arith.constant 0 : index
    %45 = vector.load %arg12[%c0_18, %c0_19] : memref<64x34xf32, #tpu.memory_space<vmem>>, vector<64x34xf32>
    %cst_20 = arith.constant dense<0.000000e+00> : vector<64x34xf32>
    %46 = tpu.matmul %4, %44, %cst_20 {dimension_numbers = #tpu.dot_dimension_numbers<[0], [0], [1], [1], [0, 1, 1, 1], [], []>} : vector<128x64xbf16>, vector<128x34xbf16>, vector<64x34xf32> -> vector<64x34xf32>
    %47 = arith.addf %45, %46 : vector<64x34xf32>
    %c0_21 = arith.constant 0 : index
    %c0_22 = arith.constant 0 : index
    %48 = vector.load %arg12[%c0_21, %c0_22] : memref<64x34xf32, #tpu.memory_space<vmem>>, vector<64x34xf32>
    tpu.vector_store %arg12[%c0_21, %c0_22], %47 {strides = array<i32>} : memref<64x34xf32, #tpu.memory_space<vmem>>, vector<64x34xf32>,
    %c1_i32 = arith.constant 1 : i32
    %49 = arith.cmpi eq, %arg0, %c1_i32 : i32
    %50 = arith.extui %49 : i1 to i32
    %c0_i32_23 = arith.constant 0 : i32
    %51 = arith.cmpi ne, %50, %c0_i32_23 : i32
    scf.if %51 {
      %c0_24 = arith.constant 0 : index
      %c0_25 = arith.constant 0 : index
      %52 = vector.load %arg12[%c0_24, %c0_25] : memref<64x34xf32, #tpu.memory_space<vmem>>, vector<64x32xf32>
      %c0_26 = arith.constant 0 : index
      %c32_27 = arith.constant 32 : index
      %53 = vector.load %arg12[%c0_26, %c32_27] : memref<64x34xf32, #tpu.memory_space<vmem>>, vector<64x2xf32>
      %cst_28 = arith.constant 1.000000e-16 : f32
      %54 = vector.broadcast %cst_28 : f32 to vector<64x2xf32>
      %55 = arith.addf %53, %54 : vector<64x2xf32>
      %cst_29 = arith.constant 1.000000e+00 : f32
      %56 = vector.broadcast %cst_29 : f32 to vector<64x2xf32>
      %57 = arith.divf %56, %55 : vector<64x2xf32>
      %c0_30 = arith.constant 0 : index
      %c0_31 = arith.constant 0 : index
      %58 = vector.load %arg11[%c0_30, %c0_31] : memref<64x32xf32, #tpu.memory_space<vmem>>, vector<64x32xf32>
      %59 = vector.extract_strided_slice %52 {offsets = [0, 0], sizes = [64, 16], strides = [1, 1]} : vector<64x32xf32> to vector<64x16xf32>
      %60 = vector.extract_strided_slice %57 {offsets = [0, 0], sizes = [64, 1], strides = [1, 1]} : vector<64x2xf32> to vector<64x1xf32>
      %61 = vector.broadcast %60 : vector<64x1xf32> to vector<64x16xf32>
      %62 = arith.mulf %59, %61 : vector<64x16xf32>
      %63 = vector.extract_strided_slice %58 {offsets = [0, 0], sizes = [64, 16], strides = [1, 1]} : vector<64x32xf32> to vector<64x16xf32>
      %64 = arith.addf %62, %63 : vector<64x16xf32>
      %65 = vector.extract_strided_slice %52 {offsets = [0, 16], sizes = [64, 16], strides = [1, 1]} : vector<64x32xf32> to vector<64x16xf32>
      %66 = vector.extract_strided_slice %57 {offsets = [0, 1], sizes = [64, 1], strides = [1, 1]} : vector<64x2xf32> to vector<64x1xf32>
      %67 = vector.broadcast %66 : vector<64x1xf32> to vector<64x16xf32>
      %68 = arith.mulf %65, %67 : vector<64x16xf32>
      %69 = vector.extract_strided_slice %58 {offsets = [0, 16], sizes = [64, 16], strides = [1, 1]} : vector<64x32xf32> to vector<64x16xf32>
      %70 = arith.addf %68, %69 : vector<64x16xf32>
      %71 = arith.addf %64, %70 : vector<64x16xf32>
      %cst_32 = arith.constant 5.000000e-01 : f32
      %72 = vector.broadcast %cst_32 : f32 to vector<64x16xf32>
      %73 = arith.mulf %71, %72 : vector<64x16xf32>
      %c0_33 = arith.constant 0 : index
      %c0_34 = arith.constant 0 : index
      %74 = vector.load %arg7[%c0_33, %c0_34] : memref<1x16xf32, #tpu.memory_space<vmem>>, vector<1x16xf32>
      %75 = vector.broadcast %74 : vector<1x16xf32> to vector<64x16xf32>
      %76 = arith.addf %73, %75 : vector<64x16xf32>
      %cst_35 = arith.constant 0.000000e+00 : f32
      %77 = vector.broadcast %cst_35 : f32 to vector<64x16xf32>
      %78 = arith.cmpf ogt, %76, %77 : vector<64x16xf32>
      %79 = math.exp %76 : vector<64x16xf32>
      %cst_36 = arith.constant 1.000000e+00 : f32
      %80 = vector.broadcast %cst_36 : f32 to vector<64x16xf32>
      %81 = arith.subf %79, %80 : vector<64x16xf32>
      %82 = arith.select %78, %76, %81 : vector<64x16xi1>, vector<64x16xf32>
      %c0_37 = arith.constant 0 : index
      %c0_38 = arith.constant 0 : index
      %83 = vector.load %arg8[%c0_37, %c0_38] : memref<64x16xf32, #tpu.memory_space<vmem>>, vector<64x16xf32>
      tpu.vector_store %arg8[%c0_37, %c0_38], %82 {strides = array<i32>} : memref<64x16xf32, #tpu.memory_space<vmem>>, vector<64x16xf32>,
    } else {
    }
    return
  }
  func.func @transform_0(%arg0: i32) -> (i32, i32) {
    %c0_i32 = arith.constant 0 : i32
    %c0_i32_0 = arith.constant 0 : i32
    %c0_i32_1 = arith.constant 0 : i32
    return %c0_i32, %c0_i32_0 : i32, i32
  }
  func.func @transform_1(%arg0: i32) -> (i32, i32) {
    %c0_i32 = arith.constant 0 : i32
    %c0_i32_0 = arith.constant 0 : i32
    %c0_i32_1 = arith.constant 0 : i32
    return %c0_i32, %c0_i32_0 : i32, i32
  }
  func.func @transform_2(%arg0: i32) -> (i32, i32) {
    %c0_i32 = arith.constant 0 : i32
    %c0_i32_0 = arith.constant 0 : i32
    %c0_i32_1 = arith.constant 0 : i32
    return %c0_i32, %c0_i32_0 : i32, i32
  }
  func.func @transform_3(%arg0: i32) -> (i32, i32) {
    %c0_i32 = arith.constant 0 : i32
    %c0_i32_0 = arith.constant 0 : i32
    %c0_i32_1 = arith.constant 0 : i32
    return %c0_i32, %c0_i32_0 : i32, i32
  }
  func.func @transform_4(%arg0: i32) -> (i32, i32) {
    %c0_i32 = arith.constant 0 : i32
    %c0_i32_0 = arith.constant 0 : i32
    return %arg0, %c0_i32 : i32, i32
  }
  func.func @transform_5(%arg0: i32) -> (i32, i32) {
    %c0_i32 = arith.constant 0 : i32
    %c0_i32_0 = arith.constant 0 : i32
    return %arg0, %c0_i32 : i32, i32
  }
  func.func @transform_6(%arg0: i32) -> (i32, i32) {
    %c0_i32 = arith.constant 0 : i32
    %c0_i32_0 = arith.constant 0 : i32
    %c0_i32_1 = arith.constant 0 : i32
    return %c0_i32, %c0_i32_0 : i32, i32
  }
  func.func @transform_7(%arg0: i32) -> (i32, i32) {
    %c0_i32 = arith.constant 0 : i32
    %c0_i32_0 = arith.constant 0 : i32
    %c0_i32_1 = arith.constant 0 : i32
    return %c0_i32, %c0_i32_0 : i32, i32
  }
}

</mosaic_0001>

<llo_original>
// kernel: tpu_custom_call.1
$region0: #{tpu_custom_call.1}
  #allocation0 [shape = 'u32[]', space=smem, size = 0x4, offset = 0x4, fixed_abs, tag = 'smem constant byte address 0x4 - core index']
  #allocation1 [shape = 'u32[144,128]{1,0:T(1,128)}', space=vmem, size = 0x12000, scoped, tag = 'internal scratch']
  #allocation2 [shape = 'bf16[64,34]{1,0:T(8,128)(2,1)}', space=vmem, size = 0x4000, scoped, tag = 'scratch operand']
  #allocation3 [shape = 'bf16[64,2]{1,0:T(8,128)(2,1)}', space=vmem, size = 0x4000, scoped, tag = 'scratch operand']
  #allocation4 [shape = 'f32[64,32]{1,0:T(8,128)}', space=vmem, size = 0x8000, scoped, tag = 'scratch operand']
  #allocation5 [shape = 'f32[64,34]{1,0:T(8,128)}', space=vmem, size = 0x8000, scoped, tag = 'scratch operand']
  %s0 = inlined_call_operand.vmem [shape: f32[64,8], index: 0, kind: input, shape index: {}]
  %s1 = inlined_call_operand.vmem [shape: f32[8,32], index: 1, kind: input, shape index: {}]
  %s2 = inlined_call_operand.vmem [shape: f32[8,32], index: 2, kind: input, shape index: {}]
  %s3 = inlined_call_operand.vmem [shape: f32[32,4], index: 3, kind: input, shape index: {}]
  %s4 = inlined_call_operand.vmem [shape: bf16[256,64], index: 4, kind: input, shape index: {}]
  %s5 = inlined_call_operand.vmem [shape: bf16[256,64], index: 5, kind: input, shape index: {}]
  %s6 = inlined_call_operand.vmem [shape: f32[1,16], index: 6, kind: input, shape index: {}]
  %s7 = inlined_call_operand.vmem [shape: f32[64,16], index: 7, kind: output, shape index: {}]
  %s8 = sld [smem:[#allocation0]]
  $region69: #{tpu_custom_call.1} parent=0
    _
  %s10 = ssub.s32 1, %s8
  %s11 = scalar_select 0, %s10, %s8
  loop: start=0, step=1, limit=4
  $region2: #{tpu_custom_call.1} parent=0 // loop_pre_header
    _
  $region3: #{tpu_custom_call.1} parent=0 // loop_header
    %s13 = sphi 0, %s17
    %p14 = scmp.ge.s32.totalorder %s13, 4
    %s21 = sphi 0, %s21
    %s23 = sphi 0, %s21
    %s24 = sphi 0, %s23
    %s38 = sphi 0, %s24
    %s42 = sphi 0, %s42
    %s44 = sphi 0, %s42
    %s45 = sphi 0, %s44
    %s59 = sphi 0, %s45
    %s63 = sphi 0, %s63
    %s65 = sphi 0, %s63
    %s66 = sphi 0, %s65
    %s80 = sphi 0, %s66
    %s84 = sphi 0, %s84
    %s86 = sphi 0, %s84
    %s87 = sphi 0, %s86
    %s101 = sphi 0, %s87
    %s107 = sphi 0, %s109
    %s110 = sphi 0, %s107
    %s111 = sphi 0, %s110
    %s127 = sphi 0, %s111
    %s133 = sphi 0, %s135
    %s136 = sphi 0, %s133
    %s137 = sphi 0, %s136
    %s153 = sphi 0, %s137
    %s157 = sphi 0, %s157
    %s159 = sphi 0, %s157
    %s160 = sphi 0, %s159
    %s174 = sphi 0, %s160
    %s178 = sphi 0, %s178
    %s180 = sphi 0, %s178
    %s181 = sphi 0, %s180
    %s195 = sphi 0, %s181
  $region4: #{tpu_custom_call.1} parent=0 // loop_header_branch
    %16 = sbr.rel (%p14) target = $region8
  $region5: #{tpu_custom_call.1} parent=0 // loop_body
    %s18 = ssub.s32 %s13, 1
    %s19 = ssub.s32 %s13, 2
    %s20 = sadd.s32 %s13, 1
    %s22 = sadd.s32 %s21, 1
    %p25 = scmp.eq.s32.totalorder %s13, 1
    %p26 = scmp.ne.s32.totalorder %s21, %s23
    %p27 = scmp.eq.s32.totalorder %s13, 0
    %p28 = por %p26, %p27
    %p29 = scmp.ne.s32.totalorder %s21, %s23
    %p30 = scmp.eq.s32.totalorder %s18, 1
    %p31 = por %p29, %p30
    %p32 = scmp.ne.s32.totalorder %s23, %s24
    %p33 = scmp.eq.s32.totalorder %s18, 0
    %p34 = por %p32, %p33
    %p35 = scmp.ne.s32.totalorder %s23, %s24
    %p36 = scmp.eq.s32.totalorder %s19, 1
    %p37 = por %p35, %p36
    %p39 = scmp.ne.s32.totalorder %s24, %s38
    %p40 = scmp.eq.s32.totalorder %s19, 0
    %p41 = por %p39, %p40
    %s43 = sadd.s32 %s42, 1
    %p46 = scmp.eq.s32.totalorder %s13, 1
    %p47 = scmp.ne.s32.totalorder %s42, %s44
    %p48 = scmp.eq.s32.totalorder %s13, 0
    %p49 = por %p47, %p48
    %p50 = scmp.ne.s32.totalorder %s42, %s44
    %p51 = scmp.eq.s32.totalorder %s18, 1
    %p52 = por %p50, %p51
    %p53 = scmp.ne.s32.totalorder %s44, %s45
    %p54 = scmp.eq.s32.totalorder %s18, 0
    %p55 = por %p53, %p54
    %p56 = scmp.ne.s32.totalorder %s44, %s45
    %p57 = scmp.eq.s32.totalorder %s19, 1
    %p58 = por %p56, %p57
    %p60 = scmp.ne.s32.totalorder %s45, %s59
    %p61 = scmp.eq.s32.totalorder %s19, 0
    %p62 = por %p60, %p61
    %s64 = sadd.s32 %s63, 1
    %p67 = scmp.eq.s32.totalorder %s13, 1
    %p68 = scmp.ne.s32.totalorder %s63, %s65
    %p69 = scmp.eq.s32.totalorder %s13, 0
    %p70 = por %p68, %p69
    %p71 = scmp.ne.s32.totalorder %s63, %s65
    %p72 = scmp.eq.s32.totalorder %s18, 1
    %p73 = por %p71, %p72
    %p74 = scmp.ne.s32.totalorder %s65, %s66
    %p75 = scmp.eq.s32.totalorder %s18, 0
    %p76 = por %p74, %p75
    %p77 = scmp.ne.s32.totalorder %s65, %s66
    %p78 = scmp.eq.s32.totalorder %s19, 1
    %p79 = por %p77, %p78
    %p81 = scmp.ne.s32.totalorder %s66, %s80
    %p82 = scmp.eq.s32.totalorder %s19, 0
    %p83 = por %p81, %p82
    %s85 = sadd.s32 %s84, 1
    %p88 = scmp.eq.s32.totalorder %s13, 1
    %p89 = scmp.ne.s32.totalorder %s84, %s86
    %p90 = scmp.eq.s32.totalorder %s13, 0
    %p91 = por %p89, %p90
    %p92 = scmp.ne.s32.totalorder %s84, %s86
    %p93 = scmp.eq.s32.totalorder %s18, 1
    %p94 = por %p92, %p93
    %p95 = scmp.ne.s32.totalorder %s86, %s87
    %p96 = scmp.eq.s32.totalorder %s18, 0
    %p97 = por %p95, %p96
    %p98 = scmp.ne.s32.totalorder %s86, %s87
    %p99 = scmp.eq.s32.totalorder %s19, 1
    %p100 = por %p98, %p99
    %p102 = scmp.ne.s32.totalorder %s87, %s101
    %p103 = scmp.eq.s32.totalorder %s19, 0
    %p104 = por %p102, %p103
    %s105 = ssub.s32 %s13, %s20
    %p106 = scmp.eq.s32.totalorder %s105, 0
    %s108 = sadd.s32 %s107, 1
    %s109 = scalar_select %p106, %s107, %s108
    %p112 = pneg %p106
    %p113 = scmp.eq.s32.totalorder %s13, 1
    %p114 = por %p112, %p113
    %p115 = scmp.ne.s32.totalorder %s107, %s110
    %p116 = scmp.eq.s32.totalorder %s13, 0
    %p117 = por %p115, %p116
    %p118 = scmp.ne.s32.totalorder %s107, %s110
    %p119 = scmp.eq.s32.totalorder %s18, 1
    %p120 = por %p118, %p119
    %p121 = scmp.ne.s32.totalorder %s110, %s111
    %p122 = scmp.eq.s32.totalorder %s18, 0
    %p123 = por %p121, %p122
    %p124 = scmp.ne.s32.totalorder %s110, %s111
    %p125 = scmp.eq.s32.totalorder %s19, 1
    %p126 = por %p124, %p125
    %p128 = scmp.ne.s32.totalorder %s111, %s127
    %p129 = scmp.eq.s32.totalorder %s19, 0
    %p130 = por %p128, %p129
    %s131 = ssub.s32 %s13, %s20
    %p132 = scmp.eq.s32.totalorder %s131, 0
    %s134 = sadd.s32 %s133, 1
    %s135 = scalar_select %p132, %s133, %s134
    %p138 = pneg %p132
    %p139 = scmp.eq.s32.totalorder %s13, 1
    %p140 = por %p138, %p139
    %p141 = scmp.ne.s32.totalorder %s133, %s136
    %p142 = scmp.eq.s32.totalorder %s13, 0
    %p143 = por %p141, %p142
    %p144 = scmp.ne.s32.totalorder %s133, %s136
    %p145 = scmp.eq.s32.totalorder %s18, 1
    %p146 = por %p144, %p145
    %p147 = scmp.ne.s32.totalorder %s136, %s137
    %p148 = scmp.eq.s32.totalorder %s18, 0
    %p149 = por %p147, %p148
    %p150 = scmp.ne.s32.totalorder %s136, %s137
    %p151 = scmp.eq.s32.totalorder %s19, 1
    %p152 = por %p150, %p151
    %p154 = scmp.ne.s32.totalorder %s137, %s153
    %p155 = scmp.eq.s32.totalorder %s19, 0
    %p156 = por %p154, %p155
    %s158 = sadd.s32 %s157, 1
    %p161 = scmp.eq.s32.totalorder %s13, 1
    %p162 = scmp.ne.s32.totalorder %s157, %s159
    %p163 = scmp.eq.s32.totalorder %s13, 0
    %p164 = por %p162, %p163
    %p165 = scmp.ne.s32.totalorder %s157, %s159
    %p166 = scmp.eq.s32.totalorder %s18, 1
    %p167 = por %p165, %p166
    %p168 = scmp.ne.s32.totalorder %s159, %s160
    %p169 = scmp.eq.s32.totalorder %s18, 0
    %p170 = por %p168, %p169
    %p171 = scmp.ne.s32.totalorder %s159, %s160
    %p172 = scmp.eq.s32.totalorder %s19, 1
    %p173 = por %p171, %p172
    %p175 = scmp.ne.s32.totalorder %s160, %s174
    %p176 = scmp.eq.s32.totalorder %s19, 0
    %p177 = por %p175, %p176
    %s179 = sadd.s32 %s178, 1
    %p182 = scmp.eq.s32.totalorder %s13, 1
    %p183 = scmp.ne.s32.totalorder %s178, %s180
    %p184 = scmp.eq.s32.totalorder %s13, 0
    %p185 = por %p183, %p184
    %p186 = scmp.ne.s32.totalorder %s178, %s180
    %p187 = scmp.eq.s32.totalorder %s18, 1
    %p188 = por %p186, %p187
    %p189 = scmp.ne.s32.totalorder %s180, %s181
    %p190 = scmp.eq.s32.totalorder %s18, 0
    %p191 = por %p189, %p190
    %p192 = scmp.ne.s32.totalorder %s180, %s181
    %p193 = scmp.eq.s32.totalorder %s19, 1
    %p194 = por %p192, %p193
    %p196 = scmp.ne.s32.totalorder %s181, %s195
    %p197 = scmp.eq.s32.totalorder %s19, 0
    %p198 = por %p196, %p197
    %p199 = scmp.le.s32.totalorder 1, %s13
    %p200 = scmp.lt.s32.totalorder %s13, 3
    %p201 = pnand %p199, %p200
    %p202 = pneg %p201
    // Predicated region
    $region9: #{tpu_custom_call.1} parent=5 // pred_check
      _
    $region10: #{tpu_custom_call.1} parent=5 // pred_check_branch
      %204 = sbr.rel (%p201) target = $region12
    $region11: #{tpu_custom_call.1} parent=5 // pred_region
      %s205 = ssub.s32 %s13, 1
      // Predicated region
      $region13: #{tpu_custom_call.1} parent=11 // pred_check
        %p206 = pneg %p34
      $region14: #{tpu_custom_call.1} parent=11 // pred_check_branch
        %208 = sbr.rel (%p206) target = $region16
      $region15: #{tpu_custom_call.1} parent=11 // pred_region
        _
      $region16: #{tpu_custom_call.1} parent=11 // pred_fallthru
        _
      // Predicated region
      $region17: #{tpu_custom_call.1} parent=11 // pred_check
        %p209 = pneg %p55
      $region18: #{tpu_custom_call.1} parent=11 // pred_check_branch
        %211 = sbr.rel (%p209) target = $region20
      $region19: #{tpu_custom_call.1} parent=11 // pred_region
        _
      $region20: #{tpu_custom_call.1} parent=11 // pred_fallthru
        _
      // Predicated region
      $region21: #{tpu_custom_call.1} parent=11 // pred_check
        %p212 = pneg %p76
      $region22: #{tpu_custom_call.1} parent=11 // pred_check_branch
        %214 = sbr.rel (%p212) target = $region24
      $region23: #{tpu_custom_call.1} parent=11 // pred_region
        _
      $region24: #{tpu_custom_call.1} parent=11 // pred_fallthru
        _
      // Predicated region
      $region25: #{tpu_custom_call.1} parent=11 // pred_check
        %p215 = pneg %p97
      $region26: #{tpu_custom_call.1} parent=11 // pred_check_branch
        %217 = sbr.rel (%p215) target = $region28
      $region27: #{tpu_custom_call.1} parent=11 // pred_region
        _
      $region28: #{tpu_custom_call.1} parent=11 // pred_fallthru
        _
      // Predicated region
      $region29: #{tpu_custom_call.1} parent=11 // pred_check
        %p218 = pneg %p170
      $region30: #{tpu_custom_call.1} parent=11 // pred_check_branch
        %220 = sbr.rel (%p218) target = $region32
      $region31: #{tpu_custom_call.1} parent=11 // pred_region
        _
      $region32: #{tpu_custom_call.1} parent=11 // pred_fallthru
        _
    $region12: #{tpu_custom_call.1} parent=5 // pred_fallthru
      _
    %p221 = scmp.lt.s32.totalorder %s13, 2
    // Predicated region
    $region33: #{tpu_custom_call.1} parent=5 // pred_check
      %p222 = pneg %p221
    $region34: #{tpu_custom_call.1} parent=5 // pred_check_branch
      %224 = sbr.rel (%p222) target = $region36
    $region35: #{tpu_custom_call.1} parent=5 // pred_region
      // Predicated region
      $region37: #{tpu_custom_call.1} parent=35 // pred_check
        %p225 = pneg %p117
      $region38: #{tpu_custom_call.1} parent=35 // pred_check_branch
        %227 = sbr.rel (%p225) target = $region40
      $region39: #{tpu_custom_call.1} parent=35 // pred_region
        %s228 = smul.u32 16, %s13
        %p229 = scmp.lt.s32.totalorder %s228, 31
        %s230 = scalar_select %p229, %s228, 31
        %s231 = smul.addr %s230, 4
        %s232 = scalar_lea.vmem %s4, %s231
        %s233 = smul.u32 16, %s13
      $region40: #{tpu_custom_call.1} parent=35 // pred_fallthru
        _
      // Predicated region
      $region41: #{tpu_custom_call.1} parent=35 // pred_check
        %p234 = pneg %p143
      $region42: #{tpu_custom_call.1} parent=35 // pred_check_branch
        %236 = sbr.rel (%p234) target = $region44
      $region43: #{tpu_custom_call.1} parent=35 // pred_region
        %s237 = smul.u32 16, %s13
        %p238 = scmp.lt.s32.totalorder %s237, 31
        %s239 = scalar_select %p238, %s237, 31
        %s240 = smul.addr %s239, 4
        %s241 = scalar_lea.vmem %s5, %s240
        %s242 = smul.u32 16, %s13
      $region44: #{tpu_custom_call.1} parent=35 // pred_fallthru
        _
    $region36: #{tpu_custom_call.1} parent=5 // pred_fallthru
      _
    %p243 = scmp.le.s32.totalorder 1, %s13
    %p244 = scmp.lt.s32.totalorder %s13, 3
    %p245 = pnand %p243, %p244
    %p246 = pneg %p245
    // Predicated region
    $region45: #{tpu_custom_call.1} parent=5 // pred_check
      _
    $region46: #{tpu_custom_call.1} parent=5 // pred_check_branch
      %248 = sbr.rel (%p245) target = $region48
    $region47: #{tpu_custom_call.1} parent=5 // pred_region
      %s249 = ssub.s32 %s13, 1
      %p250 = pneg %p34
      %p251 = pneg %p31
      %p252 = pneg %p55
      %p253 = pneg %p52
      %p254 = pneg %p76
      %p255 = pneg %p73
      %p256 = pneg %p97
      %p257 = pneg %p94
      %s258 = smul.u32 16, %s18
      %p259 = scmp.lt.s32.totalorder %s258, 31
      %s260 = scalar_select %p259, %s258, 31
      %s261 = smul.addr %s260, 4
      %s262 = scalar_lea.vmem %s4, %s261
      %p263 = pneg %p123
      %p264 = pneg %p120
      %s265 = smul.u32 16, %s18
      %p266 = scmp.lt.s32.totalorder %s265, 31
      %s267 = scalar_select %p266, %s265, 31
      %s268 = smul.addr %s267, 4
      %s269 = scalar_lea.vmem %s5, %s268
      %p270 = pneg %p149
      %p271 = pneg %p146
      %p272 = pneg %p170
      %p273 = pneg %p167
      %p274 = pneg %p191
      %p275 = pneg %p188
      %s276 = smul.u32 16, %s18
      %p277 = scmp.lt.s32.totalorder %s276, 31
      %s278 = scalar_select %p277, %s276, 31
      %s279 = smul.addr %s278, 4
      %s280 = scalar_lea.vmem %s4, %s279
      %s281 = smul.u32 16, %s18
      %s282 = smul.u32 16, %s18
      %p283 = scmp.lt.s32.totalorder %s282, 31
      %s284 = scalar_select %p283, %s282, 31
      %s285 = smul.addr %s284, 4
      %s286 = scalar_lea.vmem %s5, %s285
      %s287 = smul.u32 16, %s18
      %p289 = scmp.eq.s32.totalorder %s18, 0
      // Predicated region
      $region49: #{tpu_custom_call.1} parent=47 // pred_check
        %p290 = pneg %p289
      $region50: #{tpu_custom_call.1} parent=47 // pred_check_branch
        %292 = sbr.rel (%p290) target = $region52
      $region51: #{tpu_custom_call.1} parent=47 // pred_region
        %v293 = vld [vmem:[%s0] sm:$0xff]
        %v294 = vld [vmem:[%s0 + $0x8] sm:$0xff]
        %v295 = vld [vmem:[%s0 + $0x10] sm:$0xff]
        %v296 = vld [vmem:[%s0 + $0x18] sm:$0xff]
        %v297 = vld [vmem:[%s0 + $0x20] sm:$0xff]
        %v298 = vld [vmem:[%s0 + $0x28] sm:$0xff]
        %v299 = vld [vmem:[%s0 + $0x30] sm:$0xff]
        %v300 = vld [vmem:[%s0 + $0x38] sm:$0xff]
        %v301 = vld [vmem:[%s1] sm:$0xff]
        %vm302 = vcmask 64512
        %v304 = vsel %vm302, %v293, 0
        %v307 = vsel %vm302, %v294, 0
        %v310 = vsel %vm302, %v295, 0
        %v313 = vsel %vm302, %v296, 0
        %v316 = vsel %vm302, %v297, 0
        %v319 = vsel %vm302, %v298, 0
        %v322 = vsel %vm302, %v299, 0
        %v325 = vsel %vm302, %v300, 0
        %327 = vmatprep.subr.mxu0 0.0
        %328 = vmatpush1.msra.mxu0 0.0
        %329 = vmatprep.subr.mxu0 0.0
        %330 = vmatpush1.msra.mxu0 0.0
        %331 = vmatprep.subr.mxu0 0.0
        %332 = vmatpush1.msra.mxu0 0.0
        %333 = vmatprep.subr.mxu0 0.0
        %334 = vmatpush1.msra.mxu0 0.0
        %335 = vmatprep.subr.mxu0 0.0
        %336 = vmatpush1.msra.mxu0 0.0
        %337 = vmatprep.subr.mxu0 0.0
        %338 = vmatpush1.msra.mxu0 0.0
        %339 = vmatprep.subr.mxu0 0.0
        %340 = vmatpush1.msra.mxu0 0.0
        %341 = vmatprep.subr.mxu0 0.0
        %342 = vmatpush1.msra.mxu0 0.0
        %343 = vmatprep.subr.mxu0 0.0
        %344 = vmatpush1.msra.mxu0 0.0
        %345 = vmatprep.subr.mxu0 0.0
        %346 = vmatpush1.msra.mxu0 0.0
        %347 = vmatprep.subr.mxu0 0.0
        %348 = vmatpush1.msra.mxu0 0.0
        %349 = vmatprep.subr.mxu0 0.0
        %350 = vmatpush1.msra.mxu0 0.0
        %351 = vmatprep.subr.mxu0 0.0
        %352 = vmatpush1.msra.mxu0 0.0
        %353 = vmatprep.subr.mxu0 0.0
        %354 = vmatpush1.msra.mxu0 0.0
        %355 = vmatprep.subr.mxu0 0.0
        %356 = vmatpush1.msra.mxu0 0.0
        %357 = vmatprep.subr.mxu0 0.0
        %v358 = vand.u32 %v301, 4294901760
        %359 = vmatpush1.msra.mxu0 %v358
        %360 = vmatprep.subr.mxu0 0.0
        %361 = vmatpush2.msra.mxu0 0.0
        %362 = vmatprep.subr.mxu0 0.0
        %363 = vmatpush2.msra.mxu0 0.0
        %364 = vmatprep.subr.mxu0 0.0
        %365 = vmatpush2.msra.mxu0 0.0
        %366 = vmatprep.subr.mxu0 0.0
        %367 = vmatpush2.msra.mxu0 0.0
        %368 = vmatprep.subr.mxu0 0.0
        %369 = vmatpush2.msra.mxu0 0.0
        %370 = vmatprep.subr.mxu0 0.0
        %371 = vmatpush2.msra.mxu0 0.0
        %372 = vmatprep.subr.mxu0 0.0
        %373 = vmatpush2.msra.mxu0 0.0
        %374 = vmatprep.subr.mxu0 0.0
        %375 = vmatpush2.msra.mxu0 0.0
        %376 = vmatprep.subr.mxu0 0.0
        %377 = vmatpush2.msra.mxu0 0.0
        %378 = vmatprep.subr.mxu0 0.0
        %379 = vmatpush2.msra.mxu0 0.0
        %380 = vmatprep.subr.mxu0 0.0
        %381 = vmatpush2.msra.mxu0 0.0
        %382 = vmatprep.subr.mxu0 0.0
        %383 = vmatpush2.msra.mxu0 0.0
        %384 = vmatprep.subr.mxu0 0.0
        %385 = vmatpush2.msra.mxu0 0.0
        %386 = vmatprep.subr.mxu0 0.0
        %387 = vmatpush2.msra.mxu0 0.0
        %388 = vmatprep.subr.mxu0 0.0
        %389 = vmatpush2.msra.mxu0 0.0
        %390 = vmatprep.subr.mxu0 0.0
        %391 = vmatpush2.msra.mxu0 0.0
        %392 = vmatprep.mubr.f32.mxu0 0.0
        %v393 = vand.u32 %v304, 4294901760
        %v394 = vsub.f32 %v304, %v393
        %v395 = vand.u32 %v394, 4294901760
        %v396 = vsub.f32 %v394, %v395
        %v397 = vand.u32 %v396, 4294901760
        %398 = vmatmul.mubr.f32.gmra.mxu0 %v397
        %v399 = vpop.f32.mrf.mxu0
        %v400 = vadd.f32 0.0, %v399
        %v401 = vpop.f32.mrf.mxu0
        %402 = vmatprep.mubr.f32.mxu0 0.0
        %v403 = vand.u32 %v307, 4294901760
        %v404 = vsub.f32 %v307, %v403
        %v405 = vand.u32 %v404, 4294901760
        %v406 = vsub.f32 %v404, %v405
        %v407 = vand.u32 %v406, 4294901760
        %408 = vmatmul.mubr.f32.gmra.mxu0 %v407
        %v409 = vpop.f32.mrf.mxu0
        %v410 = vadd.f32 0.0, %v409
        %v411 = vpop.f32.mrf.mxu0
        %412 = vmatprep.mubr.f32.mxu0 0.0
        %v413 = vand.u32 %v310, 4294901760
        %v414 = vsub.f32 %v310, %v413
        %v415 = vand.u32 %v414, 4294901760
        %v416 = vsub.f32 %v414, %v415
        %v417 = vand.u32 %v416, 4294901760
        %418 = vmatmul.mubr.f32.gmra.mxu0 %v417
        %v419 = vpop.f32.mrf.mxu0
        %v420 = vadd.f32 0.0, %v419
        %v421 = vpop.f32.mrf.mxu0
        %422 = vmatprep.mubr.f32.mxu0 0.0
        %v423 = vand.u32 %v313, 4294901760
        %v424 = vsub.f32 %v313, %v423
        %v425 = vand.u32 %v424, 4294901760
        %v426 = vsub.f32 %v424, %v425
        %v427 = vand.u32 %v426, 4294901760
        %428 = vmatmul.mubr.f32.gmra.mxu0 %v427
        %v429 = vpop.f32.mrf.mxu0
        %v430 = vadd.f32 0.0, %v429
        %v431 = vpop.f32.mrf.mxu0
        %432 = vmatprep.mubr.f32.mxu0 0.0
        %v433 = vand.u32 %v316, 4294901760
        %v434 = vsub.f32 %v316, %v433
        %v435 = vand.u32 %v434, 4294901760
        %v436 = vsub.f32 %v434, %v435
        %v437 = vand.u32 %v436, 4294901760
        %438 = vmatmul.mubr.f32.gmra.mxu0 %v437
        %v439 = vpop.f32.mrf.mxu0
        %v440 = vadd.f32 0.0, %v439
        %v441 = vpop.f32.mrf.mxu0
        %442 = vmatprep.mubr.f32.mxu0 0.0
        %v443 = vand.u32 %v319, 4294901760
        %v444 = vsub.f32 %v319, %v443
        %v445 = vand.u32 %v444, 4294901760
        %v446 = vsub.f32 %v444, %v445
        %v447 = vand.u32 %v446, 4294901760
        %448 = vmatmul.mubr.f32.gmra.mxu0 %v447
        %v449 = vpop.f32.mrf.mxu0
        %v450 = vadd.f32 0.0, %v449
        %v451 = vpop.f32.mrf.mxu0
        %452 = vmatprep.mubr.f32.mxu0 0.0
        %v453 = vand.u32 %v322, 4294901760
        %v454 = vsub.f32 %v322, %v453
        %v455 = vand.u32 %v454, 4294901760
        %v456 = vsub.f32 %v454, %v455
        %v457 = vand.u32 %v456, 4294901760
        %458 = vmatmul.mubr.f32.gmra.mxu0 %v457
        %v459 = vpop.f32.mrf.mxu0
        %v460 = vadd.f32 0.0, %v459
        %v461 = vpop.f32.mrf.mxu0
        %462 = vmatprep.mubr.f32.mxu0 0.0
        %v463 = vand.u32 %v325, 4294901760
        %v464 = vsub.f32 %v325, %v463
        %v465 = vand.u32 %v464, 4294901760
        %v466 = vsub.f32 %v464, %v465
        %v467 = vand.u32 %v466, 4294901760
        %468 = vmatmul.mubr.f32.gmra.mxu0 %v467
        %v469 = vpop.f32.mrf.mxu0
        %v470 = vadd.f32 0.0, %v469
        %v471 = vpop.f32.mrf.mxu0
        %472 = vdwg.mxu0
        %473 = vmatprep.subr.mxu0 0.0
        %474 = vmatpush1.msra.mxu0 0.0
        %475 = vmatprep.subr.mxu0 0.0
        %476 = vmatpush1.msra.mxu0 0.0
        %477 = vmatprep.subr.mxu0 0.0
        %478 = vmatpush1.msra.mxu0 0.0
        %479 = vmatprep.subr.mxu0 0.0
        %480 = vmatpush1.msra.mxu0 0.0
        %481 = vmatprep.subr.mxu0 0.0
        %482 = vmatpush1.msra.mxu0 0.0
        %483 = vmatprep.subr.mxu0 0.0
        %484 = vmatpush1.msra.mxu0 0.0
        %485 = vmatprep.subr.mxu0 0.0
        %486 = vmatpush1.msra.mxu0 0.0
        %487 = vmatprep.subr.mxu0 0.0
        %488 = vmatpush1.msra.mxu0 0.0
        %489 = vmatprep.subr.mxu0 0.0
        %490 = vmatpush1.msra.mxu0 0.0
        %491 = vmatprep.subr.mxu0 0.0
        %492 = vmatpush1.msra.mxu0 0.0
        %493 = vmatprep.subr.mxu0 0.0
        %494 = vmatpush1.msra.mxu0 0.0
        %495 = vmatprep.subr.mxu0 0.0
        %496 = vmatpush1.msra.mxu0 0.0
        %497 = vmatprep.subr.mxu0 0.0
        %498 = vmatpush1.msra.mxu0 0.0
        %499 = vmatprep.subr.mxu0 0.0
        %500 = vmatpush1.msra.mxu0 0.0
        %501 = vmatprep.subr.mxu0 0.0
        %502 = vmatpush1.msra.mxu0 0.0
        %503 = vmatprep.subr.mxu0 0.0
        %v504 = vand.u32 %v301, 4294901760
        %v505 = vsub.f32 %v301, %v504
        %v506 = vand.u32 %v505, 4294901760
        %v507 = vsub.f32 %v505, %v506
        %v508 = vand.u32 %v507, 4294901760
        %509 = vmatpush1.msra.mxu0 %v508
        %510 = vmatprep.subr.mxu0 0.0
        %511 = vmatpush2.msra.mxu0 0.0
        %512 = vmatprep.subr.mxu0 0.0
        %513 = vmatpush2.msra.mxu0 0.0
        %514 = vmatprep.subr.mxu0 0.0
        %515 = vmatpush2.msra.mxu0 0.0
        %516 = vmatprep.subr.mxu0 0.0
        %517 = vmatpush2.msra.mxu0 0.0
        %518 = vmatprep.subr.mxu0 0.0
        %519 = vmatpush2.msra.mxu0 0.0
        %520 = vmatprep.subr.mxu0 0.0
        %521 = vmatpush2.msra.mxu0 0.0
        %522 = vmatprep.subr.mxu0 0.0
        %523 = vmatpush2.msra.mxu0 0.0
        %524 = vmatprep.subr.mxu0 0.0
        %525 = vmatpush2.msra.mxu0 0.0
        %526 = vmatprep.subr.mxu0 0.0
        %527 = vmatpush2.msra.mxu0 0.0
        %528 = vmatprep.subr.mxu0 0.0
        %529 = vmatpush2.msra.mxu0 0.0
        %530 = vmatprep.subr.mxu0 0.0
        %531 = vmatpush2.msra.mxu0 0.0
        %532 = vmatprep.subr.mxu0 0.0
        %533 = vmatpush2.msra.mxu0 0.0
        %534 = vmatprep.subr.mxu0 0.0
        %535 = vmatpush2.msra.mxu0 0.0
        %536 = vmatprep.subr.mxu0 0.0
        %537 = vmatpush2.msra.mxu0 0.0
        %538 = vmatprep.subr.mxu0 0.0
        %539 = vmatpush2.msra.mxu0 0.0
        %540 = vmatprep.subr.mxu0 0.0
        %541 = vmatpush2.msra.mxu0 0.0
        %542 = vmatprep.mubr.f32.mxu0 0.0
        %v543 = vand.u32 %v304, 4294901760
        %544 = vmatmul.mubr.f32.gmra.mxu0 %v543
        %v545 = vpop.f32.mrf.mxu0
        %v546 = vadd.f32 %v400, %v545
        %v547 = vpop.f32.mrf.mxu0
        %548 = vmatprep.mubr.f32.mxu0 0.0
        %v549 = vand.u32 %v307, 4294901760
        %550 = vmatmul.mubr.f32.gmra.mxu0 %v549
        %v551 = vpop.f32.mrf.mxu0
        %v552 = vadd.f32 %v410, %v551
        %v553 = vpop.f32.mrf.mxu0
        %554 = vmatprep.mubr.f32.mxu0 0.0
        %v555 = vand.u32 %v310, 4294901760
        %556 = vmatmul.mubr.f32.gmra.mxu0 %v555
        %v557 = vpop.f32.mrf.mxu0
        %v558 = vadd.f32 %v420, %v557
        %v559 = vpop.f32.mrf.mxu0
        %560 = vmatprep.mubr.f32.mxu0 0.0
        %v561 = vand.u32 %v313, 4294901760
        %562 = vmatmul.mubr.f32.gmra.mxu0 %v561
        %v563 = vpop.f32.mrf.mxu0
        %v564 = vadd.f32 %v430, %v563
        %v565 = vpop.f32.mrf.mxu0
        %566 = vmatprep.mubr.f32.mxu0 0.0
        %v567 = vand.u32 %v316, 4294901760
        %568 = vmatmul.mubr.f32.gmra.mxu0 %v567
        %v569 = vpop.f32.mrf.mxu0
        %v570 = vadd.f32 %v440, %v569
        %v571 = vpop.f32.mrf.mxu0
        %572 = vmatprep.mubr.f32.mxu0 0.0
        %v573 = vand.u32 %v319, 4294901760
        %574 = vmatmul.mubr.f32.gmra.mxu0 %v573
        %v575 = vpop.f32.mrf.mxu0
        %v576 = vadd.f32 %v450, %v575
        %v577 = vpop.f32.mrf.mxu0
        %578 = vmatprep.mubr.f32.mxu0 0.0
        %v579 = vand.u32 %v322, 4294901760
        %580 = vmatmul.mubr.f32.gmra.mxu0 %v579
        %v581 = vpop.f32.mrf.mxu0
        %v582 = vadd.f32 %v460, %v581
        %v583 = vpop.f32.mrf.mxu0
        %584 = vmatprep.mubr.f32.mxu0 0.0
        %v585 = vand.u32 %v325, 4294901760
        %586 = vmatmul.mubr.f32.gmra.mxu0 %v585
        %v587 = vpop.f32.mrf.mxu0
        %v588 = vadd.f32 %v470, %v587
        %v589 = vpop.f32.mrf.mxu0
        %590 = vdwg.mxu0
        %591 = vmatprep.subr.mxu0 0.0
        %592 = vmatpush1.msra.mxu0 0.0
        %593 = vmatprep.subr.mxu0 0.0
        %594 = vmatpush1.msra.mxu0 0.0
        %595 = vmatprep.subr.mxu0 0.0
        %596 = vmatpush1.msra.mxu0 0.0
        %597 = vmatprep.subr.mxu0 0.0
        %598 = vmatpush1.msra.mxu0 0.0
        %599 = vmatprep.subr.mxu0 0.0
        %600 = vmatpush1.msra.mxu0 0.0
        %601 = vmatprep.subr.mxu0 0.0
        %602 = vmatpush1.msra.mxu0 0.0
        %603 = vmatprep.subr.mxu0 0.0
        %604 = vmatpush1.msra.mxu0 0.0
        %605 = vmatprep.subr.mxu0 0.0
        %606 = vmatpush1.msra.mxu0 0.0
        %607 = vmatprep.subr.mxu0 0.0
        %608 = vmatpush1.msra.mxu0 0.0
        %609 = vmatprep.subr.mxu0 0.0
        %610 = vmatpush1.msra.mxu0 0.0
        %611 = vmatprep.subr.mxu0 0.0
        %612 = vmatpush1.msra.mxu0 0.0
        %613 = vmatprep.subr.mxu0 0.0
        %614 = vmatpush1.msra.mxu0 0.0
        %615 = vmatprep.subr.mxu0 0.0
        %616 = vmatpush1.msra.mxu0 0.0
        %617 = vmatprep.subr.mxu0 0.0
        %618 = vmatpush1.msra.mxu0 0.0
        %619 = vmatprep.subr.mxu0 0.0
        %620 = vmatpush1.msra.mxu0 0.0
        %621 = vmatprep.subr.mxu0 0.0
        %v622 = vand.u32 %v301, 4294901760
        %v623 = vsub.f32 %v301, %v622
        %624 = vmatpush1.msra.mxu0 %v623
        %625 = vmatprep.subr.mxu0 0.0
        %626 = vmatpush2.msra.mxu0 0.0
        %627 = vmatprep.subr.mxu0 0.0
        %628 = vmatpush2.msra.mxu0 0.0
        %629 = vmatprep.subr.mxu0 0.0
        %630 = vmatpush2.msra.mxu0 0.0
        %631 = vmatprep.subr.mxu0 0.0
        %632 = vmatpush2.msra.mxu0 0.0
        %633 = vmatprep.subr.mxu0 0.0
        %634 = vmatpush2.msra.mxu0 0.0
        %635 = vmatprep.subr.mxu0 0.0
        %636 = vmatpush2.msra.mxu0 0.0
        %637 = vmatprep.subr.mxu0 0.0
        %638 = vmatpush2.msra.mxu0 0.0
        %639 = vmatprep.subr.mxu0 0.0
        %640 = vmatpush2.msra.mxu0 0.0
        %641 = vmatprep.subr.mxu0 0.0
        %642 = vmatpush2.msra.mxu0 0.0
        %643 = vmatprep.subr.mxu0 0.0
        %644 = vmatpush2.msra.mxu0 0.0
        %645 = vmatprep.subr.mxu0 0.0
        %646 = vmatpush2.msra.mxu0 0.0
        %647 = vmatprep.subr.mxu0 0.0
        %648 = vmatpush2.msra.mxu0 0.0
        %649 = vmatprep.subr.mxu0 0.0
        %650 = vmatpush2.msra.mxu0 0.0
        %651 = vmatprep.subr.mxu0 0.0
        %652 = vmatpush2.msra.mxu0 0.0
        %653 = vmatprep.subr.mxu0 0.0
        %654 = vmatpush2.msra.mxu0 0.0
        %655 = vmatprep.subr.mxu0 0.0
        %656 = vmatpush2.msra.mxu0 0.0
        %657 = vmatprep.mubr.f32.mxu0 0.0
        %v658 = vand.u32 %v304, 4294901760
        %v659 = vsub.f32 %v304, %v658
        %660 = vmatmul.mubr.f32.gmra.mxu0 %v659
        %v661 = vpop.f32.mrf.mxu0
        %v662 = vadd.f32 %v546, %v661
        %v663 = vpop.f32.mrf.mxu0
        %664 = vmatprep.mubr.f32.mxu0 0.0
        %v665 = vand.u32 %v307, 4294901760
        %v666 = vsub.f32 %v307, %v665
        %667 = vmatmul.mubr.f32.gmra.mxu0 %v666
        %v668 = vpop.f32.mrf.mxu0
        %v669 = vadd.f32 %v552, %v668
        %v670 = vpop.f32.mrf.mxu0
        %671 = vmatprep.mubr.f32.mxu0 0.0
        %v672 = vand.u32 %v310, 4294901760
        %v673 = vsub.f32 %v310, %v672
        %674 = vmatmul.mubr.f32.gmra.mxu0 %v673
        %v675 = vpop.f32.mrf.mxu0
        %v676 = vadd.f32 %v558, %v675
        %v677 = vpop.f32.mrf.mxu0
        %678 = vmatprep.mubr.f32.mxu0 0.0
        %v679 = vand.u32 %v313, 4294901760
        %v680 = vsub.f32 %v313, %v679
        %681 = vmatmul.mubr.f32.gmra.mxu0 %v680
        %v682 = vpop.f32.mrf.mxu0
        %v683 = vadd.f32 %v564, %v682
        %v684 = vpop.f32.mrf.mxu0
        %685 = vmatprep.mubr.f32.mxu0 0.0
        %v686 = vand.u32 %v316, 4294901760
        %v687 = vsub.f32 %v316, %v686
        %688 = vmatmul.mubr.f32.gmra.mxu0 %v687
        %v689 = vpop.f32.mrf.mxu0
        %v690 = vadd.f32 %v570, %v689
        %v691 = vpop.f32.mrf.mxu0
        %692 = vmatprep.mubr.f32.mxu0 0.0
        %v693 = vand.u32 %v319, 4294901760
        %v694 = vsub.f32 %v319, %v693
        %695 = vmatmul.mubr.f32.gmra.mxu0 %v694
        %v696 = vpop.f32.mrf.mxu0
        %v697 = vadd.f32 %v576, %v696
        %v698 = vpop.f32.mrf.mxu0
        %699 = vmatprep.mubr.f32.mxu0 0.0
        %v700 = vand.u32 %v322, 4294901760
        %v701 = vsub.f32 %v322, %v700
        %702 = vmatmul.mubr.f32.gmra.mxu0 %v701
        %v703 = vpop.f32.mrf.mxu0
        %v704 = vadd.f32 %v582, %v703
        %v705 = vpop.f32.mrf.mxu0
        %706 = vmatprep.mubr.f32.mxu0 0.0
        %v707 = vand.u32 %v325, 4294901760
        %v708 = vsub.f32 %v325, %v707
        %709 = vmatmul.mubr.f32.gmra.mxu0 %v708
        %v710 = vpop.f32.mrf.mxu0
        %v711 = vadd.f32 %v588, %v710
        %v712 = vpop.f32.mrf.mxu0
        %713 = vdwg.mxu0
        %714 = vmatprep.subr.mxu0 0.0
        %715 = vmatpush1.msra.mxu0 0.0
        %716 = vmatprep.subr.mxu0 0.0
        %717 = vmatpush1.msra.mxu0 0.0
        %718 = vmatprep.subr.mxu0 0.0
        %719 = vmatpush1.msra.mxu0 0.0
        %720 = vmatprep.subr.mxu0 0.0
        %721 = vmatpush1.msra.mxu0 0.0
        %722 = vmatprep.subr.mxu0 0.0
        %723 = vmatpush1.msra.mxu0 0.0
        %724 = vmatprep.subr.mxu0 0.0
        %725 = vmatpush1.msra.mxu0 0.0
        %726 = vmatprep.subr.mxu0 0.0
        %727 = vmatpush1.msra.mxu0 0.0
        %728 = vmatprep.subr.mxu0 0.0
        %729 = vmatpush1.msra.mxu0 0.0
        %730 = vmatprep.subr.mxu0 0.0
        %731 = vmatpush1.msra.mxu0 0.0
        %732 = vmatprep.subr.mxu0 0.0
        %733 = vmatpush1.msra.mxu0 0.0
        %734 = vmatprep.subr.mxu0 0.0
        %735 = vmatpush1.msra.mxu0 0.0
        %736 = vmatprep.subr.mxu0 0.0
        %737 = vmatpush1.msra.mxu0 0.0
        %738 = vmatprep.subr.mxu0 0.0
        %739 = vmatpush1.msra.mxu0 0.0
        %740 = vmatprep.subr.mxu0 0.0
        %741 = vmatpush1.msra.mxu0 0.0
        %742 = vmatprep.subr.mxu0 0.0
        %743 = vmatpush1.msra.mxu0 0.0
        %744 = vmatprep.subr.mxu0 0.0
        %v745 = vand.u32 %v301, 4294901760
        %746 = vmatpush1.msra.mxu0 %v745
        %747 = vmatprep.subr.mxu0 0.0
        %748 = vmatpush2.msra.mxu0 0.0
        %749 = vmatprep.subr.mxu0 0.0
        %750 = vmatpush2.msra.mxu0 0.0
        %751 = vmatprep.subr.mxu0 0.0
        %752 = vmatpush2.msra.mxu0 0.0
        %753 = vmatprep.subr.mxu0 0.0
        %754 = vmatpush2.msra.mxu0 0.0
        %755 = vmatprep.subr.mxu0 0.0
        %756 = vmatpush2.msra.mxu0 0.0
        %757 = vmatprep.subr.mxu0 0.0
        %758 = vmatpush2.msra.mxu0 0.0
        %759 = vmatprep.subr.mxu0 0.0
        %760 = vmatpush2.msra.mxu0 0.0
        %761 = vmatprep.subr.mxu0 0.0
        %762 = vmatpush2.msra.mxu0 0.0
        %763 = vmatprep.subr.mxu0 0.0
        %764 = vmatpush2.msra.mxu0 0.0
        %765 = vmatprep.subr.mxu0 0.0
        %766 = vmatpush2.msra.mxu0 0.0
        %767 = vmatprep.subr.mxu0 0.0
        %768 = vmatpush2.msra.mxu0 0.0
        %769 = vmatprep.subr.mxu0 0.0
        %770 = vmatpush2.msra.mxu0 0.0
        %771 = vmatprep.subr.mxu0 0.0
        %772 = vmatpush2.msra.mxu0 0.0
        %773 = vmatprep.subr.mxu0 0.0
        %774 = vmatpush2.msra.mxu0 0.0
        %775 = vmatprep.subr.mxu0 0.0
        %776 = vmatpush2.msra.mxu0 0.0
        %777 = vmatprep.subr.mxu0 0.0
        %778 = vmatpush2.msra.mxu0 0.0
        %779 = vmatprep.mubr.f32.mxu0 0.0
        %v780 = vand.u32 %v304, 4294901760
        %v781 = vsub.f32 %v304, %v780
        %v782 = vand.u32 %v781, 4294901760
        %783 = vmatmul.mubr.f32.gmra.mxu0 %v782
        %v784 = vpop.f32.mrf.mxu0
        %v785 = vadd.f32 %v662, %v784
        %v786 = vpop.f32.mrf.mxu0
        %787 = vmatprep.mubr.f32.mxu0 0.0
        %v788 = vand.u32 %v307, 4294901760
        %v789 = vsub.f32 %v307, %v788
        %v790 = vand.u32 %v789, 4294901760
        %791 = vmatmul.mubr.f32.gmra.mxu0 %v790
        %v792 = vpop.f32.mrf.mxu0
        %v793 = vadd.f32 %v669, %v792
        %v794 = vpop.f32.mrf.mxu0
        %795 = vmatprep.mubr.f32.mxu0 0.0
        %v796 = vand.u32 %v310, 4294901760
        %v797 = vsub.f32 %v310, %v796
        %v798 = vand.u32 %v797, 4294901760
        %799 = vmatmul.mubr.f32.gmra.mxu0 %v798
        %v800 = vpop.f32.mrf.mxu0
        %v801 = vadd.f32 %v676, %v800
        %v802 = vpop.f32.mrf.mxu0
        %803 = vmatprep.mubr.f32.mxu0 0.0
        %v804 = vand.u32 %v313, 4294901760
        %v805 = vsub.f32 %v313, %v804
        %v806 = vand.u32 %v805, 4294901760
        %807 = vmatmul.mubr.f32.gmra.mxu0 %v806
        %v808 = vpop.f32.mrf.mxu0
        %v809 = vadd.f32 %v683, %v808
        %v810 = vpop.f32.mrf.mxu0
        %811 = vmatprep.mubr.f32.mxu0 0.0
        %v812 = vand.u32 %v316, 4294901760
        %v813 = vsub.f32 %v316, %v812
        %v814 = vand.u32 %v813, 4294901760
        %815 = vmatmul.mubr.f32.gmra.mxu0 %v814
        %v816 = vpop.f32.mrf.mxu0
        %v817 = vadd.f32 %v690, %v816
        %v818 = vpop.f32.mrf.mxu0
        %819 = vmatprep.mubr.f32.mxu0 0.0
        %v820 = vand.u32 %v319, 4294901760
        %v821 = vsub.f32 %v319, %v820
        %v822 = vand.u32 %v821, 4294901760
        %823 = vmatmul.mubr.f32.gmra.mxu0 %v822
        %v824 = vpop.f32.mrf.mxu0
        %v825 = vadd.f32 %v697, %v824
        %v826 = vpop.f32.mrf.mxu0
        %827 = vmatprep.mubr.f32.mxu0 0.0
        %v828 = vand.u32 %v322, 4294901760
        %v829 = vsub.f32 %v322, %v828
        %v830 = vand.u32 %v829, 4294901760
        %831 = vmatmul.mubr.f32.gmra.mxu0 %v830
        %v832 = vpop.f32.mrf.mxu0
        %v833 = vadd.f32 %v704, %v832
        %v834 = vpop.f32.mrf.mxu0
        %835 = vmatprep.mubr.f32.mxu0 0.0
        %v836 = vand.u32 %v325, 4294901760
        %v837 = vsub.f32 %v325, %v836
        %v838 = vand.u32 %v837, 4294901760
        %839 = vmatmul.mubr.f32.gmra.mxu0 %v838
        %v840 = vpop.f32.mrf.mxu0
        %v841 = vadd.f32 %v711, %v840
        %v842 = vpop.f32.mrf.mxu0
        %843 = vdwg.mxu0
        %844 = vmatprep.subr.mxu0 0.0
        %845 = vmatpush1.msra.mxu0 0.0
        %846 = vmatprep.subr.mxu0 0.0
        %847 = vmatpush1.msra.mxu0 0.0
        %848 = vmatprep.subr.mxu0 0.0
        %849 = vmatpush1.msra.mxu0 0.0
        %850 = vmatprep.subr.mxu0 0.0
        %851 = vmatpush1.msra.mxu0 0.0
        %852 = vmatprep.subr.mxu0 0.0
        %853 = vmatpush1.msra.mxu0 0.0
        %854 = vmatprep.subr.mxu0 0.0
        %855 = vmatpush1.msra.mxu0 0.0
        %856 = vmatprep.subr.mxu0 0.0
        %857 = vmatpush1.msra.mxu0 0.0
        %858 = vmatprep.subr.mxu0 0.0
        %859 = vmatpush1.msra.mxu0 0.0
        %860 = vmatprep.subr.mxu0 0.0
        %861 = vmatpush1.msra.mxu0 0.0
        %862 = vmatprep.subr.mxu0 0.0
        %863 = vmatpush1.msra.mxu0 0.0
        %864 = vmatprep.subr.mxu0 0.0
        %865 = vmatpush1.msra.mxu0 0.0
        %866 = vmatprep.subr.mxu0 0.0
        %867 = vmatpush1.msra.mxu0 0.0
        %868 = vmatprep.subr.mxu0 0.0
        %869 = vmatpush1.msra.mxu0 0.0
        %870 = vmatprep.subr.mxu0 0.0
        %871 = vmatpush1.msra.mxu0 0.0
        %872 = vmatprep.subr.mxu0 0.0
        %873 = vmatpush1.msra.mxu0 0.0
        %874 = vmatprep.subr.mxu0 0.0
        %v875 = vand.u32 %v301, 4294901760
        %v876 = vsub.f32 %v301, %v875
        %v877 = vand.u32 %v876, 4294901760
        %878 = vmatpush1.msra.mxu0 %v877
        %879 = vmatprep.subr.mxu0 0.0
        %880 = vmatpush2.msra.mxu0 0.0
        %881 = vmatprep.subr.mxu0 0.0
        %882 = vmatpush2.msra.mxu0 0.0
        %883 = vmatprep.subr.mxu0 0.0
        %884 = vmatpush2.msra.mxu0 0.0
        %885 = vmatprep.subr.mxu0 0.0
        %886 = vmatpush2.msra.mxu0 0.0
        %887 = vmatprep.subr.mxu0 0.0
        %888 = vmatpush2.msra.mxu0 0.0
        %889 = vmatprep.subr.mxu0 0.0
        %890 = vmatpush2.msra.mxu0 0.0
        %891 = vmatprep.subr.mxu0 0.0
        %892 = vmatpush2.msra.mxu0 0.0
        %893 = vmatprep.subr.mxu0 0.0
        %894 = vmatpush2.msra.mxu0 0.0
        %895 = vmatprep.subr.mxu0 0.0
        %896 = vmatpush2.msra.mxu0 0.0
        %897 = vmatprep.subr.mxu0 0.0
        %898 = vmatpush2.msra.mxu0 0.0
        %899 = vmatprep.subr.mxu0 0.0
        %900 = vmatpush2.msra.mxu0 0.0
        %901 = vmatprep.subr.mxu0 0.0
        %902 = vmatpush2.msra.mxu0 0.0
        %903 = vmatprep.subr.mxu0 0.0
        %904 = vmatpush2.msra.mxu0 0.0
        %905 = vmatprep.subr.mxu0 0.0
        %906 = vmatpush2.msra.mxu0 0.0
        %907 = vmatprep.subr.mxu0 0.0
        %908 = vmatpush2.msra.mxu0 0.0
        %909 = vmatprep.subr.mxu0 0.0
        %910 = vmatpush2.msra.mxu0 0.0
        %911 = vmatprep.mubr.f32.mxu0 0.0
        %v912 = vand.u32 %v304, 4294901760
        %913 = vmatmul.mubr.f32.gmra.mxu0 %v912
        %v914 = vpop.f32.mrf.mxu0
        %v915 = vadd.f32 %v785, %v914
        %v916 = vpop.f32.mrf.mxu0
        %917 = vmatprep.mubr.f32.mxu0 0.0
        %v918 = vand.u32 %v307, 4294901760
        %919 = vmatmul.mubr.f32.gmra.mxu0 %v918
        %v920 = vpop.f32.mrf.mxu0
        %v921 = vadd.f32 %v793, %v920
        %v922 = vpop.f32.mrf.mxu0
        %923 = vmatprep.mubr.f32.mxu0 0.0
        %v924 = vand.u32 %v310, 4294901760
        %925 = vmatmul.mubr.f32.gmra.mxu0 %v924
        %v926 = vpop.f32.mrf.mxu0
        %v927 = vadd.f32 %v801, %v926
        %v928 = vpop.f32.mrf.mxu0
        %929 = vmatprep.mubr.f32.mxu0 0.0
        %v930 = vand.u32 %v313, 4294901760
        %931 = vmatmul.mubr.f32.gmra.mxu0 %v930
        %v932 = vpop.f32.mrf.mxu0
        %v933 = vadd.f32 %v809, %v932
        %v934 = vpop.f32.mrf.mxu0
        %935 = vmatprep.mubr.f32.mxu0 0.0
        %v936 = vand.u32 %v316, 4294901760
        %937 = vmatmul.mubr.f32.gmra.mxu0 %v936
        %v938 = vpop.f32.mrf.mxu0
        %v939 = vadd.f32 %v817, %v938
        %v940 = vpop.f32.mrf.mxu0
        %941 = vmatprep.mubr.f32.mxu0 0.0
        %v942 = vand.u32 %v319, 4294901760
        %943 = vmatmul.mubr.f32.gmra.mxu0 %v942
        %v944 = vpop.f32.mrf.mxu0
        %v945 = vadd.f32 %v825, %v944
        %v946 = vpop.f32.mrf.mxu0
        %947 = vmatprep.mubr.f32.mxu0 0.0
        %v948 = vand.u32 %v322, 4294901760
        %949 = vmatmul.mubr.f32.gmra.mxu0 %v948
        %v950 = vpop.f32.mrf.mxu0
        %v951 = vadd.f32 %v833, %v950
        %v952 = vpop.f32.mrf.mxu0
        %953 = vmatprep.mubr.f32.mxu0 0.0
        %v954 = vand.u32 %v325, 4294901760
        %955 = vmatmul.mubr.f32.gmra.mxu0 %v954
        %v956 = vpop.f32.mrf.mxu0
        %v957 = vadd.f32 %v841, %v956
        %v958 = vpop.f32.mrf.mxu0
        %959 = vdwg.mxu0
        %960 = vmatprep.subr.mxu0 0.0
        %961 = vmatpush1.msra.mxu0 0.0
        %962 = vmatprep.subr.mxu0 0.0
        %963 = vmatpush1.msra.mxu0 0.0
        %964 = vmatprep.subr.mxu0 0.0
        %965 = vmatpush1.msra.mxu0 0.0
        %966 = vmatprep.subr.mxu0 0.0
        %967 = vmatpush1.msra.mxu0 0.0
        %968 = vmatprep.subr.mxu0 0.0
        %969 = vmatpush1.msra.mxu0 0.0
        %970 = vmatprep.subr.mxu0 0.0
        %971 = vmatpush1.msra.mxu0 0.0
        %972 = vmatprep.subr.mxu0 0.0
        %973 = vmatpush1.msra.mxu0 0.0
        %974 = vmatprep.subr.mxu0 0.0
        %975 = vmatpush1.msra.mxu0 0.0
        %976 = vmatprep.subr.mxu0 0.0
        %977 = vmatpush1.msra.mxu0 0.0
        %978 = vmatprep.subr.mxu0 0.0
        %979 = vmatpush1.msra.mxu0 0.0
        %980 = vmatprep.subr.mxu0 0.0
        %981 = vmatpush1.msra.mxu0 0.0
        %982 = vmatprep.subr.mxu0 0.0
        %983 = vmatpush1.msra.mxu0 0.0
        %984 = vmatprep.subr.mxu0 0.0
        %985 = vmatpush1.msra.mxu0 0.0
        %986 = vmatprep.subr.mxu0 0.0
        %987 = vmatpush1.msra.mxu0 0.0
        %988 = vmatprep.subr.mxu0 0.0
        %989 = vmatpush1.msra.mxu0 0.0
        %990 = vmatprep.subr.mxu0 0.0
        %v991 = vand.u32 %v301, 4294901760
        %992 = vmatpush1.msra.mxu0 %v991
        %993 = vmatprep.subr.mxu0 0.0
        %994 = vmatpush2.msra.mxu0 0.0
        %995 = vmatprep.subr.mxu0 0.0
        %996 = vmatpush2.msra.mxu0 0.0
        %997 = vmatprep.subr.mxu0 0.0
        %998 = vmatpush2.msra.mxu0 0.0
        %999 = vmatprep.subr.mxu0 0.0
        %1000 = vmatpush2.msra.mxu0 0.0
        %1001 = vmatprep.subr.mxu0 0.0
        %1002 = vmatpush2.msra.mxu0 0.0
        %1003 = vmatprep.subr.mxu0 0.0
        %1004 = vmatpush2.msra.mxu0 0.0
        %1005 = vmatprep.subr.mxu0 0.0
        %1006 = vmatpush2.msra.mxu0 0.0
        %1007 = vmatprep.subr.mxu0 0.0
        %1008 = vmatpush2.msra.mxu0 0.0
        %1009 = vmatprep.subr.mxu0 0.0
        %1010 = vmatpush2.msra.mxu0 0.0
        %1011 = vmatprep.subr.mxu0 0.0
        %1012 = vmatpush2.msra.mxu0 0.0
        %1013 = vmatprep.subr.mxu0 0.0
        %1014 = vmatpush2.msra.mxu0 0.0
        %1015 = vmatprep.subr.mxu0 0.0
        %1016 = vmatpush2.msra.mxu0 0.0
        %1017 = vmatprep.subr.mxu0 0.0
        %1018 = vmatpush2.msra.mxu0 0.0
        %1019 = vmatprep.subr.mxu0 0.0
        %1020 = vmatpush2.msra.mxu0 0.0
        %1021 = vmatprep.subr.mxu0 0.0
        %1022 = vmatpush2.msra.mxu0 0.0
        %1023 = vmatprep.subr.mxu0 0.0
        %1024 = vmatpush2.msra.mxu0 0.0
        %1025 = vmatprep.mubr.f32.mxu0 0.0
        %v1026 = vand.u32 %v304, 4294901760
        %1027 = vmatmul.mubr.f32.gmra.mxu0 %v1026
        %v1028 = vpop.f32.mrf.mxu0
        %v1029 = vadd.f32 %v915, %v1028
        %v1030 = vpop.f32.mrf.mxu0
        %1031 = vmatprep.mubr.f32.mxu0 0.0
        %v1032 = vand.u32 %v307, 4294901760
        %1033 = vmatmul.mubr.f32.gmra.mxu0 %v1032
        %v1034 = vpop.f32.mrf.mxu0
        %v1035 = vadd.f32 %v921, %v1034
        %v1036 = vpop.f32.mrf.mxu0
        %1037 = vmatprep.mubr.f32.mxu0 0.0
        %v1038 = vand.u32 %v310, 4294901760
        %1039 = vmatmul.mubr.f32.gmra.mxu0 %v1038
        %v1040 = vpop.f32.mrf.mxu0
        %v1041 = vadd.f32 %v927, %v1040
        %v1042 = vpop.f32.mrf.mxu0
        %1043 = vmatprep.mubr.f32.mxu0 0.0
        %v1044 = vand.u32 %v313, 4294901760
        %1045 = vmatmul.mubr.f32.gmra.mxu0 %v1044
        %v1046 = vpop.f32.mrf.mxu0
        %v1047 = vadd.f32 %v933, %v1046
        %v1048 = vpop.f32.mrf.mxu0
        %1049 = vmatprep.mubr.f32.mxu0 0.0
        %v1050 = vand.u32 %v316, 4294901760
        %1051 = vmatmul.mubr.f32.gmra.mxu0 %v1050
        %v1052 = vpop.f32.mrf.mxu0
        %v1053 = vadd.f32 %v939, %v1052
        %v1054 = vpop.f32.mrf.mxu0
        %1055 = vmatprep.mubr.f32.mxu0 0.0
        %v1056 = vand.u32 %v319, 4294901760
        %1057 = vmatmul.mubr.f32.gmra.mxu0 %v1056
        %v1058 = vpop.f32.mrf.mxu0
        %v1059 = vadd.f32 %v945, %v1058
        %v1060 = vpop.f32.mrf.mxu0
        %1061 = vmatprep.mubr.f32.mxu0 0.0
        %v1062 = vand.u32 %v322, 4294901760
        %1063 = vmatmul.mubr.f32.gmra.mxu0 %v1062
        %v1064 = vpop.f32.mrf.mxu0
        %v1065 = vadd.f32 %v951, %v1064
        %v1066 = vpop.f32.mrf.mxu0
        %1067 = vmatprep.mubr.f32.mxu0 0.0
        %v1068 = vand.u32 %v325, 4294901760
        %1069 = vmatmul.mubr.f32.gmra.mxu0 %v1068
        %v1070 = vpop.f32.mrf.mxu0
        %v1071 = vadd.f32 %v957, %v1070
        %v1072 = vpop.f32.mrf.mxu0
        %1073 = vdwg.mxu0
        %v1074 = vld [vmem:[%s2] sm:$0xff]
        %1075 = vmatprep.subr.mxu0 0.0
        %1076 = vmatpush1.msra.mxu0 0.0
        %1077 = vmatprep.subr.mxu0 0.0
        %1078 = vmatpush1.msra.mxu0 0.0
        %1079 = vmatprep.subr.mxu0 0.0
        %1080 = vmatpush1.msra.mxu0 0.0
        %1081 = vmatprep.subr.mxu0 0.0
        %1082 = vmatpush1.msra.mxu0 0.0
        %1083 = vmatprep.subr.mxu0 0.0
        %1084 = vmatpush1.msra.mxu0 0.0
        %1085 = vmatprep.subr.mxu0 0.0
        %1086 = vmatpush1.msra.mxu0 0.0
        %1087 = vmatprep.subr.mxu0 0.0
        %1088 = vmatpush1.msra.mxu0 0.0
        %1089 = vmatprep.subr.mxu0 0.0
        %1090 = vmatpush1.msra.mxu0 0.0
        %1091 = vmatprep.subr.mxu0 0.0
        %1092 = vmatpush1.msra.mxu0 0.0
        %1093 = vmatprep.subr.mxu0 0.0
        %1094 = vmatpush1.msra.mxu0 0.0
        %1095 = vmatprep.subr.mxu0 0.0
        %1096 = vmatpush1.msra.mxu0 0.0
        %1097 = vmatprep.subr.mxu0 0.0
        %1098 = vmatpush1.msra.mxu0 0.0
        %1099 = vmatprep.subr.mxu0 0.0
        %1100 = vmatpush1.msra.mxu0 0.0
        %1101 = vmatprep.subr.mxu0 0.0
        %1102 = vmatpush1.msra.mxu0 0.0
        %1103 = vmatprep.subr.mxu0 0.0
        %1104 = vmatpush1.msra.mxu0 0.0
        %1105 = vmatprep.subr.mxu0 0.0
        %v1106 = vand.u32 %v1074, 4294901760
        %1107 = vmatpush1.msra.mxu0 %v1106
        %1108 = vmatprep.subr.mxu0 0.0
        %1109 = vmatpush2.msra.mxu0 0.0
        %1110 = vmatprep.subr.mxu0 0.0
        %1111 = vmatpush2.msra.mxu0 0.0
        %1112 = vmatprep.subr.mxu0 0.0
        %1113 = vmatpush2.msra.mxu0 0.0
        %1114 = vmatprep.subr.mxu0 0.0
        %1115 = vmatpush2.msra.mxu0 0.0
        %1116 = vmatprep.subr.mxu0 0.0
        %1117 = vmatpush2.msra.mxu0 0.0
        %1118 = vmatprep.subr.mxu0 0.0
        %1119 = vmatpush2.msra.mxu0 0.0
        %1120 = vmatprep.subr.mxu0 0.0
        %1121 = vmatpush2.msra.mxu0 0.0
        %1122 = vmatprep.subr.mxu0 0.0
        %1123 = vmatpush2.msra.mxu0 0.0
        %1124 = vmatprep.subr.mxu0 0.0
        %1125 = vmatpush2.msra.mxu0 0.0
        %1126 = vmatprep.subr.mxu0 0.0
        %1127 = vmatpush2.msra.mxu0 0.0
        %1128 = vmatprep.subr.mxu0 0.0
        %1129 = vmatpush2.msra.mxu0 0.0
        %1130 = vmatprep.subr.mxu0 0.0
        %1131 = vmatpush2.msra.mxu0 0.0
        %1132 = vmatprep.subr.mxu0 0.0
        %1133 = vmatpush2.msra.mxu0 0.0
        %1134 = vmatprep.subr.mxu0 0.0
        %1135 = vmatpush2.msra.mxu0 0.0
        %1136 = vmatprep.subr.mxu0 0.0
        %1137 = vmatpush2.msra.mxu0 0.0
        %1138 = vmatprep.subr.mxu0 0.0
        %1139 = vmatpush2.msra.mxu0 0.0
        %1140 = vmatprep.mubr.f32.mxu0 0.0
        %v1141 = vand.u32 %v304, 4294901760
        %v1142 = vsub.f32 %v304, %v1141
        %v1143 = vand.u32 %v1142, 4294901760
        %v1144 = vsub.f32 %v1142, %v1143
        %v1145 = vand.u32 %v1144, 4294901760
        %1146 = vmatmul.mubr.f32.gmra.mxu0 %v1145
        %v1147 = vpop.f32.mrf.mxu0
        %v1148 = vadd.f32 0.0, %v1147
        %v1149 = vpop.f32.mrf.mxu0
        %1150 = vmatprep.mubr.f32.mxu0 0.0
        %v1151 = vand.u32 %v307, 4294901760
        %v1152 = vsub.f32 %v307, %v1151
        %v1153 = vand.u32 %v1152, 4294901760
        %v1154 = vsub.f32 %v1152, %v1153
        %v1155 = vand.u32 %v1154, 4294901760
        %1156 = vmatmul.mubr.f32.gmra.mxu0 %v1155
        %v1157 = vpop.f32.mrf.mxu0
        %v1158 = vadd.f32 0.0, %v1157
        %v1159 = vpop.f32.mrf.mxu0
        %1160 = vmatprep.mubr.f32.mxu0 0.0
        %v1161 = vand.u32 %v310, 4294901760
        %v1162 = vsub.f32 %v310, %v1161
        %v1163 = vand.u32 %v1162, 4294901760
        %v1164 = vsub.f32 %v1162, %v1163
        %v1165 = vand.u32 %v1164, 4294901760
        %1166 = vmatmul.mubr.f32.gmra.mxu0 %v1165
        %v1167 = vpop.f32.mrf.mxu0
        %v1168 = vadd.f32 0.0, %v1167
        %v1169 = vpop.f32.mrf.mxu0
        %1170 = vmatprep.mubr.f32.mxu0 0.0
        %v1171 = vand.u32 %v313, 4294901760
        %v1172 = vsub.f32 %v313, %v1171
        %v1173 = vand.u32 %v1172, 4294901760
        %v1174 = vsub.f32 %v1172, %v1173
        %v1175 = vand.u32 %v1174, 4294901760
        %1176 = vmatmul.mubr.f32.gmra.mxu0 %v1175
        %v1177 = vpop.f32.mrf.mxu0
        %v1178 = vadd.f32 0.0, %v1177
        %v1179 = vpop.f32.mrf.mxu0
        %1180 = vmatprep.mubr.f32.mxu0 0.0
        %v1181 = vand.u32 %v316, 4294901760
        %v1182 = vsub.f32 %v316, %v1181
        %v1183 = vand.u32 %v1182, 4294901760
        %v1184 = vsub.f32 %v1182, %v1183
        %v1185 = vand.u32 %v1184, 4294901760
        %1186 = vmatmul.mubr.f32.gmra.mxu0 %v1185
        %v1187 = vpop.f32.mrf.mxu0
        %v1188 = vadd.f32 0.0, %v1187
        %v1189 = vpop.f32.mrf.mxu0
        %1190 = vmatprep.mubr.f32.mxu0 0.0
        %v1191 = vand.u32 %v319, 4294901760
        %v1192 = vsub.f32 %v319, %v1191
        %v1193 = vand.u32 %v1192, 4294901760
        %v1194 = vsub.f32 %v1192, %v1193
        %v1195 = vand.u32 %v1194, 4294901760
        %1196 = vmatmul.mubr.f32.gmra.mxu0 %v1195
        %v1197 = vpop.f32.mrf.mxu0
        %v1198 = vadd.f32 0.0, %v1197
        %v1199 = vpop.f32.mrf.mxu0
        %1200 = vmatprep.mubr.f32.mxu0 0.0
        %v1201 = vand.u32 %v322, 4294901760
        %v1202 = vsub.f32 %v322, %v1201
        %v1203 = vand.u32 %v1202, 4294901760
        %v1204 = vsub.f32 %v1202, %v1203
        %v1205 = vand.u32 %v1204, 4294901760
        %1206 = vmatmul.mubr.f32.gmra.mxu0 %v1205
        %v1207 = vpop.f32.mrf.mxu0
        %v1208 = vadd.f32 0.0, %v1207
        %v1209 = vpop.f32.mrf.mxu0
        %1210 = vmatprep.mubr.f32.mxu0 0.0
        %v1211 = vand.u32 %v325, 4294901760
        %v1212 = vsub.f32 %v325, %v1211
        %v1213 = vand.u32 %v1212, 4294901760
        %v1214 = vsub.f32 %v1212, %v1213
        %v1215 = vand.u32 %v1214, 4294901760
        %1216 = vmatmul.mubr.f32.gmra.mxu0 %v1215
        %v1217 = vpop.f32.mrf.mxu0
        %v1218 = vadd.f32 0.0, %v1217
        %v1219 = vpop.f32.mrf.mxu0
        %1220 = vdwg.mxu0
        %1221 = vmatprep.subr.mxu0 0.0
        %1222 = vmatpush1.msra.mxu0 0.0
        %1223 = vmatprep.subr.mxu0 0.0
        %1224 = vmatpush1.msra.mxu0 0.0
        %1225 = vmatprep.subr.mxu0 0.0
        %1226 = vmatpush1.msra.mxu0 0.0
        %1227 = vmatprep.subr.mxu0 0.0
        %1228 = vmatpush1.msra.mxu0 0.0
        %1229 = vmatprep.subr.mxu0 0.0
        %1230 = vmatpush1.msra.mxu0 0.0
        %1231 = vmatprep.subr.mxu0 0.0
        %1232 = vmatpush1.msra.mxu0 0.0
        %1233 = vmatprep.subr.mxu0 0.0
        %1234 = vmatpush1.msra.mxu0 0.0
        %1235 = vmatprep.subr.mxu0 0.0
        %1236 = vmatpush1.msra.mxu0 0.0
        %1237 = vmatprep.subr.mxu0 0.0
        %1238 = vmatpush1.msra.mxu0 0.0
        %1239 = vmatprep.subr.mxu0 0.0
        %1240 = vmatpush1.msra.mxu0 0.0
        %1241 = vmatprep.subr.mxu0 0.0
        %1242 = vmatpush1.msra.mxu0 0.0
        %1243 = vmatprep.subr.mxu0 0.0
        %1244 = vmatpush1.msra.mxu0 0.0
        %1245 = vmatprep.subr.mxu0 0.0
        %1246 = vmatpush1.msra.mxu0 0.0
        %1247 = vmatprep.subr.mxu0 0.0
        %1248 = vmatpush1.msra.mxu0 0.0
        %1249 = vmatprep.subr.mxu0 0.0
        %1250 = vmatpush1.msra.mxu0 0.0
        %1251 = vmatprep.subr.mxu0 0.0
        %v1252 = vand.u32 %v1074, 4294901760
        %v1253 = vsub.f32 %v1074, %v1252
        %v1254 = vand.u32 %v1253, 4294901760
        %v1255 = vsub.f32 %v1253, %v1254
        %v1256 = vand.u32 %v1255, 4294901760
        %1257 = vmatpush1.msra.mxu0 %v1256
        %1258 = vmatprep.subr.mxu0 0.0
        %1259 = vmatpush2.msra.mxu0 0.0
        %1260 = vmatprep.subr.mxu0 0.0
        %1261 = vmatpush2.msra.mxu0 0.0
        %1262 = vmatprep.subr.mxu0 0.0
        %1263 = vmatpush2.msra.mxu0 0.0
        %1264 = vmatprep.subr.mxu0 0.0
        %1265 = vmatpush2.msra.mxu0 0.0
        %1266 = vmatprep.subr.mxu0 0.0
        %1267 = vmatpush2.msra.mxu0 0.0
        %1268 = vmatprep.subr.mxu0 0.0
        %1269 = vmatpush2.msra.mxu0 0.0
        %1270 = vmatprep.subr.mxu0 0.0
        %1271 = vmatpush2.msra.mxu0 0.0
        %1272 = vmatprep.subr.mxu0 0.0
        %1273 = vmatpush2.msra.mxu0 0.0
        %1274 = vmatprep.subr.mxu0 0.0
        %1275 = vmatpush2.msra.mxu0 0.0
        %1276 = vmatprep.subr.mxu0 0.0
        %1277 = vmatpush2.msra.mxu0 0.0
        %1278 = vmatprep.subr.mxu0 0.0
        %1279 = vmatpush2.msra.mxu0 0.0
        %1280 = vmatprep.subr.mxu0 0.0
        %1281 = vmatpush2.msra.mxu0 0.0
        %1282 = vmatprep.subr.mxu0 0.0
        %1283 = vmatpush2.msra.mxu0 0.0
        %1284 = vmatprep.subr.mxu0 0.0
        %1285 = vmatpush2.msra.mxu0 0.0
        %1286 = vmatprep.subr.mxu0 0.0
        %1287 = vmatpush2.msra.mxu0 0.0
        %1288 = vmatprep.subr.mxu0 0.0
        %1289 = vmatpush2.msra.mxu0 0.0
        %1290 = vmatprep.mubr.f32.mxu0 0.0
        %v1291 = vand.u32 %v304, 4294901760
        %1292 = vmatmul.mubr.f32.gmra.mxu0 %v1291
        %v1293 = vpop.f32.mrf.mxu0
        %v1294 = vadd.f32 %v1148, %v1293
        %v1295 = vpop.f32.mrf.mxu0
        %1296 = vmatprep.mubr.f32.mxu0 0.0
        %v1297 = vand.u32 %v307, 4294901760
        %1298 = vmatmul.mubr.f32.gmra.mxu0 %v1297
        %v1299 = vpop.f32.mrf.mxu0
        %v1300 = vadd.f32 %v1158, %v1299
        %v1301 = vpop.f32.mrf.mxu0
        %1302 = vmatprep.mubr.f32.mxu0 0.0
        %v1303 = vand.u32 %v310, 4294901760
        %1304 = vmatmul.mubr.f32.gmra.mxu0 %v1303
        %v1305 = vpop.f32.mrf.mxu0
        %v1306 = vadd.f32 %v1168, %v1305
        %v1307 = vpop.f32.mrf.mxu0
        %1308 = vmatprep.mubr.f32.mxu0 0.0
        %v1309 = vand.u32 %v313, 4294901760
        %1310 = vmatmul.mubr.f32.gmra.mxu0 %v1309
        %v1311 = vpop.f32.mrf.mxu0
        %v1312 = vadd.f32 %v1178, %v1311
        %v1313 = vpop.f32.mrf.mxu0
        %1314 = vmatprep.mubr.f32.mxu0 0.0
        %v1315 = vand.u32 %v316, 4294901760
        %1316 = vmatmul.mubr.f32.gmra.mxu0 %v1315
        %v1317 = vpop.f32.mrf.mxu0
        %v1318 = vadd.f32 %v1188, %v1317
        %v1319 = vpop.f32.mrf.mxu0
        %1320 = vmatprep.mubr.f32.mxu0 0.0
        %v1321 = vand.u32 %v319, 4294901760
        %1322 = vmatmul.mubr.f32.gmra.mxu0 %v1321
        %v1323 = vpop.f32.mrf.mxu0
        %v1324 = vadd.f32 %v1198, %v1323
        %v1325 = vpop.f32.mrf.mxu0
        %1326 = vmatprep.mubr.f32.mxu0 0.0
        %v1327 = vand.u32 %v322, 4294901760
        %1328 = vmatmul.mubr.f32.gmra.mxu0 %v1327
        %v1329 = vpop.f32.mrf.mxu0
        %v1330 = vadd.f32 %v1208, %v1329
        %v1331 = vpop.f32.mrf.mxu0
        %1332 = vmatprep.mubr.f32.mxu0 0.0
        %v1333 = vand.u32 %v325, 4294901760
        %1334 = vmatmul.mubr.f32.gmra.mxu0 %v1333
        %v1335 = vpop.f32.mrf.mxu0
        %v1336 = vadd.f32 %v1218, %v1335
        %v1337 = vpop.f32.mrf.mxu0
        %1338 = vdwg.mxu0
        %1339 = vmatprep.subr.mxu0 0.0
        %1340 = vmatpush1.msra.mxu0 0.0
        %1341 = vmatprep.subr.mxu0 0.0
        %1342 = vmatpush1.msra.mxu0 0.0
        %1343 = vmatprep.subr.mxu0 0.0
        %1344 = vmatpush1.msra.mxu0 0.0
        %1345 = vmatprep.subr.mxu0 0.0
        %1346 = vmatpush1.msra.mxu0 0.0
        %1347 = vmatprep.subr.mxu0 0.0
        %1348 = vmatpush1.msra.mxu0 0.0
        %1349 = vmatprep.subr.mxu0 0.0
        %1350 = vmatpush1.msra.mxu0 0.0
        %1351 = vmatprep.subr.mxu0 0.0
        %1352 = vmatpush1.msra.mxu0 0.0
        %1353 = vmatprep.subr.mxu0 0.0
        %1354 = vmatpush1.msra.mxu0 0.0
        %1355 = vmatprep.subr.mxu0 0.0
        %1356 = vmatpush1.msra.mxu0 0.0
        %1357 = vmatprep.subr.mxu0 0.0
        %1358 = vmatpush1.msra.mxu0 0.0
        %1359 = vmatprep.subr.mxu0 0.0
        %1360 = vmatpush1.msra.mxu0 0.0
        %1361 = vmatprep.subr.mxu0 0.0
        %1362 = vmatpush1.msra.mxu0 0.0
        %1363 = vmatprep.subr.mxu0 0.0
        %1364 = vmatpush1.msra.mxu0 0.0
        %1365 = vmatprep.subr.mxu0 0.0
        %1366 = vmatpush1.msra.mxu0 0.0
        %1367 = vmatprep.subr.mxu0 0.0
        %1368 = vmatpush1.msra.mxu0 0.0
        %1369 = vmatprep.subr.mxu0 0.0
        %v1370 = vand.u32 %v1074, 4294901760
        %v1371 = vsub.f32 %v1074, %v1370
        %1372 = vmatpush1.msra.mxu0 %v1371
        %1373 = vmatprep.subr.mxu0 0.0
        %1374 = vmatpush2.msra.mxu0 0.0
        %1375 = vmatprep.subr.mxu0 0.0
        %1376 = vmatpush2.msra.mxu0 0.0
        %1377 = vmatprep.subr.mxu0 0.0
        %1378 = vmatpush2.msra.mxu0 0.0
        %1379 = vmatprep.subr.mxu0 0.0
        %1380 = vmatpush2.msra.mxu0 0.0
        %1381 = vmatprep.subr.mxu0 0.0
        %1382 = vmatpush2.msra.mxu0 0.0
        %1383 = vmatprep.subr.mxu0 0.0
        %1384 = vmatpush2.msra.mxu0 0.0
        %1385 = vmatprep.subr.mxu0 0.0
        %1386 = vmatpush2.msra.mxu0 0.0
        %1387 = vmatprep.subr.mxu0 0.0
        %1388 = vmatpush2.msra.mxu0 0.0
        %1389 = vmatprep.subr.mxu0 0.0
        %1390 = vmatpush2.msra.mxu0 0.0
        %1391 = vmatprep.subr.mxu0 0.0
        %1392 = vmatpush2.msra.mxu0 0.0
        %1393 = vmatprep.subr.mxu0 0.0
        %1394 = vmatpush2.msra.mxu0 0.0
        %1395 = vmatprep.subr.mxu0 0.0
        %1396 = vmatpush2.msra.mxu0 0.0
        %1397 = vmatprep.subr.mxu0 0.0
        %1398 = vmatpush2.msra.mxu0 0.0
        %1399 = vmatprep.subr.mxu0 0.0
        %1400 = vmatpush2.msra.mxu0 0.0
        %1401 = vmatprep.subr.mxu0 0.0
        %1402 = vmatpush2.msra.mxu0 0.0
        %1403 = vmatprep.subr.mxu0 0.0
        %1404 = vmatpush2.msra.mxu0 0.0
        %1405 = vmatprep.mubr.f32.mxu0 0.0
        %v1406 = vand.u32 %v304, 4294901760
        %v1407 = vsub.f32 %v304, %v1406
        %1408 = vmatmul.mubr.f32.gmra.mxu0 %v1407
        %v1409 = vpop.f32.mrf.mxu0
        %v1410 = vadd.f32 %v1294, %v1409
        %v1411 = vpop.f32.mrf.mxu0
        %1412 = vmatprep.mubr.f32.mxu0 0.0
        %v1413 = vand.u32 %v307, 4294901760
        %v1414 = vsub.f32 %v307, %v1413
        %1415 = vmatmul.mubr.f32.gmra.mxu0 %v1414
        %v1416 = vpop.f32.mrf.mxu0
        %v1417 = vadd.f32 %v1300, %v1416
        %v1418 = vpop.f32.mrf.mxu0
        %1419 = vmatprep.mubr.f32.mxu0 0.0
        %v1420 = vand.u32 %v310, 4294901760
        %v1421 = vsub.f32 %v310, %v1420
        %1422 = vmatmul.mubr.f32.gmra.mxu0 %v1421
        %v1423 = vpop.f32.mrf.mxu0
        %v1424 = vadd.f32 %v1306, %v1423
        %v1425 = vpop.f32.mrf.mxu0
        %1426 = vmatprep.mubr.f32.mxu0 0.0
        %v1427 = vand.u32 %v313, 4294901760
        %v1428 = vsub.f32 %v313, %v1427
        %1429 = vmatmul.mubr.f32.gmra.mxu0 %v1428
        %v1430 = vpop.f32.mrf.mxu0
        %v1431 = vadd.f32 %v1312, %v1430
        %v1432 = vpop.f32.mrf.mxu0
        %1433 = vmatprep.mubr.f32.mxu0 0.0
        %v1434 = vand.u32 %v316, 4294901760
        %v1435 = vsub.f32 %v316, %v1434
        %1436 = vmatmul.mubr.f32.gmra.mxu0 %v1435
        %v1437 = vpop.f32.mrf.mxu0
        %v1438 = vadd.f32 %v1318, %v1437
        %v1439 = vpop.f32.mrf.mxu0
        %1440 = vmatprep.mubr.f32.mxu0 0.0
        %v1441 = vand.u32 %v319, 4294901760
        %v1442 = vsub.f32 %v319, %v1441
        %1443 = vmatmul.mubr.f32.gmra.mxu0 %v1442
        %v1444 = vpop.f32.mrf.mxu0
        %v1445 = vadd.f32 %v1324, %v1444
        %v1446 = vpop.f32.mrf.mxu0
        %1447 = vmatprep.mubr.f32.mxu0 0.0
        %v1448 = vand.u32 %v322, 4294901760
        %v1449 = vsub.f32 %v322, %v1448
        %1450 = vmatmul.mubr.f32.gmra.mxu0 %v1449
        %v1451 = vpop.f32.mrf.mxu0
        %v1452 = vadd.f32 %v1330, %v1451
        %v1453 = vpop.f32.mrf.mxu0
        %1454 = vmatprep.mubr.f32.mxu0 0.0
        %v1455 = vand.u32 %v325, 4294901760
        %v1456 = vsub.f32 %v325, %v1455
        %1457 = vmatmul.mubr.f32.gmra.mxu0 %v1456
        %v1458 = vpop.f32.mrf.mxu0
        %v1459 = vadd.f32 %v1336, %v1458
        %v1460 = vpop.f32.mrf.mxu0
        %1461 = vdwg.mxu0
        %1462 = vmatprep.subr.mxu0 0.0
        %1463 = vmatpush1.msra.mxu0 0.0
        %1464 = vmatprep.subr.mxu0 0.0
        %1465 = vmatpush1.msra.mxu0 0.0
        %1466 = vmatprep.subr.mxu0 0.0
        %1467 = vmatpush1.msra.mxu0 0.0
        %1468 = vmatprep.subr.mxu0 0.0
        %1469 = vmatpush1.msra.mxu0 0.0
        %1470 = vmatprep.subr.mxu0 0.0
        %1471 = vmatpush1.msra.mxu0 0.0
        %1472 = vmatprep.subr.mxu0 0.0
        %1473 = vmatpush1.msra.mxu0 0.0
        %1474 = vmatprep.subr.mxu0 0.0
        %1475 = vmatpush1.msra.mxu0 0.0
        %1476 = vmatprep.subr.mxu0 0.0
        %1477 = vmatpush1.msra.mxu0 0.0
        %1478 = vmatprep.subr.mxu0 0.0
        %1479 = vmatpush1.msra.mxu0 0.0
        %1480 = vmatprep.subr.mxu0 0.0
        %1481 = vmatpush1.msra.mxu0 0.0
        %1482 = vmatprep.subr.mxu0 0.0
        %1483 = vmatpush1.msra.mxu0 0.0
        %1484 = vmatprep.subr.mxu0 0.0
        %1485 = vmatpush1.msra.mxu0 0.0
        %1486 = vmatprep.subr.mxu0 0.0
        %1487 = vmatpush1.msra.mxu0 0.0
        %1488 = vmatprep.subr.mxu0 0.0
        %1489 = vmatpush1.msra.mxu0 0.0
        %1490 = vmatprep.subr.mxu0 0.0
        %1491 = vmatpush1.msra.mxu0 0.0
        %1492 = vmatprep.subr.mxu0 0.0
        %v1493 = vand.u32 %v1074, 4294901760
        %1494 = vmatpush1.msra.mxu0 %v1493
        %1495 = vmatprep.subr.mxu0 0.0
        %1496 = vmatpush2.msra.mxu0 0.0
        %1497 = vmatprep.subr.mxu0 0.0
        %1498 = vmatpush2.msra.mxu0 0.0
        %1499 = vmatprep.subr.mxu0 0.0
        %1500 = vmatpush2.msra.mxu0 0.0
        %1501 = vmatprep.subr.mxu0 0.0
        %1502 = vmatpush2.msra.mxu0 0.0
        %1503 = vmatprep.subr.mxu0 0.0
        %1504 = vmatpush2.msra.mxu0 0.0
        %1505 = vmatprep.subr.mxu0 0.0
        %1506 = vmatpush2.msra.mxu0 0.0
        %1507 = vmatprep.subr.mxu0 0.0
        %1508 = vmatpush2.msra.mxu0 0.0
        %1509 = vmatprep.subr.mxu0 0.0
        %1510 = vmatpush2.msra.mxu0 0.0
        %1511 = vmatprep.subr.mxu0 0.0
        %1512 = vmatpush2.msra.mxu0 0.0
        %1513 = vmatprep.subr.mxu0 0.0
        %1514 = vmatpush2.msra.mxu0 0.0
        %1515 = vmatprep.subr.mxu0 0.0
        %1516 = vmatpush2.msra.mxu0 0.0
        %1517 = vmatprep.subr.mxu0 0.0
        %1518 = vmatpush2.msra.mxu0 0.0
        %1519 = vmatprep.subr.mxu0 0.0
        %1520 = vmatpush2.msra.mxu0 0.0
        %1521 = vmatprep.subr.mxu0 0.0
        %1522 = vmatpush2.msra.mxu0 0.0
        %1523 = vmatprep.subr.mxu0 0.0
        %1524 = vmatpush2.msra.mxu0 0.0
        %1525 = vmatprep.subr.mxu0 0.0
        %1526 = vmatpush2.msra.mxu0 0.0
        %1527 = vmatprep.mubr.f32.mxu0 0.0
        %v1528 = vand.u32 %v304, 4294901760
        %v1529 = vsub.f32 %v304, %v1528
        %v1530 = vand.u32 %v1529, 4294901760
        %1531 = vmatmul.mubr.f32.gmra.mxu0 %v1530
        %v1532 = vpop.f32.mrf.mxu0
        %v1533 = vadd.f32 %v1410, %v1532
        %v1534 = vpop.f32.mrf.mxu0
        %1535 = vmatprep.mubr.f32.mxu0 0.0
        %v1536 = vand.u32 %v307, 4294901760
        %v1537 = vsub.f32 %v307, %v1536
        %v1538 = vand.u32 %v1537, 4294901760
        %1539 = vmatmul.mubr.f32.gmra.mxu0 %v1538
        %v1540 = vpop.f32.mrf.mxu0
        %v1541 = vadd.f32 %v1417, %v1540
        %v1542 = vpop.f32.mrf.mxu0
        %1543 = vmatprep.mubr.f32.mxu0 0.0
        %v1544 = vand.u32 %v310, 4294901760
        %v1545 = vsub.f32 %v310, %v1544
        %v1546 = vand.u32 %v1545, 4294901760
        %1547 = vmatmul.mubr.f32.gmra.mxu0 %v1546
        %v1548 = vpop.f32.mrf.mxu0
        %v1549 = vadd.f32 %v1424, %v1548
        %v1550 = vpop.f32.mrf.mxu0
        %1551 = vmatprep.mubr.f32.mxu0 0.0
        %v1552 = vand.u32 %v313, 4294901760
        %v1553 = vsub.f32 %v313, %v1552
        %v1554 = vand.u32 %v1553, 4294901760
        %1555 = vmatmul.mubr.f32.gmra.mxu0 %v1554
        %v1556 = vpop.f32.mrf.mxu0
        %v1557 = vadd.f32 %v1431, %v1556
        %v1558 = vpop.f32.mrf.mxu0
        %1559 = vmatprep.mubr.f32.mxu0 0.0
        %v1560 = vand.u32 %v316, 4294901760
        %v1561 = vsub.f32 %v316, %v1560
        %v1562 = vand.u32 %v1561, 4294901760
        %1563 = vmatmul.mubr.f32.gmra.mxu0 %v1562
        %v1564 = vpop.f32.mrf.mxu0
        %v1565 = vadd.f32 %v1438, %v1564
        %v1566 = vpop.f32.mrf.mxu0
        %1567 = vmatprep.mubr.f32.mxu0 0.0
        %v1568 = vand.u32 %v319, 4294901760
        %v1569 = vsub.f32 %v319, %v1568
        %v1570 = vand.u32 %v1569, 4294901760
        %1571 = vmatmul.mubr.f32.gmra.mxu0 %v1570
        %v1572 = vpop.f32.mrf.mxu0
        %v1573 = vadd.f32 %v1445, %v1572
        %v1574 = vpop.f32.mrf.mxu0
        %1575 = vmatprep.mubr.f32.mxu0 0.0
        %v1576 = vand.u32 %v322, 4294901760
        %v1577 = vsub.f32 %v322, %v1576
        %v1578 = vand.u32 %v1577, 4294901760
        %1579 = vmatmul.mubr.f32.gmra.mxu0 %v1578
        %v1580 = vpop.f32.mrf.mxu0
        %v1581 = vadd.f32 %v1452, %v1580
        %v1582 = vpop.f32.mrf.mxu0
        %1583 = vmatprep.mubr.f32.mxu0 0.0
        %v1584 = vand.u32 %v325, 4294901760
        %v1585 = vsub.f32 %v325, %v1584
        %v1586 = vand.u32 %v1585, 4294901760
        %1587 = vmatmul.mubr.f32.gmra.mxu0 %v1586
        %v1588 = vpop.f32.mrf.mxu0
        %v1589 = vadd.f32 %v1459, %v1588
        %v1590 = vpop.f32.mrf.mxu0
        %1591 = vdwg.mxu0
        %1592 = vmatprep.subr.mxu0 0.0
        %1593 = vmatpush1.msra.mxu0 0.0
        %1594 = vmatprep.subr.mxu0 0.0
        %1595 = vmatpush1.msra.mxu0 0.0
        %1596 = vmatprep.subr.mxu0 0.0
        %1597 = vmatpush1.msra.mxu0 0.0
        %1598 = vmatprep.subr.mxu0 0.0
        %1599 = vmatpush1.msra.mxu0 0.0
        %1600 = vmatprep.subr.mxu0 0.0
        %1601 = vmatpush1.msra.mxu0 0.0
        %1602 = vmatprep.subr.mxu0 0.0
        %1603 = vmatpush1.msra.mxu0 0.0
        %1604 = vmatprep.subr.mxu0 0.0
        %1605 = vmatpush1.msra.mxu0 0.0
        %1606 = vmatprep.subr.mxu0 0.0
        %1607 = vmatpush1.msra.mxu0 0.0
        %1608 = vmatprep.subr.mxu0 0.0
        %1609 = vmatpush1.msra.mxu0 0.0
        %1610 = vmatprep.subr.mxu0 0.0
        %1611 = vmatpush1.msra.mxu0 0.0
        %1612 = vmatprep.subr.mxu0 0.0
        %1613 = vmatpush1.msra.mxu0 0.0
        %1614 = vmatprep.subr.mxu0 0.0
        %1615 = vmatpush1.msra.mxu0 0.0
        %1616 = vmatprep.subr.mxu0 0.0
        %1617 = vmatpush1.msra.mxu0 0.0
        %1618 = vmatprep.subr.mxu0 0.0
        %1619 = vmatpush1.msra.mxu0 0.0
        %1620 = vmatprep.subr.mxu0 0.0
        %1621 = vmatpush1.msra.mxu0 0.0
        %1622 = vmatprep.subr.mxu0 0.0
        %v1623 = vand.u32 %v1074, 4294901760
        %v1624 = vsub.f32 %v1074, %v1623
        %v1625 = vand.u32 %v1624, 4294901760
        %1626 = vmatpush1.msra.mxu0 %v1625
        %1627 = vmatprep.subr.mxu0 0.0
        %1628 = vmatpush2.msra.mxu0 0.0
        %1629 = vmatprep.subr.mxu0 0.0
        %1630 = vmatpush2.msra.mxu0 0.0
        %1631 = vmatprep.subr.mxu0 0.0
        %1632 = vmatpush2.msra.mxu0 0.0
        %1633 = vmatprep.subr.mxu0 0.0
        %1634 = vmatpush2.msra.mxu0 0.0
        %1635 = vmatprep.subr.mxu0 0.0
        %1636 = vmatpush2.msra.mxu0 0.0
        %1637 = vmatprep.subr.mxu0 0.0
        %1638 = vmatpush2.msra.mxu0 0.0
        %1639 = vmatprep.subr.mxu0 0.0
        %1640 = vmatpush2.msra.mxu0 0.0
        %1641 = vmatprep.subr.mxu0 0.0
        %1642 = vmatpush2.msra.mxu0 0.0
        %1643 = vmatprep.subr.mxu0 0.0
        %1644 = vmatpush2.msra.mxu0 0.0
        %1645 = vmatprep.subr.mxu0 0.0
        %1646 = vmatpush2.msra.mxu0 0.0
        %1647 = vmatprep.subr.mxu0 0.0
        %1648 = vmatpush2.msra.mxu0 0.0
        %1649 = vmatprep.subr.mxu0 0.0
        %1650 = vmatpush2.msra.mxu0 0.0
        %1651 = vmatprep.subr.mxu0 0.0
        %1652 = vmatpush2.msra.mxu0 0.0
        %1653 = vmatprep.subr.mxu0 0.0
        %1654 = vmatpush2.msra.mxu0 0.0
        %1655 = vmatprep.subr.mxu0 0.0
        %1656 = vmatpush2.msra.mxu0 0.0
        %1657 = vmatprep.subr.mxu0 0.0
        %1658 = vmatpush2.msra.mxu0 0.0
        %1659 = vmatprep.mubr.f32.mxu0 0.0
        %v1660 = vand.u32 %v304, 4294901760
        %1661 = vmatmul.mubr.f32.gmra.mxu0 %v1660
        %v1662 = vpop.f32.mrf.mxu0
        %v1663 = vadd.f32 %v1533, %v1662
        %v1664 = vpop.f32.mrf.mxu0
        %1665 = vmatprep.mubr.f32.mxu0 0.0
        %v1666 = vand.u32 %v307, 4294901760
        %1667 = vmatmul.mubr.f32.gmra.mxu0 %v1666
        %v1668 = vpop.f32.mrf.mxu0
        %v1669 = vadd.f32 %v1541, %v1668
        %v1670 = vpop.f32.mrf.mxu0
        %1671 = vmatprep.mubr.f32.mxu0 0.0
        %v1672 = vand.u32 %v310, 4294901760
        %1673 = vmatmul.mubr.f32.gmra.mxu0 %v1672
        %v1674 = vpop.f32.mrf.mxu0
        %v1675 = vadd.f32 %v1549, %v1674
        %v1676 = vpop.f32.mrf.mxu0
        %1677 = vmatprep.mubr.f32.mxu0 0.0
        %v1678 = vand.u32 %v313, 4294901760
        %1679 = vmatmul.mubr.f32.gmra.mxu0 %v1678
        %v1680 = vpop.f32.mrf.mxu0
        %v1681 = vadd.f32 %v1557, %v1680
        %v1682 = vpop.f32.mrf.mxu0
        %1683 = vmatprep.mubr.f32.mxu0 0.0
        %v1684 = vand.u32 %v316, 4294901760
        %1685 = vmatmul.mubr.f32.gmra.mxu0 %v1684
        %v1686 = vpop.f32.mrf.mxu0
        %v1687 = vadd.f32 %v1565, %v1686
        %v1688 = vpop.f32.mrf.mxu0
        %1689 = vmatprep.mubr.f32.mxu0 0.0
        %v1690 = vand.u32 %v319, 4294901760
        %1691 = vmatmul.mubr.f32.gmra.mxu0 %v1690
        %v1692 = vpop.f32.mrf.mxu0
        %v1693 = vadd.f32 %v1573, %v1692
        %v1694 = vpop.f32.mrf.mxu0
        %1695 = vmatprep.mubr.f32.mxu0 0.0
        %v1696 = vand.u32 %v322, 4294901760
        %1697 = vmatmul.mubr.f32.gmra.mxu0 %v1696
        %v1698 = vpop.f32.mrf.mxu0
        %v1699 = vadd.f32 %v1581, %v1698
        %v1700 = vpop.f32.mrf.mxu0
        %1701 = vmatprep.mubr.f32.mxu0 0.0
        %v1702 = vand.u32 %v325, 4294901760
        %1703 = vmatmul.mubr.f32.gmra.mxu0 %v1702
        %v1704 = vpop.f32.mrf.mxu0
        %v1705 = vadd.f32 %v1589, %v1704
        %v1706 = vpop.f32.mrf.mxu0
        %1707 = vdwg.mxu0
        %1708 = vmatprep.subr.mxu0 0.0
        %1709 = vmatpush1.msra.mxu0 0.0
        %1710 = vmatprep.subr.mxu0 0.0
        %1711 = vmatpush1.msra.mxu0 0.0
        %1712 = vmatprep.subr.mxu0 0.0
        %1713 = vmatpush1.msra.mxu0 0.0
        %1714 = vmatprep.subr.mxu0 0.0
        %1715 = vmatpush1.msra.mxu0 0.0
        %1716 = vmatprep.subr.mxu0 0.0
        %1717 = vmatpush1.msra.mxu0 0.0
        %1718 = vmatprep.subr.mxu0 0.0
        %1719 = vmatpush1.msra.mxu0 0.0
        %1720 = vmatprep.subr.mxu0 0.0
        %1721 = vmatpush1.msra.mxu0 0.0
        %1722 = vmatprep.subr.mxu0 0.0
        %1723 = vmatpush1.msra.mxu0 0.0
        %1724 = vmatprep.subr.mxu0 0.0
        %1725 = vmatpush1.msra.mxu0 0.0
        %1726 = vmatprep.subr.mxu0 0.0
        %1727 = vmatpush1.msra.mxu0 0.0
        %1728 = vmatprep.subr.mxu0 0.0
        %1729 = vmatpush1.msra.mxu0 0.0
        %1730 = vmatprep.subr.mxu0 0.0
        %1731 = vmatpush1.msra.mxu0 0.0
        %1732 = vmatprep.subr.mxu0 0.0
        %1733 = vmatpush1.msra.mxu0 0.0
        %1734 = vmatprep.subr.mxu0 0.0
        %1735 = vmatpush1.msra.mxu0 0.0
        %1736 = vmatprep.subr.mxu0 0.0
        %1737 = vmatpush1.msra.mxu0 0.0
        %1738 = vmatprep.subr.mxu0 0.0
        %v1739 = vand.u32 %v1074, 4294901760
        %1740 = vmatpush1.msra.mxu0 %v1739
        %1741 = vmatprep.subr.mxu0 0.0
        %1742 = vmatpush2.msra.mxu0 0.0
        %1743 = vmatprep.subr.mxu0 0.0
        %1744 = vmatpush2.msra.mxu0 0.0
        %1745 = vmatprep.subr.mxu0 0.0
        %1746 = vmatpush2.msra.mxu0 0.0
        %1747 = vmatprep.subr.mxu0 0.0
        %1748 = vmatpush2.msra.mxu0 0.0
        %1749 = vmatprep.subr.mxu0 0.0
        %1750 = vmatpush2.msra.mxu0 0.0
        %1751 = vmatprep.subr.mxu0 0.0
        %1752 = vmatpush2.msra.mxu0 0.0
        %1753 = vmatprep.subr.mxu0 0.0
        %1754 = vmatpush2.msra.mxu0 0.0
        %1755 = vmatprep.subr.mxu0 0.0
        %1756 = vmatpush2.msra.mxu0 0.0
        %1757 = vmatprep.subr.mxu0 0.0
        %1758 = vmatpush2.msra.mxu0 0.0
        %1759 = vmatprep.subr.mxu0 0.0
        %1760 = vmatpush2.msra.mxu0 0.0
        %1761 = vmatprep.subr.mxu0 0.0
        %1762 = vmatpush2.msra.mxu0 0.0
        %1763 = vmatprep.subr.mxu0 0.0
        %1764 = vmatpush2.msra.mxu0 0.0
        %1765 = vmatprep.subr.mxu0 0.0
        %1766 = vmatpush2.msra.mxu0 0.0
        %1767 = vmatprep.subr.mxu0 0.0
        %1768 = vmatpush2.msra.mxu0 0.0
        %1769 = vmatprep.subr.mxu0 0.0
        %1770 = vmatpush2.msra.mxu0 0.0
        %1771 = vmatprep.subr.mxu0 0.0
        %1772 = vmatpush2.msra.mxu0 0.0
        %1773 = vmatprep.mubr.f32.mxu0 0.0
        %v1774 = vand.u32 %v304, 4294901760
        %1775 = vmatmul.mubr.f32.gmra.mxu0 %v1774
        %v1776 = vpop.f32.mrf.mxu0
        %v1777 = vadd.f32 %v1663, %v1776
        %v1778 = vpop.f32.mrf.mxu0
        %1779 = vmatprep.mubr.f32.mxu0 0.0
        %v1780 = vand.u32 %v307, 4294901760
        %1781 = vmatmul.mubr.f32.gmra.mxu0 %v1780
        %v1782 = vpop.f32.mrf.mxu0
        %v1783 = vadd.f32 %v1669, %v1782
        %v1784 = vpop.f32.mrf.mxu0
        %1785 = vmatprep.mubr.f32.mxu0 0.0
        %v1786 = vand.u32 %v310, 4294901760
        %1787 = vmatmul.mubr.f32.gmra.mxu0 %v1786
        %v1788 = vpop.f32.mrf.mxu0
        %v1789 = vadd.f32 %v1675, %v1788
        %v1790 = vpop.f32.mrf.mxu0
        %1791 = vmatprep.mubr.f32.mxu0 0.0
        %v1792 = vand.u32 %v313, 4294901760
        %1793 = vmatmul.mubr.f32.gmra.mxu0 %v1792
        %v1794 = vpop.f32.mrf.mxu0
        %v1795 = vadd.f32 %v1681, %v1794
        %v1796 = vpop.f32.mrf.mxu0
        %1797 = vmatprep.mubr.f32.mxu0 0.0
        %v1798 = vand.u32 %v316, 4294901760
        %1799 = vmatmul.mubr.f32.gmra.mxu0 %v1798
        %v1800 = vpop.f32.mrf.mxu0
        %v1801 = vadd.f32 %v1687, %v1800
        %v1802 = vpop.f32.mrf.mxu0
        %1803 = vmatprep.mubr.f32.mxu0 0.0
        %v1804 = vand.u32 %v319, 4294901760
        %1805 = vmatmul.mubr.f32.gmra.mxu0 %v1804
        %v1806 = vpop.f32.mrf.mxu0
        %v1807 = vadd.f32 %v1693, %v1806
        %v1808 = vpop.f32.mrf.mxu0
        %1809 = vmatprep.mubr.f32.mxu0 0.0
        %v1810 = vand.u32 %v322, 4294901760
        %1811 = vmatmul.mubr.f32.gmra.mxu0 %v1810
        %v1812 = vpop.f32.mrf.mxu0
        %v1813 = vadd.f32 %v1699, %v1812
        %v1814 = vpop.f32.mrf.mxu0
        %1815 = vmatprep.mubr.f32.mxu0 0.0
        %v1816 = vand.u32 %v325, 4294901760
        %1817 = vmatmul.mubr.f32.gmra.mxu0 %v1816
        %v1818 = vpop.f32.mrf.mxu0
        %v1819 = vadd.f32 %v1705, %v1818
        %v1820 = vpop.f32.mrf.mxu0
        %1821 = vdwg.mxu0
        %vm1822 = vcmask 261120
        %1823 = vst.msk [vmem:[#allocation4] sm:$0xff] %vm1822, %v1777
        %1824 = vst.msk [vmem:[#allocation4 + $0x8] sm:$0xff] %vm1822, %v1783
        %1825 = vst.msk [vmem:[#allocation4 + $0x10] sm:$0xff] %vm1822, %v1789
        %1826 = vst.msk [vmem:[#allocation4 + $0x18] sm:$0xff] %vm1822, %v1795
        %1827 = vst.msk [vmem:[#allocation4 + $0x20] sm:$0xff] %vm1822, %v1801
        %1828 = vst.msk [vmem:[#allocation4 + $0x28] sm:$0xff] %vm1822, %v1807
        %1829 = vst.msk [vmem:[#allocation4 + $0x30] sm:$0xff] %vm1822, %v1813
        %1830 = vst.msk [vmem:[#allocation4 + $0x38] sm:$0xff] %vm1822, %v1819
        %v1831 = vld [vmem:[%s3] sm:$0xff]
        %v1832 = vld [vmem:[%s3 + $0x8] sm:$0xff]
        %v1833 = vld [vmem:[%s3 + $0x10] sm:$0xff]
        %v1834 = vld [vmem:[%s3 + $0x18] sm:$0xff]
        %v1836 = vsel %vm1822, %v1029, 0
        %v1839 = vsel %vm1822, %v1035, 0
        %v1842 = vsel %vm1822, %v1041, 0
        %v1845 = vsel %vm1822, %v1047, 0
        %v1848 = vsel %vm1822, %v1053, 0
        %v1851 = vsel %vm1822, %v1059, 0
        %v1854 = vsel %vm1822, %v1065, 0
        %v1857 = vsel %vm1822, %v1071, 0
        %1859 = vmatprep.subr.mxu0 0.0
        %1860 = vmatpush1.msra.mxu0 0.0
        %1861 = vmatprep.subr.mxu0 0.0
        %1862 = vmatpush1.msra.mxu0 0.0
        %1863 = vmatprep.subr.mxu0 0.0
        %1864 = vmatpush1.msra.mxu0 0.0
        %1865 = vmatprep.subr.mxu0 0.0
        %1866 = vmatpush1.msra.mxu0 0.0
        %1867 = vmatprep.subr.mxu0 0.0
        %1868 = vmatpush1.msra.mxu0 0.0
        %1869 = vmatprep.subr.mxu0 0.0
        %1870 = vmatpush1.msra.mxu0 0.0
        %1871 = vmatprep.subr.mxu0 0.0
        %1872 = vmatpush1.msra.mxu0 0.0
        %1873 = vmatprep.subr.mxu0 0.0
        %1874 = vmatpush1.msra.mxu0 0.0
        %1875 = vmatprep.subr.mxu0 0.0
        %1876 = vmatpush1.msra.mxu0 0.0
        %1877 = vmatprep.subr.mxu0 0.0
        %1878 = vmatpush1.msra.mxu0 0.0
        %1879 = vmatprep.subr.mxu0 0.0
        %1880 = vmatpush1.msra.mxu0 0.0
        %1881 = vmatprep.subr.mxu0 0.0
        %1882 = vmatpush1.msra.mxu0 0.0
        %1883 = vmatprep.subr.mxu0 0.0
        %v1884 = vand.u32 %v1834, 4294901760
        %1885 = vmatpush1.msra.mxu0 %v1884
        %1886 = vmatprep.subr.mxu0 0.0
        %v1887 = vand.u32 %v1833, 4294901760
        %1888 = vmatpush1.msra.mxu0 %v1887
        %1889 = vmatprep.subr.mxu0 0.0
        %v1890 = vand.u32 %v1832, 4294901760
        %1891 = vmatpush1.msra.mxu0 %v1890
        %1892 = vmatprep.subr.mxu0 0.0
        %v1893 = vand.u32 %v1831, 4294901760
        %1894 = vmatpush1.msra.mxu0 %v1893
        %1895 = vmatprep.subr.mxu0 0.0
        %1896 = vmatpush2.msra.mxu0 0.0
        %1897 = vmatprep.subr.mxu0 0.0
        %1898 = vmatpush2.msra.mxu0 0.0
        %1899 = vmatprep.subr.mxu0 0.0
        %1900 = vmatpush2.msra.mxu0 0.0
        %1901 = vmatprep.subr.mxu0 0.0
        %1902 = vmatpush2.msra.mxu0 0.0
        %1903 = vmatprep.subr.mxu0 0.0
        %1904 = vmatpush2.msra.mxu0 0.0
        %1905 = vmatprep.subr.mxu0 0.0
        %1906 = vmatpush2.msra.mxu0 0.0
        %1907 = vmatprep.subr.mxu0 0.0
        %1908 = vmatpush2.msra.mxu0 0.0
        %1909 = vmatprep.subr.mxu0 0.0
        %1910 = vmatpush2.msra.mxu0 0.0
        %1911 = vmatprep.subr.mxu0 0.0
        %1912 = vmatpush2.msra.mxu0 0.0
        %1913 = vmatprep.subr.mxu0 0.0
        %1914 = vmatpush2.msra.mxu0 0.0
        %1915 = vmatprep.subr.mxu0 0.0
        %1916 = vmatpush2.msra.mxu0 0.0
        %1917 = vmatprep.subr.mxu0 0.0
        %1918 = vmatpush2.msra.mxu0 0.0
        %1919 = vmatprep.subr.mxu0 0.0
        %1920 = vmatpush2.msra.mxu0 0.0
        %1921 = vmatprep.subr.mxu0 0.0
        %1922 = vmatpush2.msra.mxu0 0.0
        %1923 = vmatprep.subr.mxu0 0.0
        %1924 = vmatpush2.msra.mxu0 0.0
        %1925 = vmatprep.subr.mxu0 0.0
        %1926 = vmatpush2.msra.mxu0 0.0
        %1927 = vmatprep.mubr.f32.mxu0 0.0
        %v1928 = vand.u32 %v1836, 4294901760
        %v1929 = vsub.f32 %v1836, %v1928
        %v1930 = vand.u32 %v1929, 4294901760
        %v1931 = vsub.f32 %v1929, %v1930
        %v1932 = vand.u32 %v1931, 4294901760
        %1933 = vmatmul.mubr.f32.gmra.mxu0 %v1932
        %v1934 = vpop.f32.mrf.mxu0
        %v1935 = vadd.f32 0.0, %v1934
        %v1936 = vpop.f32.mrf.mxu0
        %1937 = vmatprep.mubr.f32.mxu0 0.0
        %v1938 = vand.u32 %v1839, 4294901760
        %v1939 = vsub.f32 %v1839, %v1938
        %v1940 = vand.u32 %v1939, 4294901760
        %v1941 = vsub.f32 %v1939, %v1940
        %v1942 = vand.u32 %v1941, 4294901760
        %1943 = vmatmul.mubr.f32.gmra.mxu0 %v1942
        %v1944 = vpop.f32.mrf.mxu0
        %v1945 = vadd.f32 0.0, %v1944
        %v1946 = vpop.f32.mrf.mxu0
        %1947 = vmatprep.mubr.f32.mxu0 0.0
        %v1948 = vand.u32 %v1842, 4294901760
        %v1949 = vsub.f32 %v1842, %v1948
        %v1950 = vand.u32 %v1949, 4294901760
        %v1951 = vsub.f32 %v1949, %v1950
        %v1952 = vand.u32 %v1951, 4294901760
        %1953 = vmatmul.mubr.f32.gmra.mxu0 %v1952
        %v1954 = vpop.f32.mrf.mxu0
        %v1955 = vadd.f32 0.0, %v1954
        %v1956 = vpop.f32.mrf.mxu0
        %1957 = vmatprep.mubr.f32.mxu0 0.0
        %v1958 = vand.u32 %v1845, 4294901760
        %v1959 = vsub.f32 %v1845, %v1958
        %v1960 = vand.u32 %v1959, 4294901760
        %v1961 = vsub.f32 %v1959, %v1960
        %v1962 = vand.u32 %v1961, 4294901760
        %1963 = vmatmul.mubr.f32.gmra.mxu0 %v1962
        %v1964 = vpop.f32.mrf.mxu0
        %v1965 = vadd.f32 0.0, %v1964
        %v1966 = vpop.f32.mrf.mxu0
        %1967 = vmatprep.mubr.f32.mxu0 0.0
        %v1968 = vand.u32 %v1848, 4294901760
        %v1969 = vsub.f32 %v1848, %v1968
        %v1970 = vand.u32 %v1969, 4294901760
        %v1971 = vsub.f32 %v1969, %v1970
        %v1972 = vand.u32 %v1971, 4294901760
        %1973 = vmatmul.mubr.f32.gmra.mxu0 %v1972
        %v1974 = vpop.f32.mrf.mxu0
        %v1975 = vadd.f32 0.0, %v1974
        %v1976 = vpop.f32.mrf.mxu0
        %1977 = vmatprep.mubr.f32.mxu0 0.0
        %v1978 = vand.u32 %v1851, 4294901760
        %v1979 = vsub.f32 %v1851, %v1978
        %v1980 = vand.u32 %v1979, 4294901760
        %v1981 = vsub.f32 %v1979, %v1980
        %v1982 = vand.u32 %v1981, 4294901760
        %1983 = vmatmul.mubr.f32.gmra.mxu0 %v1982
        %v1984 = vpop.f32.mrf.mxu0
        %v1985 = vadd.f32 0.0, %v1984
        %v1986 = vpop.f32.mrf.mxu0
        %1987 = vmatprep.mubr.f32.mxu0 0.0
        %v1988 = vand.u32 %v1854, 4294901760
        %v1989 = vsub.f32 %v1854, %v1988
        %v1990 = vand.u32 %v1989, 4294901760
        %v1991 = vsub.f32 %v1989, %v1990
        %v1992 = vand.u32 %v1991, 4294901760
        %1993 = vmatmul.mubr.f32.gmra.mxu0 %v1992
        %v1994 = vpop.f32.mrf.mxu0
        %v1995 = vadd.f32 0.0, %v1994
        %v1996 = vpop.f32.mrf.mxu0
        %1997 = vmatprep.mubr.f32.mxu0 0.0
        %v1998 = vand.u32 %v1857, 4294901760
        %v1999 = vsub.f32 %v1857, %v1998
        %v2000 = vand.u32 %v1999, 4294901760
        %v2001 = vsub.f32 %v1999, %v2000
        %v2002 = vand.u32 %v2001, 4294901760
        %2003 = vmatmul.mubr.f32.gmra.mxu0 %v2002
        %v2004 = vpop.f32.mrf.mxu0
        %v2005 = vadd.f32 0.0, %v2004
        %v2006 = vpop.f32.mrf.mxu0
        %2007 = vdwg.mxu0
        %2008 = vmatprep.subr.mxu0 0.0
        %2009 = vmatpush1.msra.mxu0 0.0
        %2010 = vmatprep.subr.mxu0 0.0
        %2011 = vmatpush1.msra.mxu0 0.0
        %2012 = vmatprep.subr.mxu0 0.0
        %2013 = vmatpush1.msra.mxu0 0.0
        %2014 = vmatprep.subr.mxu0 0.0
        %2015 = vmatpush1.msra.mxu0 0.0
        %2016 = vmatprep.subr.mxu0 0.0
        %2017 = vmatpush1.msra.mxu0 0.0
        %2018 = vmatprep.subr.mxu0 0.0
        %2019 = vmatpush1.msra.mxu0 0.0
        %2020 = vmatprep.subr.mxu0 0.0
        %2021 = vmatpush1.msra.mxu0 0.0
        %2022 = vmatprep.subr.mxu0 0.0
        %2023 = vmatpush1.msra.mxu0 0.0
        %2024 = vmatprep.subr.mxu0 0.0
        %2025 = vmatpush1.msra.mxu0 0.0
        %2026 = vmatprep.subr.mxu0 0.0
        %2027 = vmatpush1.msra.mxu0 0.0
        %2028 = vmatprep.subr.mxu0 0.0
        %2029 = vmatpush1.msra.mxu0 0.0
        %2030 = vmatprep.subr.mxu0 0.0
        %2031 = vmatpush1.msra.mxu0 0.0
        %2032 = vmatprep.subr.mxu0 0.0
        %v2033 = vand.u32 %v1834, 4294901760
        %v2034 = vsub.f32 %v1834, %v2033
        %v2035 = vand.u32 %v2034, 4294901760
        %v2036 = vsub.f32 %v2034, %v2035
        %v2037 = vand.u32 %v2036, 4294901760
        %2038 = vmatpush1.msra.mxu0 %v2037
        %2039 = vmatprep.subr.mxu0 0.0
        %v2040 = vand.u32 %v1833, 4294901760
        %v2041 = vsub.f32 %v1833, %v2040
        %v2042 = vand.u32 %v2041, 4294901760
        %v2043 = vsub.f32 %v2041, %v2042
        %v2044 = vand.u32 %v2043, 4294901760
        %2045 = vmatpush1.msra.mxu0 %v2044
        %2046 = vmatprep.subr.mxu0 0.0
        %v2047 = vand.u32 %v1832, 4294901760
        %v2048 = vsub.f32 %v1832, %v2047
        %v2049 = vand.u32 %v2048, 4294901760
        %v2050 = vsub.f32 %v2048, %v2049
        %v2051 = vand.u32 %v2050, 4294901760
        %2052 = vmatpush1.msra.mxu0 %v2051
        %2053 = vmatprep.subr.mxu0 0.0
        %v2054 = vand.u32 %v1831, 4294901760
        %v2055 = vsub.f32 %v1831, %v2054
        %v2056 = vand.u32 %v2055, 4294901760
        %v2057 = vsub.f32 %v2055, %v2056
        %v2058 = vand.u32 %v2057, 4294901760
        %2059 = vmatpush1.msra.mxu0 %v2058
        %2060 = vmatprep.subr.mxu0 0.0
        %2061 = vmatpush2.msra.mxu0 0.0
        %2062 = vmatprep.subr.mxu0 0.0
        %2063 = vmatpush2.msra.mxu0 0.0
        %2064 = vmatprep.subr.mxu0 0.0
        %2065 = vmatpush2.msra.mxu0 0.0
        %2066 = vmatprep.subr.mxu0 0.0
        %2067 = vmatpush2.msra.mxu0 0.0
        %2068 = vmatprep.subr.mxu0 0.0
        %2069 = vmatpush2.msra.mxu0 0.0
        %2070 = vmatprep.subr.mxu0 0.0
        %2071 = vmatpush2.msra.mxu0 0.0
        %2072 = vmatprep.subr.mxu0 0.0
        %2073 = vmatpush2.msra.mxu0 0.0
        %2074 = vmatprep.subr.mxu0 0.0
        %2075 = vmatpush2.msra.mxu0 0.0
        %2076 = vmatprep.subr.mxu0 0.0
        %2077 = vmatpush2.msra.mxu0 0.0
        %2078 = vmatprep.subr.mxu0 0.0
        %2079 = vmatpush2.msra.mxu0 0.0
        %2080 = vmatprep.subr.mxu0 0.0
        %2081 = vmatpush2.msra.mxu0 0.0
        %2082 = vmatprep.subr.mxu0 0.0
        %2083 = vmatpush2.msra.mxu0 0.0
        %2084 = vmatprep.subr.mxu0 0.0
        %2085 = vmatpush2.msra.mxu0 0.0
        %2086 = vmatprep.subr.mxu0 0.0
        %2087 = vmatpush2.msra.mxu0 0.0
        %2088 = vmatprep.subr.mxu0 0.0
        %2089 = vmatpush2.msra.mxu0 0.0
        %2090 = vmatprep.subr.mxu0 0.0
        %2091 = vmatpush2.msra.mxu0 0.0
        %2092 = vmatprep.mubr.f32.mxu0 0.0
        %v2093 = vand.u32 %v1836, 4294901760
        %2094 = vmatmul.mubr.f32.gmra.mxu0 %v2093
        %v2095 = vpop.f32.mrf.mxu0
        %v2096 = vadd.f32 %v1935, %v2095
        %v2097 = vpop.f32.mrf.mxu0
        %2098 = vmatprep.mubr.f32.mxu0 0.0
        %v2099 = vand.u32 %v1839, 4294901760
        %2100 = vmatmul.mubr.f32.gmra.mxu0 %v2099
        %v2101 = vpop.f32.mrf.mxu0
        %v2102 = vadd.f32 %v1945, %v2101
        %v2103 = vpop.f32.mrf.mxu0
        %2104 = vmatprep.mubr.f32.mxu0 0.0
        %v2105 = vand.u32 %v1842, 4294901760
        %2106 = vmatmul.mubr.f32.gmra.mxu0 %v2105
        %v2107 = vpop.f32.mrf.mxu0
        %v2108 = vadd.f32 %v1955, %v2107
        %v2109 = vpop.f32.mrf.mxu0
        %2110 = vmatprep.mubr.f32.mxu0 0.0
        %v2111 = vand.u32 %v1845, 4294901760
        %2112 = vmatmul.mubr.f32.gmra.mxu0 %v2111
        %v2113 = vpop.f32.mrf.mxu0
        %v2114 = vadd.f32 %v1965, %v2113
        %v2115 = vpop.f32.mrf.mxu0
        %2116 = vmatprep.mubr.f32.mxu0 0.0
        %v2117 = vand.u32 %v1848, 4294901760
        %2118 = vmatmul.mubr.f32.gmra.mxu0 %v2117
        %v2119 = vpop.f32.mrf.mxu0
        %v2120 = vadd.f32 %v1975, %v2119
        %v2121 = vpop.f32.mrf.mxu0
        %2122 = vmatprep.mubr.f32.mxu0 0.0
        %v2123 = vand.u32 %v1851, 4294901760
        %2124 = vmatmul.mubr.f32.gmra.mxu0 %v2123
        %v2125 = vpop.f32.mrf.mxu0
        %v2126 = vadd.f32 %v1985, %v2125
        %v2127 = vpop.f32.mrf.mxu0
        %2128 = vmatprep.mubr.f32.mxu0 0.0
        %v2129 = vand.u32 %v1854, 4294901760
        %2130 = vmatmul.mubr.f32.gmra.mxu0 %v2129
        %v2131 = vpop.f32.mrf.mxu0
        %v2132 = vadd.f32 %v1995, %v2131
        %v2133 = vpop.f32.mrf.mxu0
        %2134 = vmatprep.mubr.f32.mxu0 0.0
        %v2135 = vand.u32 %v1857, 4294901760
        %2136 = vmatmul.mubr.f32.gmra.mxu0 %v2135
        %v2137 = vpop.f32.mrf.mxu0
        %v2138 = vadd.f32 %v2005, %v2137
        %v2139 = vpop.f32.mrf.mxu0
        %2140 = vdwg.mxu0
        %2141 = vmatprep.subr.mxu0 0.0
        %2142 = vmatpush1.msra.mxu0 0.0
        %2143 = vmatprep.subr.mxu0 0.0
        %2144 = vmatpush1.msra.mxu0 0.0
        %2145 = vmatprep.subr.mxu0 0.0
        %2146 = vmatpush1.msra.mxu0 0.0
        %2147 = vmatprep.subr.mxu0 0.0
        %2148 = vmatpush1.msra.mxu0 0.0
        %2149 = vmatprep.subr.mxu0 0.0
        %2150 = vmatpush1.msra.mxu0 0.0
        %2151 = vmatprep.subr.mxu0 0.0
        %2152 = vmatpush1.msra.mxu0 0.0
        %2153 = vmatprep.subr.mxu0 0.0
        %2154 = vmatpush1.msra.mxu0 0.0
        %2155 = vmatprep.subr.mxu0 0.0
        %2156 = vmatpush1.msra.mxu0 0.0
        %2157 = vmatprep.subr.mxu0 0.0
        %2158 = vmatpush1.msra.mxu0 0.0
        %2159 = vmatprep.subr.mxu0 0.0
        %2160 = vmatpush1.msra.mxu0 0.0
        %2161 = vmatprep.subr.mxu0 0.0
        %2162 = vmatpush1.msra.mxu0 0.0
        %2163 = vmatprep.subr.mxu0 0.0
        %2164 = vmatpush1.msra.mxu0 0.0
        %2165 = vmatprep.subr.mxu0 0.0
        %v2166 = vand.u32 %v1834, 4294901760
        %v2167 = vsub.f32 %v1834, %v2166
        %2168 = vmatpush1.msra.mxu0 %v2167
        %2169 = vmatprep.subr.mxu0 0.0
        %v2170 = vand.u32 %v1833, 4294901760
        %v2171 = vsub.f32 %v1833, %v2170
        %2172 = vmatpush1.msra.mxu0 %v2171
        %2173 = vmatprep.subr.mxu0 0.0
        %v2174 = vand.u32 %v1832, 4294901760
        %v2175 = vsub.f32 %v1832, %v2174
        %2176 = vmatpush1.msra.mxu0 %v2175
        %2177 = vmatprep.subr.mxu0 0.0
        %v2178 = vand.u32 %v1831, 4294901760
        %v2179 = vsub.f32 %v1831, %v2178
        %2180 = vmatpush1.msra.mxu0 %v2179
        %2181 = vmatprep.subr.mxu0 0.0
        %2182 = vmatpush2.msra.mxu0 0.0
        %2183 = vmatprep.subr.mxu0 0.0
        %2184 = vmatpush2.msra.mxu0 0.0
        %2185 = vmatprep.subr.mxu0 0.0
        %2186 = vmatpush2.msra.mxu0 0.0
        %2187 = vmatprep.subr.mxu0 0.0
        %2188 = vmatpush2.msra.mxu0 0.0
        %2189 = vmatprep.subr.mxu0 0.0
        %2190 = vmatpush2.msra.mxu0 0.0
        %2191 = vmatprep.subr.mxu0 0.0
        %2192 = vmatpush2.msra.mxu0 0.0
        %2193 = vmatprep.subr.mxu0 0.0
        %2194 = vmatpush2.msra.mxu0 0.0
        %2195 = vmatprep.subr.mxu0 0.0
        %2196 = vmatpush2.msra.mxu0 0.0
        %2197 = vmatprep.subr.mxu0 0.0
        %2198 = vmatpush2.msra.mxu0 0.0
        %2199 = vmatprep.subr.mxu0 0.0
        %2200 = vmatpush2.msra.mxu0 0.0
        %2201 = vmatprep.subr.mxu0 0.0
        %2202 = vmatpush2.msra.mxu0 0.0
        %2203 = vmatprep.subr.mxu0 0.0
        %2204 = vmatpush2.msra.mxu0 0.0
        %2205 = vmatprep.subr.mxu0 0.0
        %2206 = vmatpush2.msra.mxu0 0.0
        %2207 = vmatprep.subr.mxu0 0.0
        %2208 = vmatpush2.msra.mxu0 0.0
        %2209 = vmatprep.subr.mxu0 0.0
        %2210 = vmatpush2.msra.mxu0 0.0
        %2211 = vmatprep.subr.mxu0 0.0
        %2212 = vmatpush2.msra.mxu0 0.0
        %2213 = vmatprep.mubr.f32.mxu0 0.0
        %v2214 = vand.u32 %v1836, 4294901760
        %v2215 = vsub.f32 %v1836, %v2214
        %2216 = vmatmul.mubr.f32.gmra.mxu0 %v2215
        %v2217 = vpop.f32.mrf.mxu0
        %v2218 = vadd.f32 %v2096, %v2217
        %v2219 = vpop.f32.mrf.mxu0
        %2220 = vmatprep.mubr.f32.mxu0 0.0
        %v2221 = vand.u32 %v1839, 4294901760
        %v2222 = vsub.f32 %v1839, %v2221
        %2223 = vmatmul.mubr.f32.gmra.mxu0 %v2222
        %v2224 = vpop.f32.mrf.mxu0
        %v2225 = vadd.f32 %v2102, %v2224
        %v2226 = vpop.f32.mrf.mxu0
        %2227 = vmatprep.mubr.f32.mxu0 0.0
        %v2228 = vand.u32 %v1842, 4294901760
        %v2229 = vsub.f32 %v1842, %v2228
        %2230 = vmatmul.mubr.f32.gmra.mxu0 %v2229
        %v2231 = vpop.f32.mrf.mxu0
        %v2232 = vadd.f32 %v2108, %v2231
        %v2233 = vpop.f32.mrf.mxu0
        %2234 = vmatprep.mubr.f32.mxu0 0.0
        %v2235 = vand.u32 %v1845, 4294901760
        %v2236 = vsub.f32 %v1845, %v2235
        %2237 = vmatmul.mubr.f32.gmra.mxu0 %v2236
        %v2238 = vpop.f32.mrf.mxu0
        %v2239 = vadd.f32 %v2114, %v2238
        %v2240 = vpop.f32.mrf.mxu0
        %2241 = vmatprep.mubr.f32.mxu0 0.0
        %v2242 = vand.u32 %v1848, 4294901760
        %v2243 = vsub.f32 %v1848, %v2242
        %2244 = vmatmul.mubr.f32.gmra.mxu0 %v2243
        %v2245 = vpop.f32.mrf.mxu0
        %v2246 = vadd.f32 %v2120, %v2245
        %v2247 = vpop.f32.mrf.mxu0
        %2248 = vmatprep.mubr.f32.mxu0 0.0
        %v2249 = vand.u32 %v1851, 4294901760
        %v2250 = vsub.f32 %v1851, %v2249
        %2251 = vmatmul.mubr.f32.gmra.mxu0 %v2250
        %v2252 = vpop.f32.mrf.mxu0
        %v2253 = vadd.f32 %v2126, %v2252
        %v2254 = vpop.f32.mrf.mxu0
        %2255 = vmatprep.mubr.f32.mxu0 0.0
        %v2256 = vand.u32 %v1854, 4294901760
        %v2257 = vsub.f32 %v1854, %v2256
        %2258 = vmatmul.mubr.f32.gmra.mxu0 %v2257
        %v2259 = vpop.f32.mrf.mxu0
        %v2260 = vadd.f32 %v2132, %v2259
        %v2261 = vpop.f32.mrf.mxu0
        %2262 = vmatprep.mubr.f32.mxu0 0.0
        %v2263 = vand.u32 %v1857, 4294901760
        %v2264 = vsub.f32 %v1857, %v2263
        %2265 = vmatmul.mubr.f32.gmra.mxu0 %v2264
        %v2266 = vpop.f32.mrf.mxu0
        %v2267 = vadd.f32 %v2138, %v2266
        %v2268 = vpop.f32.mrf.mxu0
        %2269 = vdwg.mxu0
        %2270 = vmatprep.subr.mxu0 0.0
        %2271 = vmatpush1.msra.mxu0 0.0
        %2272 = vmatprep.subr.mxu0 0.0
        %2273 = vmatpush1.msra.mxu0 0.0
        %2274 = vmatprep.subr.mxu0 0.0
        %2275 = vmatpush1.msra.mxu0 0.0
        %2276 = vmatprep.subr.mxu0 0.0
        %2277 = vmatpush1.msra.mxu0 0.0
        %2278 = vmatprep.subr.mxu0 0.0
        %2279 = vmatpush1.msra.mxu0 0.0
        %2280 = vmatprep.subr.mxu0 0.0
        %2281 = vmatpush1.msra.mxu0 0.0
        %2282 = vmatprep.subr.mxu0 0.0
        %2283 = vmatpush1.msra.mxu0 0.0
        %2284 = vmatprep.subr.mxu0 0.0
        %2285 = vmatpush1.msra.mxu0 0.0
        %2286 = vmatprep.subr.mxu0 0.0
        %2287 = vmatpush1.msra.mxu0 0.0
        %2288 = vmatprep.subr.mxu0 0.0
        %2289 = vmatpush1.msra.mxu0 0.0
        %2290 = vmatprep.subr.mxu0 0.0
        %2291 = vmatpush1.msra.mxu0 0.0
        %2292 = vmatprep.subr.mxu0 0.0
        %2293 = vmatpush1.msra.mxu0 0.0
        %2294 = vmatprep.subr.mxu0 0.0
        %v2295 = vand.u32 %v1834, 4294901760
        %2296 = vmatpush1.msra.mxu0 %v2295
        %2297 = vmatprep.subr.mxu0 0.0
        %v2298 = vand.u32 %v1833, 4294901760
        %2299 = vmatpush1.msra.mxu0 %v2298
        %2300 = vmatprep.subr.mxu0 0.0
        %v2301 = vand.u32 %v1832, 4294901760
        %2302 = vmatpush1.msra.mxu0 %v2301
        %2303 = vmatprep.subr.mxu0 0.0
        %v2304 = vand.u32 %v1831, 4294901760
        %2305 = vmatpush1.msra.mxu0 %v2304
        %2306 = vmatprep.subr.mxu0 0.0
        %2307 = vmatpush2.msra.mxu0 0.0
        %2308 = vmatprep.subr.mxu0 0.0
        %2309 = vmatpush2.msra.mxu0 0.0
        %2310 = vmatprep.subr.mxu0 0.0
        %2311 = vmatpush2.msra.mxu0 0.0
        %2312 = vmatprep.subr.mxu0 0.0
        %2313 = vmatpush2.msra.mxu0 0.0
        %2314 = vmatprep.subr.mxu0 0.0
        %2315 = vmatpush2.msra.mxu0 0.0
        %2316 = vmatprep.subr.mxu0 0.0
        %2317 = vmatpush2.msra.mxu0 0.0
        %2318 = vmatprep.subr.mxu0 0.0
        %2319 = vmatpush2.msra.mxu0 0.0
        %2320 = vmatprep.subr.mxu0 0.0
        %2321 = vmatpush2.msra.mxu0 0.0
        %2322 = vmatprep.subr.mxu0 0.0
        %2323 = vmatpush2.msra.mxu0 0.0
        %2324 = vmatprep.subr.mxu0 0.0
        %2325 = vmatpush2.msra.mxu0 0.0
        %2326 = vmatprep.subr.mxu0 0.0
        %2327 = vmatpush2.msra.mxu0 0.0
        %2328 = vmatprep.subr.mxu0 0.0
        %2329 = vmatpush2.msra.mxu0 0.0
        %2330 = vmatprep.subr.mxu0 0.0
        %2331 = vmatpush2.msra.mxu0 0.0
        %2332 = vmatprep.subr.mxu0 0.0
        %2333 = vmatpush2.msra.mxu0 0.0
        %2334 = vmatprep.subr.mxu0 0.0
        %2335 = vmatpush2.msra.mxu0 0.0
        %2336 = vmatprep.subr.mxu0 0.0
        %2337 = vmatpush2.msra.mxu0 0.0
        %2338 = vmatprep.mubr.f32.mxu0 0.0
        %v2339 = vand.u32 %v1836, 4294901760
        %v2340 = vsub.f32 %v1836, %v2339
        %v2341 = vand.u32 %v2340, 4294901760
        %2342 = vmatmul.mubr.f32.gmra.mxu0 %v2341
        %v2343 = vpop.f32.mrf.mxu0
        %v2344 = vadd.f32 %v2218, %v2343
        %v2345 = vpop.f32.mrf.mxu0
        %2346 = vmatprep.mubr.f32.mxu0 0.0
        %v2347 = vand.u32 %v1839, 4294901760
        %v2348 = vsub.f32 %v1839, %v2347
        %v2349 = vand.u32 %v2348, 4294901760
        %2350 = vmatmul.mubr.f32.gmra.mxu0 %v2349
        %v2351 = vpop.f32.mrf.mxu0
        %v2352 = vadd.f32 %v2225, %v2351
        %v2353 = vpop.f32.mrf.mxu0
        %2354 = vmatprep.mubr.f32.mxu0 0.0
        %v2355 = vand.u32 %v1842, 4294901760
        %v2356 = vsub.f32 %v1842, %v2355
        %v2357 = vand.u32 %v2356, 4294901760
        %2358 = vmatmul.mubr.f32.gmra.mxu0 %v2357
        %v2359 = vpop.f32.mrf.mxu0
        %v2360 = vadd.f32 %v2232, %v2359
        %v2361 = vpop.f32.mrf.mxu0
        %2362 = vmatprep.mubr.f32.mxu0 0.0
        %v2363 = vand.u32 %v1845, 4294901760
        %v2364 = vsub.f32 %v1845, %v2363
        %v2365 = vand.u32 %v2364, 4294901760
        %2366 = vmatmul.mubr.f32.gmra.mxu0 %v2365
        %v2367 = vpop.f32.mrf.mxu0
        %v2368 = vadd.f32 %v2239, %v2367
        %v2369 = vpop.f32.mrf.mxu0
        %2370 = vmatprep.mubr.f32.mxu0 0.0
        %v2371 = vand.u32 %v1848, 4294901760
        %v2372 = vsub.f32 %v1848, %v2371
        %v2373 = vand.u32 %v2372, 4294901760
        %2374 = vmatmul.mubr.f32.gmra.mxu0 %v2373
        %v2375 = vpop.f32.mrf.mxu0
        %v2376 = vadd.f32 %v2246, %v2375
        %v2377 = vpop.f32.mrf.mxu0
        %2378 = vmatprep.mubr.f32.mxu0 0.0
        %v2379 = vand.u32 %v1851, 4294901760
        %v2380 = vsub.f32 %v1851, %v2379
        %v2381 = vand.u32 %v2380, 4294901760
        %2382 = vmatmul.mubr.f32.gmra.mxu0 %v2381
        %v2383 = vpop.f32.mrf.mxu0
        %v2384 = vadd.f32 %v2253, %v2383
        %v2385 = vpop.f32.mrf.mxu0
        %2386 = vmatprep.mubr.f32.mxu0 0.0
        %v2387 = vand.u32 %v1854, 4294901760
        %v2388 = vsub.f32 %v1854, %v2387
        %v2389 = vand.u32 %v2388, 4294901760
        %2390 = vmatmul.mubr.f32.gmra.mxu0 %v2389
        %v2391 = vpop.f32.mrf.mxu0
        %v2392 = vadd.f32 %v2260, %v2391
        %v2393 = vpop.f32.mrf.mxu0
        %2394 = vmatprep.mubr.f32.mxu0 0.0
        %v2395 = vand.u32 %v1857, 4294901760
        %v2396 = vsub.f32 %v1857, %v2395
        %v2397 = vand.u32 %v2396, 4294901760
        %2398 = vmatmul.mubr.f32.gmra.mxu0 %v2397
        %v2399 = vpop.f32.mrf.mxu0
        %v2400 = vadd.f32 %v2267, %v2399
        %v2401 = vpop.f32.mrf.mxu0
        %2402 = vdwg.mxu0
        %2403 = vmatprep.subr.mxu0 0.0
        %2404 = vmatpush1.msra.mxu0 0.0
        %2405 = vmatprep.subr.mxu0 0.0
        %2406 = vmatpush1.msra.mxu0 0.0
        %2407 = vmatprep.subr.mxu0 0.0
        %2408 = vmatpush1.msra.mxu0 0.0
        %2409 = vmatprep.subr.mxu0 0.0
        %2410 = vmatpush1.msra.mxu0 0.0
        %2411 = vmatprep.subr.mxu0 0.0
        %2412 = vmatpush1.msra.mxu0 0.0
        %2413 = vmatprep.subr.mxu0 0.0
        %2414 = vmatpush1.msra.mxu0 0.0
        %2415 = vmatprep.subr.mxu0 0.0
        %2416 = vmatpush1.msra.mxu0 0.0
        %2417 = vmatprep.subr.mxu0 0.0
        %2418 = vmatpush1.msra.mxu0 0.0
        %2419 = vmatprep.subr.mxu0 0.0
        %2420 = vmatpush1.msra.mxu0 0.0
        %2421 = vmatprep.subr.mxu0 0.0
        %2422 = vmatpush1.msra.mxu0 0.0
        %2423 = vmatprep.subr.mxu0 0.0
        %2424 = vmatpush1.msra.mxu0 0.0
        %2425 = vmatprep.subr.mxu0 0.0
        %2426 = vmatpush1.msra.mxu0 0.0
        %2427 = vmatprep.subr.mxu0 0.0
        %v2428 = vand.u32 %v1834, 4294901760
        %v2429 = vsub.f32 %v1834, %v2428
        %v2430 = vand.u32 %v2429, 4294901760
        %2431 = vmatpush1.msra.mxu0 %v2430
        %2432 = vmatprep.subr.mxu0 0.0
        %v2433 = vand.u32 %v1833, 4294901760
        %v2434 = vsub.f32 %v1833, %v2433
        %v2435 = vand.u32 %v2434, 4294901760
        %2436 = vmatpush1.msra.mxu0 %v2435
        %2437 = vmatprep.subr.mxu0 0.0
        %v2438 = vand.u32 %v1832, 4294901760
        %v2439 = vsub.f32 %v1832, %v2438
        %v2440 = vand.u32 %v2439, 4294901760
        %2441 = vmatpush1.msra.mxu0 %v2440
        %2442 = vmatprep.subr.mxu0 0.0
        %v2443 = vand.u32 %v1831, 4294901760
        %v2444 = vsub.f32 %v1831, %v2443
        %v2445 = vand.u32 %v2444, 4294901760
        %2446 = vmatpush1.msra.mxu0 %v2445
        %2447 = vmatprep.subr.mxu0 0.0
        %2448 = vmatpush2.msra.mxu0 0.0
        %2449 = vmatprep.subr.mxu0 0.0
        %2450 = vmatpush2.msra.mxu0 0.0
        %2451 = vmatprep.subr.mxu0 0.0
        %2452 = vmatpush2.msra.mxu0 0.0
        %2453 = vmatprep.subr.mxu0 0.0
        %2454 = vmatpush2.msra.mxu0 0.0
        %2455 = vmatprep.subr.mxu0 0.0
        %2456 = vmatpush2.msra.mxu0 0.0
        %2457 = vmatprep.subr.mxu0 0.0
        %2458 = vmatpush2.msra.mxu0 0.0
        %2459 = vmatprep.subr.mxu0 0.0
        %2460 = vmatpush2.msra.mxu0 0.0
        %2461 = vmatprep.subr.mxu0 0.0
        %2462 = vmatpush2.msra.mxu0 0.0
        %2463 = vmatprep.subr.mxu0 0.0
        %2464 = vmatpush2.msra.mxu0 0.0
        %2465 = vmatprep.subr.mxu0 0.0
        %2466 = vmatpush2.msra.mxu0 0.0
        %2467 = vmatprep.subr.mxu0 0.0
        %2468 = vmatpush2.msra.mxu0 0.0
        %2469 = vmatprep.subr.mxu0 0.0
        %2470 = vmatpush2.msra.mxu0 0.0
        %2471 = vmatprep.subr.mxu0 0.0
        %2472 = vmatpush2.msra.mxu0 0.0
        %2473 = vmatprep.subr.mxu0 0.0
        %2474 = vmatpush2.msra.mxu0 0.0
        %2475 = vmatprep.subr.mxu0 0.0
        %2476 = vmatpush2.msra.mxu0 0.0
        %2477 = vmatprep.subr.mxu0 0.0
        %2478 = vmatpush2.msra.mxu0 0.0
        %2479 = vmatprep.mubr.f32.mxu0 0.0
        %v2480 = vand.u32 %v1836, 4294901760
        %2481 = vmatmul.mubr.f32.gmra.mxu0 %v2480
        %v2482 = vpop.f32.mrf.mxu0
        %v2483 = vadd.f32 %v2344, %v2482
        %v2484 = vpop.f32.mrf.mxu0
        %2485 = vmatprep.mubr.f32.mxu0 0.0
        %v2486 = vand.u32 %v1839, 4294901760
        %2487 = vmatmul.mubr.f32.gmra.mxu0 %v2486
        %v2488 = vpop.f32.mrf.mxu0
        %v2489 = vadd.f32 %v2352, %v2488
        %v2490 = vpop.f32.mrf.mxu0
        %2491 = vmatprep.mubr.f32.mxu0 0.0
        %v2492 = vand.u32 %v1842, 4294901760
        %2493 = vmatmul.mubr.f32.gmra.mxu0 %v2492
        %v2494 = vpop.f32.mrf.mxu0
        %v2495 = vadd.f32 %v2360, %v2494
        %v2496 = vpop.f32.mrf.mxu0
        %2497 = vmatprep.mubr.f32.mxu0 0.0
        %v2498 = vand.u32 %v1845, 4294901760
        %2499 = vmatmul.mubr.f32.gmra.mxu0 %v2498
        %v2500 = vpop.f32.mrf.mxu0
        %v2501 = vadd.f32 %v2368, %v2500
        %v2502 = vpop.f32.mrf.mxu0
        %2503 = vmatprep.mubr.f32.mxu0 0.0
        %v2504 = vand.u32 %v1848, 4294901760
        %2505 = vmatmul.mubr.f32.gmra.mxu0 %v2504
        %v2506 = vpop.f32.mrf.mxu0
        %v2507 = vadd.f32 %v2376, %v2506
        %v2508 = vpop.f32.mrf.mxu0
        %2509 = vmatprep.mubr.f32.mxu0 0.0
        %v2510 = vand.u32 %v1851, 4294901760
        %2511 = vmatmul.mubr.f32.gmra.mxu0 %v2510
        %v2512 = vpop.f32.mrf.mxu0
        %v2513 = vadd.f32 %v2384, %v2512
        %v2514 = vpop.f32.mrf.mxu0
        %2515 = vmatprep.mubr.f32.mxu0 0.0
        %v2516 = vand.u32 %v1854, 4294901760
        %2517 = vmatmul.mubr.f32.gmra.mxu0 %v2516
        %v2518 = vpop.f32.mrf.mxu0
        %v2519 = vadd.f32 %v2392, %v2518
        %v2520 = vpop.f32.mrf.mxu0
        %2521 = vmatprep.mubr.f32.mxu0 0.0
        %v2522 = vand.u32 %v1857, 4294901760
        %2523 = vmatmul.mubr.f32.gmra.mxu0 %v2522
        %v2524 = vpop.f32.mrf.mxu0
        %v2525 = vadd.f32 %v2400, %v2524
        %v2526 = vpop.f32.mrf.mxu0
        %2527 = vdwg.mxu0
        %2528 = vmatprep.subr.mxu0 0.0
        %2529 = vmatpush1.msra.mxu0 0.0
        %2530 = vmatprep.subr.mxu0 0.0
        %2531 = vmatpush1.msra.mxu0 0.0
        %2532 = vmatprep.subr.mxu0 0.0
        %2533 = vmatpush1.msra.mxu0 0.0
        %2534 = vmatprep.subr.mxu0 0.0
        %2535 = vmatpush1.msra.mxu0 0.0
        %2536 = vmatprep.subr.mxu0 0.0
        %2537 = vmatpush1.msra.mxu0 0.0
        %2538 = vmatprep.subr.mxu0 0.0
        %2539 = vmatpush1.msra.mxu0 0.0
        %2540 = vmatprep.subr.mxu0 0.0
        %2541 = vmatpush1.msra.mxu0 0.0
        %2542 = vmatprep.subr.mxu0 0.0
        %2543 = vmatpush1.msra.mxu0 0.0
        %2544 = vmatprep.subr.mxu0 0.0
        %2545 = vmatpush1.msra.mxu0 0.0
        %2546 = vmatprep.subr.mxu0 0.0
        %2547 = vmatpush1.msra.mxu0 0.0
        %2548 = vmatprep.subr.mxu0 0.0
        %2549 = vmatpush1.msra.mxu0 0.0
        %2550 = vmatprep.subr.mxu0 0.0
        %2551 = vmatpush1.msra.mxu0 0.0
        %2552 = vmatprep.subr.mxu0 0.0
        %v2553 = vand.u32 %v1834, 4294901760
        %2554 = vmatpush1.msra.mxu0 %v2553
        %2555 = vmatprep.subr.mxu0 0.0
        %v2556 = vand.u32 %v1833, 4294901760
        %2557 = vmatpush1.msra.mxu0 %v2556
        %2558 = vmatprep.subr.mxu0 0.0
        %v2559 = vand.u32 %v1832, 4294901760
        %2560 = vmatpush1.msra.mxu0 %v2559
        %2561 = vmatprep.subr.mxu0 0.0
        %v2562 = vand.u32 %v1831, 4294901760
        %2563 = vmatpush1.msra.mxu0 %v2562
        %2564 = vmatprep.subr.mxu0 0.0
        %2565 = vmatpush2.msra.mxu0 0.0
        %2566 = vmatprep.subr.mxu0 0.0
        %2567 = vmatpush2.msra.mxu0 0.0
        %2568 = vmatprep.subr.mxu0 0.0
        %2569 = vmatpush2.msra.mxu0 0.0
        %2570 = vmatprep.subr.mxu0 0.0
        %2571 = vmatpush2.msra.mxu0 0.0
        %2572 = vmatprep.subr.mxu0 0.0
        %2573 = vmatpush2.msra.mxu0 0.0
        %2574 = vmatprep.subr.mxu0 0.0
        %2575 = vmatpush2.msra.mxu0 0.0
        %2576 = vmatprep.subr.mxu0 0.0
        %2577 = vmatpush2.msra.mxu0 0.0
        %2578 = vmatprep.subr.mxu0 0.0
        %2579 = vmatpush2.msra.mxu0 0.0
        %2580 = vmatprep.subr.mxu0 0.0
        %2581 = vmatpush2.msra.mxu0 0.0
        %2582 = vmatprep.subr.mxu0 0.0
        %2583 = vmatpush2.msra.mxu0 0.0
        %2584 = vmatprep.subr.mxu0 0.0
        %2585 = vmatpush2.msra.mxu0 0.0
        %2586 = vmatprep.subr.mxu0 0.0
        %2587 = vmatpush2.msra.mxu0 0.0
        %2588 = vmatprep.subr.mxu0 0.0
        %2589 = vmatpush2.msra.mxu0 0.0
        %2590 = vmatprep.subr.mxu0 0.0
        %2591 = vmatpush2.msra.mxu0 0.0
        %2592 = vmatprep.subr.mxu0 0.0
        %2593 = vmatpush2.msra.mxu0 0.0
        %2594 = vmatprep.subr.mxu0 0.0
        %2595 = vmatpush2.msra.mxu0 0.0
        %2596 = vmatprep.mubr.f32.mxu0 0.0
        %v2597 = vand.u32 %v1836, 4294901760
        %2598 = vmatmul.mubr.f32.gmra.mxu0 %v2597
        %v2599 = vpop.f32.mrf.mxu0
        %v2600 = vadd.f32 %v2483, %v2599
        %v2601 = vpop.f32.mrf.mxu0
        %2602 = vmatprep.mubr.f32.mxu0 0.0
        %v2603 = vand.u32 %v1839, 4294901760
        %2604 = vmatmul.mubr.f32.gmra.mxu0 %v2603
        %v2605 = vpop.f32.mrf.mxu0
        %v2606 = vadd.f32 %v2489, %v2605
        %v2607 = vpop.f32.mrf.mxu0
        %2608 = vmatprep.mubr.f32.mxu0 0.0
        %v2609 = vand.u32 %v1842, 4294901760
        %2610 = vmatmul.mubr.f32.gmra.mxu0 %v2609
        %v2611 = vpop.f32.mrf.mxu0
        %v2612 = vadd.f32 %v2495, %v2611
        %v2613 = vpop.f32.mrf.mxu0
        %2614 = vmatprep.mubr.f32.mxu0 0.0
        %v2615 = vand.u32 %v1845, 4294901760
        %2616 = vmatmul.mubr.f32.gmra.mxu0 %v2615
        %v2617 = vpop.f32.mrf.mxu0
        %v2618 = vadd.f32 %v2501, %v2617
        %v2619 = vpop.f32.mrf.mxu0
        %2620 = vmatprep.mubr.f32.mxu0 0.0
        %v2621 = vand.u32 %v1848, 4294901760
        %2622 = vmatmul.mubr.f32.gmra.mxu0 %v2621
        %v2623 = vpop.f32.mrf.mxu0
        %v2624 = vadd.f32 %v2507, %v2623
        %v2625 = vpop.f32.mrf.mxu0
        %2626 = vmatprep.mubr.f32.mxu0 0.0
        %v2627 = vand.u32 %v1851, 4294901760
        %2628 = vmatmul.mubr.f32.gmra.mxu0 %v2627
        %v2629 = vpop.f32.mrf.mxu0
        %v2630 = vadd.f32 %v2513, %v2629
        %v2631 = vpop.f32.mrf.mxu0
        %2632 = vmatprep.mubr.f32.mxu0 0.0
        %v2633 = vand.u32 %v1854, 4294901760
        %2634 = vmatmul.mubr.f32.gmra.mxu0 %v2633
        %v2635 = vpop.f32.mrf.mxu0
        %v2636 = vadd.f32 %v2519, %v2635
        %v2637 = vpop.f32.mrf.mxu0
        %2638 = vmatprep.mubr.f32.mxu0 0.0
        %v2639 = vand.u32 %v1857, 4294901760
        %2640 = vmatmul.mubr.f32.gmra.mxu0 %v2639
        %v2641 = vpop.f32.mrf.mxu0
        %v2642 = vadd.f32 %v2525, %v2641
        %v2643 = vpop.f32.mrf.mxu0
        %2644 = vdwg.mxu0
        %2653 = vrot.lane.b32.xlu0 %v2600, 32
        %v2654 = vpop.permute.xlu0 %2653
        %2655 = vrot.lane.b32.xlu0 %v2606, 32
        %v2656 = vpop.permute.xlu0 %2655
        %2657 = vrot.lane.b32.xlu0 %v2612, 32
        %v2658 = vpop.permute.xlu0 %2657
        %2659 = vrot.lane.b32.xlu0 %v2618, 32
        %v2660 = vpop.permute.xlu0 %2659
        %2661 = vrot.lane.b32.xlu0 %v2624, 32
        %v2662 = vpop.permute.xlu0 %2661
        %2663 = vrot.lane.b32.xlu0 %v2630, 32
        %v2664 = vpop.permute.xlu0 %2663
        %2665 = vrot.lane.b32.xlu0 %v2636, 32
        %v2666 = vpop.permute.xlu0 %2665
        %2667 = vrot.lane.b32.xlu0 %v2642, 32
        %v2668 = vpop.permute.xlu0 %2667
        %v2677 = vsel %vm1822, %v1029, %v2654
        %v2678 = vsel %vm1822, %v1035, %v2656
        %v2679 = vsel %vm1822, %v1041, %v2658
        %v2680 = vsel %vm1822, %v1047, %v2660
        %v2681 = vsel %vm1822, %v1053, %v2662
        %v2682 = vsel %vm1822, %v1059, %v2664
        %v2683 = vsel %vm1822, %v1065, %v2666
        %v2684 = vsel %vm1822, %v1071, %v2668
        %v2685 = vpack.c.bf16 %v2678, %v2677
        %v2686 = vpack.c.bf16 %v2680, %v2679
        %v2687 = vpack.c.bf16 %v2682, %v2681
        %v2688 = vpack.c.bf16 %v2684, %v2683
        %v2693 = vunpack.c.l.b16 %v2685
        %v2694 = vunpack.c.h.b16 %v2685
        %v2695 = vunpack.c.l.b16 %v2686
        %v2696 = vunpack.c.h.b16 %v2686
        %v2697 = vunpack.c.l.b16 %v2687
        %v2698 = vunpack.c.h.b16 %v2687
        %v2699 = vunpack.c.l.b16 %v2688
        %v2700 = vunpack.c.h.b16 %v2688
        %v2701 = vpack.c.b16 %v2693, %v2693
        %v2702 = vpack.c.b16 %v2694, %v2694
        %v2703 = vpack.c.b16 %v2695, %v2695
        %v2704 = vpack.c.b16 %v2696, %v2696
        %v2705 = vpack.c.b16 %v2697, %v2697
        %v2706 = vpack.c.b16 %v2698, %v2698
        %v2707 = vpack.c.b16 %v2699, %v2699
        %v2708 = vpack.c.b16 %v2700, %v2700
        %vm2717 = vcmask 273408
        %2718 = vst.msk [vmem:[#allocation2] sm:$0xf] %vm2717, %v2701
        %2719 = vst.msk [vmem:[#allocation2 + $0x4] sm:$0xf] %vm2717, %v2702
        %2720 = vst.msk [vmem:[#allocation2 + $0x8] sm:$0xf] %vm2717, %v2703
        %2721 = vst.msk [vmem:[#allocation2 + $0xc] sm:$0xf] %vm2717, %v2704
        %2722 = vst.msk [vmem:[#allocation2 + $0x10] sm:$0xf] %vm2717, %v2705
        %2723 = vst.msk [vmem:[#allocation2 + $0x14] sm:$0xf] %vm2717, %v2706
        %2724 = vst.msk [vmem:[#allocation2 + $0x18] sm:$0xf] %vm2717, %v2707
        %2725 = vst.msk [vmem:[#allocation2 + $0x1c] sm:$0xf] %vm2717, %v2708
        %v2726 = vpack.c.bf16 %v2606, %v2600
        %v2727 = vpack.c.bf16 %v2618, %v2612
        %v2728 = vpack.c.bf16 %v2630, %v2624
        %v2729 = vpack.c.bf16 %v2642, %v2636
        %v2734 = vunpack.c.l.b16 %v2726
        %v2735 = vunpack.c.h.b16 %v2726
        %v2736 = vunpack.c.l.b16 %v2727
        %v2737 = vunpack.c.h.b16 %v2727
        %v2738 = vunpack.c.l.b16 %v2728
        %v2739 = vunpack.c.h.b16 %v2728
        %v2740 = vunpack.c.l.b16 %v2729
        %v2741 = vunpack.c.h.b16 %v2729
        %v2742 = vpack.c.b16 %v2734, %v2734
        %v2743 = vpack.c.b16 %v2735, %v2735
        %v2744 = vpack.c.b16 %v2736, %v2736
        %v2745 = vpack.c.b16 %v2737, %v2737
        %v2746 = vpack.c.b16 %v2738, %v2738
        %v2747 = vpack.c.b16 %v2739, %v2739
        %v2748 = vpack.c.b16 %v2740, %v2740
        %v2749 = vpack.c.b16 %v2741, %v2741
        %2750 = vrot.lane.b32.xlu0 %v2742, 126
        %v2751 = vpop.permute.xlu0 %2750
        %2752 = vrot.lane.b32.xlu0 %v2743, 126
        %v2753 = vpop.permute.xlu0 %2752
        %2754 = vrot.lane.b32.xlu0 %v2744, 126
        %v2755 = vpop.permute.xlu0 %2754
        %2756 = vrot.lane.b32.xlu0 %v2745, 126
        %v2757 = vpop.permute.xlu0 %2756
        %2758 = vrot.lane.b32.xlu0 %v2746, 126
        %v2759 = vpop.permute.xlu0 %2758
        %2760 = vrot.lane.b32.xlu0 %v2747, 126
        %v2761 = vpop.permute.xlu0 %2760
        %2762 = vrot.lane.b32.xlu0 %v2748, 126
        %v2763 = vpop.permute.xlu0 %2762
        %2764 = vrot.lane.b32.xlu0 %v2749, 126
        %v2765 = vpop.permute.xlu0 %2764
        %vm2774 = vcmask 11264
        %2775 = vst.msk [vmem:[#allocation3] sm:$0xf] %vm2774, %v2751
        %2776 = vst.msk [vmem:[#allocation3 + $0x4] sm:$0xf] %vm2774, %v2753
        %2777 = vst.msk [vmem:[#allocation3 + $0x8] sm:$0xf] %vm2774, %v2755
        %2778 = vst.msk [vmem:[#allocation3 + $0xc] sm:$0xf] %vm2774, %v2757
        %2779 = vst.msk [vmem:[#allocation3 + $0x10] sm:$0xf] %vm2774, %v2759
        %2780 = vst.msk [vmem:[#allocation3 + $0x14] sm:$0xf] %vm2774, %v2761
        %2781 = vst.msk [vmem:[#allocation3 + $0x18] sm:$0xf] %vm2774, %v2763
        %2782 = vst.msk [vmem:[#allocation3 + $0x1c] sm:$0xf] %vm2774, %v2765
        %vm2783 = vcmask 277504
        %2784 = vst.msk [vmem:[#allocation5] sm:$0xff] %vm2783, 0.0
        %2785 = vst.msk [vmem:[#allocation5 + $0x8] sm:$0xff] %vm2783, 0.0
        %2786 = vst.msk [vmem:[#allocation5 + $0x10] sm:$0xff] %vm2783, 0.0
        %2787 = vst.msk [vmem:[#allocation5 + $0x18] sm:$0xff] %vm2783, 0.0
        %2788 = vst.msk [vmem:[#allocation5 + $0x20] sm:$0xff] %vm2783, 0.0
        %2789 = vst.msk [vmem:[#allocation5 + $0x28] sm:$0xff] %vm2783, 0.0
        %2790 = vst.msk [vmem:[#allocation5 + $0x30] sm:$0xff] %vm2783, 0.0
        %2791 = vst.msk [vmem:[#allocation5 + $0x38] sm:$0xff] %vm2783, 0.0
      $region52: #{tpu_custom_call.1} parent=47 // pred_fallthru
        _
      %v2792 = vld [vmem:[%s280] sm:$0xf]
      %v2793 = vld [vmem:[%s280 + $0x4] sm:$0xf]
      %v2794 = vld [vmem:[%s280 + $0x8] sm:$0xf]
      %v2795 = vld [vmem:[%s280 + $0xc] sm:$0xf]
      %v2796 = vld [vmem:[%s280 + $0x10] sm:$0xf]
      %v2797 = vld [vmem:[%s280 + $0x14] sm:$0xf]
      %v2798 = vld [vmem:[%s280 + $0x18] sm:$0xf]
      %v2799 = vld [vmem:[%s280 + $0x1c] sm:$0xf]
      %v2800 = vld [vmem:[%s280 + $0x20] sm:$0xf]
      %v2801 = vld [vmem:[%s280 + $0x24] sm:$0xf]
      %v2802 = vld [vmem:[%s280 + $0x28] sm:$0xf]
      %v2803 = vld [vmem:[%s280 + $0x2c] sm:$0xf]
      %v2804 = vld [vmem:[%s280 + $0x30] sm:$0xf]
      %v2805 = vld [vmem:[%s280 + $0x34] sm:$0xf]
      %v2806 = vld [vmem:[%s280 + $0x38] sm:$0xf]
      %v2807 = vld [vmem:[%s280 + $0x3c] sm:$0xf]
      %v2808 = vld [vmem:[%s286] sm:$0xf]
      %v2809 = vld [vmem:[%s286 + $0x4] sm:$0xf]
      %v2810 = vld [vmem:[%s286 + $0x8] sm:$0xf]
      %v2811 = vld [vmem:[%s286 + $0xc] sm:$0xf]
      %v2812 = vld [vmem:[%s286 + $0x10] sm:$0xf]
      %v2813 = vld [vmem:[%s286 + $0x14] sm:$0xf]
      %v2814 = vld [vmem:[%s286 + $0x18] sm:$0xf]
      %v2815 = vld [vmem:[%s286 + $0x1c] sm:$0xf]
      %v2816 = vld [vmem:[%s286 + $0x20] sm:$0xf]
      %v2817 = vld [vmem:[%s286 + $0x24] sm:$0xf]
      %v2818 = vld [vmem:[%s286 + $0x28] sm:$0xf]
      %v2819 = vld [vmem:[%s286 + $0x2c] sm:$0xf]
      %v2820 = vld [vmem:[%s286 + $0x30] sm:$0xf]
      %v2821 = vld [vmem:[%s286 + $0x34] sm:$0xf]
      %v2822 = vld [vmem:[%s286 + $0x38] sm:$0xf]
      %v2823 = vld [vmem:[%s286 + $0x3c] sm:$0xf]
      %v2824 = vld [vmem:[#allocation2] sm:$0xf]
      %v2825 = vld [vmem:[#allocation2 + $0x4] sm:$0xf]
      %v2826 = vld [vmem:[#allocation2 + $0x8] sm:$0xf]
      %v2827 = vld [vmem:[#allocation2 + $0xc] sm:$0xf]
      %v2828 = vld [vmem:[#allocation2 + $0x10] sm:$0xf]
      %v2829 = vld [vmem:[#allocation2 + $0x14] sm:$0xf]
      %v2830 = vld [vmem:[#allocation2 + $0x18] sm:$0xf]
      %v2831 = vld [vmem:[#allocation2 + $0x1c] sm:$0xf]
      %v2848 = vunpack.c.l.b16 %v2792
      %v2849 = vunpack.c.l.b16 %v2793
      %v2850 = vunpack.c.l.b16 %v2794
      %v2851 = vunpack.c.l.b16 %v2795
      %v2852 = vunpack.c.l.b16 %v2796
      %v2853 = vunpack.c.l.b16 %v2797
      %v2854 = vunpack.c.l.b16 %v2798
      %v2855 = vunpack.c.l.b16 %v2799
      %v2856 = vunpack.c.l.b16 %v2800
      %v2857 = vunpack.c.l.b16 %v2801
      %v2858 = vunpack.c.l.b16 %v2802
      %v2859 = vunpack.c.l.b16 %v2803
      %v2860 = vunpack.c.l.b16 %v2804
      %v2861 = vunpack.c.l.b16 %v2805
      %v2862 = vunpack.c.l.b16 %v2806
      %v2863 = vunpack.c.l.b16 %v2807
      %v2864 = vpack.c.b16 %v2849, %v2848
      %v2865 = vpack.c.b16 %v2851, %v2850
      %v2866 = vpack.c.b16 %v2853, %v2852
      %v2867 = vpack.c.b16 %v2855, %v2854
      %v2868 = vpack.c.b16 %v2857, %v2856
      %v2869 = vpack.c.b16 %v2859, %v2858
      %v2870 = vpack.c.b16 %v2861, %v2860
      %v2871 = vpack.c.b16 %v2863, %v2862
      %v2880 = vunpack.c.l.b16 %v2824
      %v2881 = vunpack.c.l.b16 %v2825
      %v2882 = vunpack.c.l.b16 %v2826
      %v2883 = vunpack.c.l.b16 %v2827
      %v2884 = vunpack.c.l.b16 %v2828
      %v2885 = vunpack.c.l.b16 %v2829
      %v2886 = vunpack.c.l.b16 %v2830
      %v2887 = vunpack.c.l.b16 %v2831
      %v2888 = vpack.c.b16 %v2881, %v2880
      %v2889 = vpack.c.b16 %v2883, %v2882
      %v2890 = vpack.c.b16 %v2885, %v2884
      %v2891 = vpack.c.b16 %v2887, %v2886
      %vm2896 = vcmask 523264
      %v2898 = vsel %vm2896, %v2864, 0
      %v2901 = vsel %vm2896, %v2865, 0
      %v2904 = vsel %vm2896, %v2866, 0
      %v2907 = vsel %vm2896, %v2867, 0
      %v2910 = vsel %vm2896, %v2868, 0
      %v2913 = vsel %vm2896, %v2869, 0
      %v2916 = vsel %vm2896, %v2870, 0
      %v2919 = vsel %vm2896, %v2871, 0
      %2921 = vmatprep.subr.bf16.mxu0 0
      %2922 = vmatpush1.bf16.msra.mxu0 0
      %2923 = vmatprep.subr.bf16.mxu0 0
      %2924 = vmatpush1.bf16.msra.mxu0 0
      %2925 = vmatprep.subr.bf16.mxu0 0
      %2926 = vmatpush1.bf16.msra.mxu0 0
      %2927 = vmatprep.subr.bf16.mxu0 0
      %2928 = vmatpush1.bf16.msra.mxu0 0
      %2929 = vmatprep.subr.bf16.mxu0 0
      %2930 = vmatpush1.bf16.msra.mxu0 %v2891
      %2931 = vmatprep.subr.bf16.mxu0 0
      %2932 = vmatpush1.bf16.msra.mxu0 %v2890
      %2933 = vmatprep.subr.bf16.mxu0 0
      %2934 = vmatpush1.bf16.msra.mxu0 %v2889
      %2935 = vmatprep.subr.bf16.mxu0 0
      %2936 = vmatpush1.bf16.msra.mxu0 %v2888
      %2937 = vmatprep.subr.bf16.mxu0 0
      %2938 = vmatpush2.bf16.msra.mxu0 0
      %2939 = vmatprep.subr.bf16.mxu0 0
      %2940 = vmatpush2.bf16.msra.mxu0 0
      %2941 = vmatprep.subr.bf16.mxu0 0
      %2942 = vmatpush2.bf16.msra.mxu0 0
      %2943 = vmatprep.subr.bf16.mxu0 0
      %2944 = vmatpush2.bf16.msra.mxu0 0
      %2945 = vmatprep.subr.bf16.mxu0 0
      %2946 = vmatpush2.bf16.msra.mxu0 0
      %2947 = vmatprep.subr.bf16.mxu0 0
      %2948 = vmatpush2.bf16.msra.mxu0 0
      %2949 = vmatprep.subr.bf16.mxu0 0
      %2950 = vmatpush2.bf16.msra.mxu0 0
      %2951 = vmatprep.subr.bf16.mxu0 0
      %2952 = vmatpush2.bf16.msra.mxu0 0
      %2953 = vmatprep.mubr.bf16.mxu0 0
      %2954 = vmatmul.mubr.bf16.gmra.mxu0 %v2898
      %v2955 = vpop.f32.mrf.mxu0
      %v2956 = vadd.f32 0.0, %v2955
      %v2957 = vpop.f32.mrf.mxu0
      %v2958 = vpop.f32.mrf.mxu0
      %v2959 = vadd.f32 0.0, %v2958
      %v2960 = vpop.f32.mrf.mxu0
      %2961 = vmatprep.mubr.bf16.mxu0 0
      %2962 = vmatmul.mubr.bf16.gmra.mxu0 %v2901
      %v2963 = vpop.f32.mrf.mxu0
      %v2964 = vadd.f32 0.0, %v2963
      %v2965 = vpop.f32.mrf.mxu0
      %v2966 = vpop.f32.mrf.mxu0
      %v2967 = vadd.f32 0.0, %v2966
      %v2968 = vpop.f32.mrf.mxu0
      %2969 = vmatprep.mubr.bf16.mxu0 0
      %2970 = vmatmul.mubr.bf16.gmra.mxu0 %v2904
      %v2971 = vpop.f32.mrf.mxu0
      %v2972 = vadd.f32 0.0, %v2971
      %v2973 = vpop.f32.mrf.mxu0
      %v2974 = vpop.f32.mrf.mxu0
      %v2975 = vadd.f32 0.0, %v2974
      %v2976 = vpop.f32.mrf.mxu0
      %2977 = vmatprep.mubr.bf16.mxu0 0
      %2978 = vmatmul.mubr.bf16.gmra.mxu0 %v2907
      %v2979 = vpop.f32.mrf.mxu0
      %v2980 = vadd.f32 0.0, %v2979
      %v2981 = vpop.f32.mrf.mxu0
      %v2982 = vpop.f32.mrf.mxu0
      %v2983 = vadd.f32 0.0, %v2982
      %v2984 = vpop.f32.mrf.mxu0
      %2985 = vmatprep.mubr.bf16.mxu0 0
      %2986 = vmatmul.mubr.bf16.gmra.mxu0 %v2910
      %v2987 = vpop.f32.mrf.mxu0
      %v2988 = vadd.f32 0.0, %v2987
      %v2989 = vpop.f32.mrf.mxu0
      %v2990 = vpop.f32.mrf.mxu0
      %v2991 = vadd.f32 0.0, %v2990
      %v2992 = vpop.f32.mrf.mxu0
      %2993 = vmatprep.mubr.bf16.mxu0 0
      %2994 = vmatmul.mubr.bf16.gmra.mxu0 %v2913
      %v2995 = vpop.f32.mrf.mxu0
      %v2996 = vadd.f32 0.0, %v2995
      %v2997 = vpop.f32.mrf.mxu0
      %v2998 = vpop.f32.mrf.mxu0
      %v2999 = vadd.f32 0.0, %v2998
      %v3000 = vpop.f32.mrf.mxu0
      %3001 = vmatprep.mubr.bf16.mxu0 0
      %3002 = vmatmul.mubr.bf16.gmra.mxu0 %v2916
      %v3003 = vpop.f32.mrf.mxu0
      %v3004 = vadd.f32 0.0, %v3003
      %v3005 = vpop.f32.mrf.mxu0
      %v3006 = vpop.f32.mrf.mxu0
      %v3007 = vadd.f32 0.0, %v3006
      %v3008 = vpop.f32.mrf.mxu0
      %3009 = vmatprep.mubr.bf16.mxu0 0
      %3010 = vmatmul.mubr.bf16.gmra.mxu0 %v2919
      %v3011 = vpop.f32.mrf.mxu0
      %v3012 = vadd.f32 0.0, %v3011
      %v3013 = vpop.f32.mrf.mxu0
      %v3014 = vpop.f32.mrf.mxu0
      %v3015 = vadd.f32 0.0, %v3014
      %v3016 = vpop.f32.mrf.mxu0
      %3017 = vdwg.mxu0
      %v3018 = vld [vmem:[#allocation3] sm:$0xf]
      %v3019 = vld [vmem:[#allocation3 + $0x4] sm:$0xf]
      %v3020 = vld [vmem:[#allocation3 + $0x8] sm:$0xf]
      %v3021 = vld [vmem:[#allocation3 + $0xc] sm:$0xf]
      %v3022 = vld [vmem:[#allocation3 + $0x10] sm:$0xf]
      %v3023 = vld [vmem:[#allocation3 + $0x14] sm:$0xf]
      %v3024 = vld [vmem:[#allocation3 + $0x18] sm:$0xf]
      %v3025 = vld [vmem:[#allocation3 + $0x1c] sm:$0xf]
      %v3042 = vunpack.c.l.b16 %v2808
      %v3043 = vunpack.c.l.b16 %v2809
      %v3044 = vunpack.c.l.b16 %v2810
      %v3045 = vunpack.c.l.b16 %v2811
      %v3046 = vunpack.c.l.b16 %v2812
      %v3047 = vunpack.c.l.b16 %v2813
      %v3048 = vunpack.c.l.b16 %v2814
      %v3049 = vunpack.c.l.b16 %v2815
      %v3050 = vunpack.c.l.b16 %v2816
      %v3051 = vunpack.c.l.b16 %v2817
      %v3052 = vunpack.c.l.b16 %v2818
      %v3053 = vunpack.c.l.b16 %v2819
      %v3054 = vunpack.c.l.b16 %v2820
      %v3055 = vunpack.c.l.b16 %v2821
      %v3056 = vunpack.c.l.b16 %v2822
      %v3057 = vunpack.c.l.b16 %v2823
      %v3058 = vpack.c.b16 %v3043, %v3042
      %v3059 = vpack.c.b16 %v3045, %v3044
      %v3060 = vpack.c.b16 %v3047, %v3046
      %v3061 = vpack.c.b16 %v3049, %v3048
      %v3062 = vpack.c.b16 %v3051, %v3050
      %v3063 = vpack.c.b16 %v3053, %v3052
      %v3064 = vpack.c.b16 %v3055, %v3054
      %v3065 = vpack.c.b16 %v3057, %v3056
      %v3074 = vunpack.c.l.b16 %v3018
      %v3075 = vunpack.c.l.b16 %v3019
      %v3076 = vunpack.c.l.b16 %v3020
      %v3077 = vunpack.c.l.b16 %v3021
      %v3078 = vunpack.c.l.b16 %v3022
      %v3079 = vunpack.c.l.b16 %v3023
      %v3080 = vunpack.c.l.b16 %v3024
      %v3081 = vunpack.c.l.b16 %v3025
      %v3082 = vpack.c.b16 %v3075, %v3074
      %v3083 = vpack.c.b16 %v3077, %v3076
      %v3084 = vpack.c.b16 %v3079, %v3078
      %v3085 = vpack.c.b16 %v3081, %v3080
      %v3091 = vsel %vm2896, %v3058, 0
      %v3094 = vsel %vm2896, %v3059, 0
      %v3097 = vsel %vm2896, %v3060, 0
      %v3100 = vsel %vm2896, %v3061, 0
      %v3103 = vsel %vm2896, %v3062, 0
      %v3106 = vsel %vm2896, %v3063, 0
      %v3109 = vsel %vm2896, %v3064, 0
      %v3112 = vsel %vm2896, %v3065, 0
      %3114 = vmatprep.subr.bf16.mxu0 0
      %3115 = vmatpush1.bf16.msra.mxu0 0
      %3116 = vmatprep.subr.bf16.mxu0 0
      %3117 = vmatpush1.bf16.msra.mxu0 0
      %3118 = vmatprep.subr.bf16.mxu0 0
      %3119 = vmatpush1.bf16.msra.mxu0 0
      %3120 = vmatprep.subr.bf16.mxu0 0
      %3121 = vmatpush1.bf16.msra.mxu0 0
      %3122 = vmatprep.subr.bf16.mxu0 0
      %3123 = vmatpush1.bf16.msra.mxu0 %v3085
      %3124 = vmatprep.subr.bf16.mxu0 0
      %3125 = vmatpush1.bf16.msra.mxu0 %v3084
      %3126 = vmatprep.subr.bf16.mxu0 0
      %3127 = vmatpush1.bf16.msra.mxu0 %v3083
      %3128 = vmatprep.subr.bf16.mxu0 0
      %3129 = vmatpush1.bf16.msra.mxu0 %v3082
      %3130 = vmatprep.subr.bf16.mxu0 0
      %3131 = vmatpush2.bf16.msra.mxu0 0
      %3132 = vmatprep.subr.bf16.mxu0 0
      %3133 = vmatpush2.bf16.msra.mxu0 0
      %3134 = vmatprep.subr.bf16.mxu0 0
      %3135 = vmatpush2.bf16.msra.mxu0 0
      %3136 = vmatprep.subr.bf16.mxu0 0
      %3137 = vmatpush2.bf16.msra.mxu0 0
      %3138 = vmatprep.subr.bf16.mxu0 0
      %3139 = vmatpush2.bf16.msra.mxu0 0
      %3140 = vmatprep.subr.bf16.mxu0 0
      %3141 = vmatpush2.bf16.msra.mxu0 0
      %3142 = vmatprep.subr.bf16.mxu0 0
      %3143 = vmatpush2.bf16.msra.mxu0 0
      %3144 = vmatprep.subr.bf16.mxu0 0
      %3145 = vmatpush2.bf16.msra.mxu0 0
      %3146 = vmatprep.mubr.bf16.mxu0 0
      %3147 = vmatmul.mubr.bf16.gmra.mxu0 %v3091
      %v3148 = vpop.f32.mrf.mxu0
      %v3149 = vadd.f32 0.0, %v3148
      %v3150 = vpop.f32.mrf.mxu0
      %v3151 = vpop.f32.mrf.mxu0
      %v3152 = vadd.f32 0.0, %v3151
      %v3153 = vpop.f32.mrf.mxu0
      %3154 = vmatprep.mubr.bf16.mxu0 0
      %3155 = vmatmul.mubr.bf16.gmra.mxu0 %v3094
      %v3156 = vpop.f32.mrf.mxu0
      %v3157 = vadd.f32 0.0, %v3156
      %v3158 = vpop.f32.mrf.mxu0
      %v3159 = vpop.f32.mrf.mxu0
      %v3160 = vadd.f32 0.0, %v3159
      %v3161 = vpop.f32.mrf.mxu0
      %3162 = vmatprep.mubr.bf16.mxu0 0
      %3163 = vmatmul.mubr.bf16.gmra.mxu0 %v3097
      %v3164 = vpop.f32.mrf.mxu0
      %v3165 = vadd.f32 0.0, %v3164
      %v3166 = vpop.f32.mrf.mxu0
      %v3167 = vpop.f32.mrf.mxu0
      %v3168 = vadd.f32 0.0, %v3167
      %v3169 = vpop.f32.mrf.mxu0
      %3170 = vmatprep.mubr.bf16.mxu0 0
      %3171 = vmatmul.mubr.bf16.gmra.mxu0 %v3100
      %v3172 = vpop.f32.mrf.mxu0
      %v3173 = vadd.f32 0.0, %v3172
      %v3174 = vpop.f32.mrf.mxu0
      %v3175 = vpop.f32.mrf.mxu0
      %v3176 = vadd.f32 0.0, %v3175
      %v3177 = vpop.f32.mrf.mxu0
      %3178 = vmatprep.mubr.bf16.mxu0 0
      %3179 = vmatmul.mubr.bf16.gmra.mxu0 %v3103
      %v3180 = vpop.f32.mrf.mxu0
      %v3181 = vadd.f32 0.0, %v3180
      %v3182 = vpop.f32.mrf.mxu0
      %v3183 = vpop.f32.mrf.mxu0
      %v3184 = vadd.f32 0.0, %v3183
      %v3185 = vpop.f32.mrf.mxu0
      %3186 = vmatprep.mubr.bf16.mxu0 0
      %3187 = vmatmul.mubr.bf16.gmra.mxu0 %v3106
      %v3188 = vpop.f32.mrf.mxu0
      %v3189 = vadd.f32 0.0, %v3188
      %v3190 = vpop.f32.mrf.mxu0
      %v3191 = vpop.f32.mrf.mxu0
      %v3192 = vadd.f32 0.0, %v3191
      %v3193 = vpop.f32.mrf.mxu0
      %3194 = vmatprep.mubr.bf16.mxu0 0
      %3195 = vmatmul.mubr.bf16.gmra.mxu0 %v3109
      %v3196 = vpop.f32.mrf.mxu0
      %v3197 = vadd.f32 0.0, %v3196
      %v3198 = vpop.f32.mrf.mxu0
      %v3199 = vpop.f32.mrf.mxu0
      %v3200 = vadd.f32 0.0, %v3199
      %v3201 = vpop.f32.mrf.mxu0
      %3202 = vmatprep.mubr.bf16.mxu0 0
      %3203 = vmatmul.mubr.bf16.gmra.mxu0 %v3112
      %v3204 = vpop.f32.mrf.mxu0
      %v3205 = vadd.f32 0.0, %v3204
      %v3206 = vpop.f32.mrf.mxu0
      %v3207 = vpop.f32.mrf.mxu0
      %v3208 = vadd.f32 0.0, %v3207
      %v3209 = vpop.f32.mrf.mxu0
      %3210 = vdwg.mxu0
      %3227 = vrot.lane.b32.xlu0 %v3149, 32
      %v3228 = vpop.permute.xlu0 %3227
      %3229 = vrot.lane.b32.xlu0 %v3152, 32
      %v3230 = vpop.permute.xlu0 %3229
      %3231 = vrot.lane.b32.xlu0 %v3157, 32
      %v3232 = vpop.permute.xlu0 %3231
      %3233 = vrot.lane.b32.xlu0 %v3160, 32
      %v3234 = vpop.permute.xlu0 %3233
      %3235 = vrot.lane.b32.xlu0 %v3165, 32
      %v3236 = vpop.permute.xlu0 %3235
      %3237 = vrot.lane.b32.xlu0 %v3168, 32
      %v3238 = vpop.permute.xlu0 %3237
      %3239 = vrot.lane.b32.xlu0 %v3173, 32
      %v3240 = vpop.permute.xlu0 %3239
      %3241 = vrot.lane.b32.xlu0 %v3176, 32
      %v3242 = vpop.permute.xlu0 %3241
      %3243 = vrot.lane.b32.xlu0 %v3181, 32
      %v3244 = vpop.permute.xlu0 %3243
      %3245 = vrot.lane.b32.xlu0 %v3184, 32
      %v3246 = vpop.permute.xlu0 %3245
      %3247 = vrot.lane.b32.xlu0 %v3189, 32
      %v3248 = vpop.permute.xlu0 %3247
      %3249 = vrot.lane.b32.xlu0 %v3192, 32
      %v3250 = vpop.permute.xlu0 %3249
      %3251 = vrot.lane.b32.xlu0 %v3197, 32
      %v3252 = vpop.permute.xlu0 %3251
      %3253 = vrot.lane.b32.xlu0 %v3200, 32
      %v3254 = vpop.permute.xlu0 %3253
      %3255 = vrot.lane.b32.xlu0 %v3205, 32
      %v3256 = vpop.permute.xlu0 %3255
      %3257 = vrot.lane.b32.xlu0 %v3208, 32
      %v3258 = vpop.permute.xlu0 %3257
      %v3275 = vadd.f32 %v2956, %v3228
      %v3276 = vadd.f32 %v2959, %v3230
      %v3277 = vadd.f32 %v2964, %v3232
      %v3278 = vadd.f32 %v2967, %v3234
      %v3279 = vadd.f32 %v2972, %v3236
      %v3280 = vadd.f32 %v2975, %v3238
      %v3281 = vadd.f32 %v2980, %v3240
      %v3282 = vadd.f32 %v2983, %v3242
      %v3283 = vadd.f32 %v2988, %v3244
      %v3284 = vadd.f32 %v2991, %v3246
      %v3285 = vadd.f32 %v2996, %v3248
      %v3286 = vadd.f32 %v2999, %v3250
      %v3287 = vadd.f32 %v3004, %v3252
      %v3288 = vadd.f32 %v3007, %v3254
      %v3289 = vadd.f32 %v3012, %v3256
      %v3290 = vadd.f32 %v3015, %v3258
      %vm3291 = vcmp.ge.f32.partialorder %v3275, 0.0
      %vm3292 = vcmp.ge.f32.partialorder %v3276, 0.0
      %vm3293 = vcmp.ge.f32.partialorder %v3277, 0.0
      %vm3294 = vcmp.ge.f32.partialorder %v3278, 0.0
      %vm3295 = vcmp.ge.f32.partialorder %v3279, 0.0
      %vm3296 = vcmp.ge.f32.partialorder %v3280, 0.0
      %vm3297 = vcmp.ge.f32.partialorder %v3281, 0.0
      %vm3298 = vcmp.ge.f32.partialorder %v3282, 0.0
      %vm3299 = vcmp.ge.f32.partialorder %v3283, 0.0
      %vm3300 = vcmp.ge.f32.partialorder %v3284, 0.0
      %vm3301 = vcmp.ge.f32.partialorder %v3285, 0.0
      %vm3302 = vcmp.ge.f32.partialorder %v3286, 0.0
      %vm3303 = vcmp.ge.f32.partialorder %v3287, 0.0
      %vm3304 = vcmp.ge.f32.partialorder %v3288, 0.0
      %vm3305 = vcmp.ge.f32.partialorder %v3289, 0.0
      %vm3306 = vcmp.ge.f32.partialorder %v3290, 0.0
      %v3307 = vmul.f32 %v3275, 0.2
      %v3308 = vmul.f32 %v3276, 0.2
      %v3309 = vmul.f32 %v3277, 0.2
      %v3310 = vmul.f32 %v3278, 0.2
      %v3311 = vmul.f32 %v3279, 0.2
      %v3312 = vmul.f32 %v3280, 0.2
      %v3313 = vmul.f32 %v3281, 0.2
      %v3314 = vmul.f32 %v3282, 0.2
      %v3315 = vmul.f32 %v3283, 0.2
      %v3316 = vmul.f32 %v3284, 0.2
      %v3317 = vmul.f32 %v3285, 0.2
      %v3318 = vmul.f32 %v3286, 0.2
      %v3319 = vmul.f32 %v3287, 0.2
      %v3320 = vmul.f32 %v3288, 0.2
      %v3321 = vmul.f32 %v3289, 0.2
      %v3322 = vmul.f32 %v3290, 0.2
      %v3323 = vsel %vm3291, %v3275, %v3307
      %v3324 = vsel %vm3292, %v3276, %v3308
      %v3325 = vsel %vm3293, %v3277, %v3309
      %v3326 = vsel %vm3294, %v3278, %v3310
      %v3327 = vsel %vm3295, %v3279, %v3311
      %v3328 = vsel %vm3296, %v3280, %v3312
      %v3329 = vsel %vm3297, %v3281, %v3313
      %v3330 = vsel %vm3298, %v3282, %v3314
      %v3331 = vsel %vm3299, %v3283, %v3315
      %v3332 = vsel %vm3300, %v3284, %v3316
      %v3333 = vsel %vm3301, %v3285, %v3317
      %v3334 = vsel %vm3302, %v3286, %v3318
      %v3335 = vsel %vm3303, %v3287, %v3319
      %v3336 = vsel %vm3304, %v3288, %v3320
      %v3337 = vsel %vm3305, %v3289, %v3321
      %v3338 = vsel %vm3306, %v3290, %v3322
      %v3339 = vunpack.c.l.bf16 %v2824
      %v3340 = vunpack.c.l.bf16 %v2825
      %v3341 = vunpack.c.l.bf16 %v2826
      %v3342 = vunpack.c.l.bf16 %v2827
      %v3343 = vunpack.c.l.bf16 %v2828
      %v3344 = vunpack.c.l.bf16 %v2829
      %v3345 = vunpack.c.l.bf16 %v2830
      %v3346 = vunpack.c.l.bf16 %v2831
      %v3347 = vunpack.c.l.bf16 %v3018
      %v3348 = vunpack.c.l.bf16 %v3019
      %v3349 = vunpack.c.l.bf16 %v3020
      %v3350 = vunpack.c.l.bf16 %v3021
      %v3351 = vunpack.c.l.bf16 %v3022
      %v3352 = vunpack.c.l.bf16 %v3023
      %v3353 = vunpack.c.l.bf16 %v3024
      %v3354 = vunpack.c.l.bf16 %v3025
      %vm3355 = vcmask 277760
      %v3356 = vsel %vm3355, %v3339, -inf
      %v3357 = vsel %vm3355, %v3340, -inf
      %v3358 = vsel %vm3355, %v3341, -inf
      %v3359 = vsel %vm3355, %v3342, -inf
      %v3360 = vsel %vm3355, %v3343, -inf
      %v3361 = vmax.f32 %v3356, %v3360
      %v3362 = vsel %vm3355, %v3344, -inf
      %v3363 = vmax.f32 %v3357, %v3362
      %v3364 = vsel %vm3355, %v3345, -inf
      %v3365 = vmax.f32 %v3358, %v3364
      %v3366 = vsel %vm3355, %v3346, -inf
      %v3367 = vmax.f32 %v3359, %v3366
      %v3368 = vmax.f32 %v3361, %v3363
      %v3369 = vmax.f32 %v3365, %v3367
      %v3370 = vmax.f32 %v3368, %v3369
      %v3371 = vrot.slane %v3370, 4
      %v3372 = vmax.f32 %v3370, %v3371
      %v3373 = vrot.slane %v3372, 2
      %v3374 = vmax.f32 %v3372, %v3373
      %v3375 = vrot.slane %v3374, 1
      %v3376 = vmax.f32 %v3374, %v3375
      %vm3377 = vcmask 15360
      %v3378 = vsel %vm3377, %v3347, -inf
      %v3379 = vsel %vm3377, %v3348, -inf
      %v3380 = vsel %vm3377, %v3349, -inf
      %v3381 = vsel %vm3377, %v3350, -inf
      %v3382 = vsel %vm3377, %v3351, -inf
      %v3383 = vmax.f32 %v3378, %v3382
      %v3384 = vsel %vm3377, %v3352, -inf
      %v3385 = vmax.f32 %v3379, %v3384
      %v3386 = vsel %vm3377, %v3353, -inf
      %v3387 = vmax.f32 %v3380, %v3386
      %v3388 = vsel %vm3377, %v3354, -inf
      %v3389 = vmax.f32 %v3381, %v3388
      %v3390 = vmax.f32 %v3383, %v3385
      %v3391 = vmax.f32 %v3387, %v3389
      %v3392 = vmax.f32 %v3390, %v3391
      %v3393 = vrot.slane %v3392, 4
      %v3394 = vmax.f32 %v3392, %v3393
      %v3395 = vrot.slane %v3394, 2
      %v3396 = vmax.f32 %v3394, %v3395
      %v3397 = vrot.slane %v3396, 1
      %v3398 = vmax.f32 %v3396, %v3397
      %3400 = vrot.lane.b32.xlu0 %v3398, 32
      %v3401 = vpop.permute.xlu0 %3400
      %v3403 = vadd.f32 %v3376, %v3401
      %vm3404 = vcmp.ge.f32.partialorder %v3403, 0.0
      %v3405 = vmul.f32 %v3403, 0.2
      %v3406 = vsel %vm3404, %v3403, %v3405
      %v3407 = vlaneseq
      %v3408 = vshrl.u32 %v3407, 7
      %v3409 = vsub.s32 0, %v3408
      %v3410 = vrot.slane %v3406, %v3409
      %v3411 = vsub.f32 %v3323, %v3410
      %v3412 = vsub.f32 %v3324, %v3410
      %v3413 = vsub.f32 %v3325, %v3410
      %v3414 = vsub.f32 %v3326, %v3410
      %v3415 = vsub.f32 %v3327, %v3410
      %v3416 = vsub.f32 %v3328, %v3410
      %v3417 = vsub.f32 %v3329, %v3410
      %v3418 = vsub.f32 %v3330, %v3410
      %v3419 = vsub.f32 %v3331, %v3410
      %v3420 = vsub.f32 %v3332, %v3410
      %v3421 = vsub.f32 %v3333, %v3410
      %v3422 = vsub.f32 %v3334, %v3410
      %v3423 = vsub.f32 %v3335, %v3410
      %v3424 = vsub.f32 %v3336, %v3410
      %v3425 = vsub.f32 %v3337, %v3410
      %v3426 = vsub.f32 %v3338, %v3410
      %v3427 = vmul.f32 %v3411, 1.442695
      %v3428 = vpow.pop %v3427
      %v3429 = vmul.f32 %v3412, 1.442695
      %v3430 = vpow.pop %v3429
      %v3431 = vmul.f32 %v3413, 1.442695
      %v3432 = vpow.pop %v3431
      %v3433 = vmul.f32 %v3414, 1.442695
      %v3434 = vpow.pop %v3433
      %v3435 = vmul.f32 %v3415, 1.442695
      %v3436 = vpow.pop %v3435
      %v3437 = vmul.f32 %v3416, 1.442695
      %v3438 = vpow.pop %v3437
      %v3439 = vmul.f32 %v3417, 1.442695
      %v3440 = vpow.pop %v3439
      %v3441 = vmul.f32 %v3418, 1.442695
      %v3442 = vpow.pop %v3441
      %v3443 = vmul.f32 %v3419, 1.442695
      %v3444 = vpow.pop %v3443
      %v3445 = vmul.f32 %v3420, 1.442695
      %v3446 = vpow.pop %v3445
      %v3447 = vmul.f32 %v3421, 1.442695
      %v3448 = vpow.pop %v3447
      %v3449 = vmul.f32 %v3422, 1.442695
      %v3450 = vpow.pop %v3449
      %v3451 = vmul.f32 %v3423, 1.442695
      %v3452 = vpow.pop %v3451
      %v3453 = vmul.f32 %v3424, 1.442695
      %v3454 = vpow.pop %v3453
      %v3455 = vmul.f32 %v3425, 1.442695
      %v3456 = vpow.pop %v3455
      %v3457 = vmul.f32 %v3426, 1.442695
      %v3458 = vpow.pop %v3457
      %3460 = vset.pattern.permute.xlu0 32
      %3461 = vperm.xlu0 %3460, %v3428
      %v3462 = vpop.permute.xlu0 %3461
      %3465 = vset.pattern.permute.xlu0 32
      %3466 = vperm.xlu0 %3465, %v3430
      %v3467 = vpop.permute.xlu0 %3466
      %3470 = vset.pattern.permute.xlu0 32
      %3471 = vperm.xlu0 %3470, %v3432
      %v3472 = vpop.permute.xlu0 %3471
      %3475 = vset.pattern.permute.xlu0 32
      %3476 = vperm.xlu0 %3475, %v3434
      %v3477 = vpop.permute.xlu0 %3476
      %3480 = vset.pattern.permute.xlu0 32
      %3481 = vperm.xlu0 %3480, %v3436
      %v3482 = vpop.permute.xlu0 %3481
      %3485 = vset.pattern.permute.xlu0 32
      %3486 = vperm.xlu0 %3485, %v3438
      %v3487 = vpop.permute.xlu0 %3486
      %3490 = vset.pattern.permute.xlu0 32
      %3491 = vperm.xlu0 %3490, %v3440
      %v3492 = vpop.permute.xlu0 %3491
      %3495 = vset.pattern.permute.xlu0 32
      %3496 = vperm.xlu0 %3495, %v3442
      %v3497 = vpop.permute.xlu0 %3496
      %3500 = vset.pattern.permute.xlu0 32
      %3501 = vperm.xlu0 %3500, %v3444
      %v3502 = vpop.permute.xlu0 %3501
      %3505 = vset.pattern.permute.xlu0 32
      %3506 = vperm.xlu0 %3505, %v3446
      %v3507 = vpop.permute.xlu0 %3506
      %3510 = vset.pattern.permute.xlu0 32
      %3511 = vperm.xlu0 %3510, %v3448
      %v3512 = vpop.permute.xlu0 %3511
      %3515 = vset.pattern.permute.xlu0 32
      %3516 = vperm.xlu0 %3515, %v3450
      %v3517 = vpop.permute.xlu0 %3516
      %3520 = vset.pattern.permute.xlu0 32
      %3521 = vperm.xlu0 %3520, %v3452
      %v3522 = vpop.permute.xlu0 %3521
      %3525 = vset.pattern.permute.xlu0 32
      %3526 = vperm.xlu0 %3525, %v3454
      %v3527 = vpop.permute.xlu0 %3526
      %3530 = vset.pattern.permute.xlu0 32
      %3531 = vperm.xlu0 %3530, %v3456
      %v3532 = vpop.permute.xlu0 %3531
      %3535 = vset.pattern.permute.xlu0 32
      %3536 = vperm.xlu0 %3535, %v3458
      %v3537 = vpop.permute.xlu0 %3536
      %v3539 = vmul.f32 %v2956, %v3462
      %v3540 = vmul.f32 %v2959, %v3467
      %v3541 = vmul.f32 %v2964, %v3472
      %v3542 = vmul.f32 %v2967, %v3477
      %v3543 = vmul.f32 %v2972, %v3482
      %v3544 = vmul.f32 %v2975, %v3487
      %v3545 = vmul.f32 %v2980, %v3492
      %v3546 = vmul.f32 %v2983, %v3497
      %v3547 = vmul.f32 %v2988, %v3502
      %v3548 = vmul.f32 %v2991, %v3507
      %v3549 = vmul.f32 %v2996, %v3512
      %v3550 = vmul.f32 %v2999, %v3517
      %v3551 = vmul.f32 %v3004, %v3522
      %v3552 = vmul.f32 %v3007, %v3527
      %v3553 = vmul.f32 %v3012, %v3532
      %v3554 = vmul.f32 %v3015, %v3537
      %3555 = vset.pattern.permute.xlu0 33
      %3556 = vperm.xlu0 %3555, %v3428
      %v3557 = vpop.permute.xlu0 %3556
      %3559 = vset.pattern.permute.xlu0 33
      %3560 = vperm.xlu0 %3559, %v3430
      %v3561 = vpop.permute.xlu0 %3560
      %3563 = vset.pattern.permute.xlu0 33
      %3564 = vperm.xlu0 %3563, %v3432
      %v3565 = vpop.permute.xlu0 %3564
      %3567 = vset.pattern.permute.xlu0 33
      %3568 = vperm.xlu0 %3567, %v3434
      %v3569 = vpop.permute.xlu0 %3568
      %3571 = vset.pattern.permute.xlu0 33
      %3572 = vperm.xlu0 %3571, %v3436
      %v3573 = vpop.permute.xlu0 %3572
      %3575 = vset.pattern.permute.xlu0 33
      %3576 = vperm.xlu0 %3575, %v3438
      %v3577 = vpop.permute.xlu0 %3576
      %3579 = vset.pattern.permute.xlu0 33
      %3580 = vperm.xlu0 %3579, %v3440
      %v3581 = vpop.permute.xlu0 %3580
      %3583 = vset.pattern.permute.xlu0 33
      %3584 = vperm.xlu0 %3583, %v3442
      %v3585 = vpop.permute.xlu0 %3584
      %3587 = vset.pattern.permute.xlu0 33
      %3588 = vperm.xlu0 %3587, %v3444
      %v3589 = vpop.permute.xlu0 %3588
      %3591 = vset.pattern.permute.xlu0 33
      %3592 = vperm.xlu0 %3591, %v3446
      %v3593 = vpop.permute.xlu0 %3592
      %3595 = vset.pattern.permute.xlu0 33
      %3596 = vperm.xlu0 %3595, %v3448
      %v3597 = vpop.permute.xlu0 %3596
      %3599 = vset.pattern.permute.xlu0 33
      %3600 = vperm.xlu0 %3599, %v3450
      %v3601 = vpop.permute.xlu0 %3600
      %3603 = vset.pattern.permute.xlu0 33
      %3604 = vperm.xlu0 %3603, %v3452
      %v3605 = vpop.permute.xlu0 %3604
      %3607 = vset.pattern.permute.xlu0 33
      %3608 = vperm.xlu0 %3607, %v3454
      %v3609 = vpop.permute.xlu0 %3608
      %3611 = vset.pattern.permute.xlu0 33
      %3612 = vperm.xlu0 %3611, %v3456
      %v3613 = vpop.permute.xlu0 %3612
      %3615 = vset.pattern.permute.xlu0 33
      %3616 = vperm.xlu0 %3615, %v3458
      %v3617 = vpop.permute.xlu0 %3616
      %v3619 = vmul.f32 %v2956, %v3557
      %v3620 = vmul.f32 %v2959, %v3561
      %v3621 = vmul.f32 %v2964, %v3565
      %v3622 = vmul.f32 %v2967, %v3569
      %v3623 = vmul.f32 %v2972, %v3573
      %v3624 = vmul.f32 %v2975, %v3577
      %v3625 = vmul.f32 %v2980, %v3581
      %v3626 = vmul.f32 %v2983, %v3585
      %v3627 = vmul.f32 %v2988, %v3589
      %v3628 = vmul.f32 %v2991, %v3593
      %v3629 = vmul.f32 %v2996, %v3597
      %v3630 = vmul.f32 %v2999, %v3601
      %v3631 = vmul.f32 %v3004, %v3605
      %v3632 = vmul.f32 %v3007, %v3609
      %v3633 = vmul.f32 %v3012, %v3613
      %v3634 = vmul.f32 %v3015, %v3617
      %vm3635 = vcmask 130048
      %v3636 = vsel %vm3635, %v3539, %v3619
      %v3637 = vsel %vm3635, %v3540, %v3620
      %v3638 = vsel %vm3635, %v3541, %v3621
      %v3639 = vsel %vm3635, %v3542, %v3622
      %v3640 = vsel %vm3635, %v3543, %v3623
      %v3641 = vsel %vm3635, %v3544, %v3624
      %v3642 = vsel %vm3635, %v3545, %v3625
      %v3643 = vsel %vm3635, %v3546, %v3626
      %v3644 = vsel %vm3635, %v3547, %v3627
      %v3645 = vsel %vm3635, %v3548, %v3628
      %v3646 = vsel %vm3635, %v3549, %v3629
      %v3647 = vsel %vm3635, %v3550, %v3630
      %v3648 = vsel %vm3635, %v3551, %v3631
      %v3649 = vsel %vm3635, %v3552, %v3632
      %v3650 = vsel %vm3635, %v3553, %v3633
      %v3651 = vsel %vm3635, %v3554, %v3634
      %vm3652 = vcmask 261120
      %v3653 = vsel %vm3652, %v3636, %v3428
      %v3654 = vsel %vm3652, %v3637, %v3430
      %v3655 = vsel %vm3652, %v3638, %v3432
      %v3656 = vsel %vm3652, %v3639, %v3434
      %v3657 = vsel %vm3652, %v3640, %v3436
      %v3658 = vsel %vm3652, %v3641, %v3438
      %v3659 = vsel %vm3652, %v3642, %v3440
      %v3660 = vsel %vm3652, %v3643, %v3442
      %v3661 = vsel %vm3652, %v3644, %v3444
      %v3662 = vsel %vm3652, %v3645, %v3446
      %v3663 = vsel %vm3652, %v3646, %v3448
      %v3664 = vsel %vm3652, %v3647, %v3450
      %v3665 = vsel %vm3652, %v3648, %v3452
      %v3666 = vsel %vm3652, %v3649, %v3454
      %v3667 = vsel %vm3652, %v3650, %v3456
      %v3668 = vsel %vm3652, %v3651, %v3458
      %v3669 = vpack.c.bf16 %v3654, %v3653
      %v3670 = vpack.c.bf16 %v3656, %v3655
      %v3671 = vpack.c.bf16 %v3658, %v3657
      %v3672 = vpack.c.bf16 %v3660, %v3659
      %v3673 = vpack.c.bf16 %v3662, %v3661
      %v3674 = vpack.c.bf16 %v3664, %v3663
      %v3675 = vpack.c.bf16 %v3666, %v3665
      %v3676 = vpack.c.bf16 %v3668, %v3667
      %v3677 = vld [vmem:[#allocation5] sm:$0xff]
      %v3678 = vld [vmem:[#allocation5 + $0x8] sm:$0xff]
      %v3679 = vld [vmem:[#allocation5 + $0x10] sm:$0xff]
      %v3680 = vld [vmem:[#allocation5 + $0x18] sm:$0xff]
      %v3681 = vld [vmem:[#allocation5 + $0x20] sm:$0xff]
      %v3682 = vld [vmem:[#allocation5 + $0x28] sm:$0xff]
      %v3683 = vld [vmem:[#allocation5 + $0x30] sm:$0xff]
      %v3684 = vld [vmem:[#allocation5 + $0x38] sm:$0xff]
      %3693 = vxpose.xlu0.c.b16.start [1/8] %v3058, 128
      %3694 = vxpose.xlu0.c.b16.cont [2/8] %v3059, 128
      %3695 = vxpose.xlu0.c.b16.cont [3/8] %v3060, 128
      %3696 = vxpose.xlu0.c.b16.cont [4/8] %v3061, 128
      %3697 = vxpose.xlu0.c.b16.cont [5/8] %v3062, 128
      %3698 = vxpose.xlu0.c.b16.cont [6/8] %v3063, 128
      %3699 = vxpose.xlu0.c.b16.cont [7/8] %v3064, 128
      %3700 = vxpose.xlu0.c.b16.end [8/8] %v3065, 128
      %v3701 = vpop.trf.xlu0
      %v3702 = vpop.trf.xlu0
      %v3703 = vpop.trf.xlu0
      %v3704 = vpop.trf.xlu0
      %v3705 = vpop.trf.xlu0
      %v3706 = vpop.trf.xlu0
      %v3707 = vpop.trf.xlu0
      %v3708 = vpop.trf.xlu0
      %3709 = vmatprep.subr.bf16.mxu0 0
      %3710 = vmatpush1.bf16.msra.mxu0 %v3676
      %3711 = vmatprep.subr.bf16.mxu0 0
      %3712 = vmatpush1.bf16.msra.mxu0 %v3675
      %3713 = vmatprep.subr.bf16.mxu0 0
      %3714 = vmatpush1.bf16.msra.mxu0 %v3674
      %3715 = vmatprep.subr.bf16.mxu0 0
      %3716 = vmatpush1.bf16.msra.mxu0 %v3673
      %3717 = vmatprep.subr.bf16.mxu0 0
      %3718 = vmatpush1.bf16.msra.mxu0 %v3672
      %3719 = vmatprep.subr.bf16.mxu0 0
      %3720 = vmatpush1.bf16.msra.mxu0 %v3671
      %3721 = vmatprep.subr.bf16.mxu0 0
      %3722 = vmatpush1.bf16.msra.mxu0 %v3670
      %3723 = vmatprep.subr.bf16.mxu0 0
      %3724 = vmatpush1.bf16.msra.mxu0 %v3669
      %3725 = vmatprep.subr.bf16.mxu0 0
      %3726 = vmatpush2.bf16.msra.mxu0 0
      %3727 = vmatprep.subr.bf16.mxu0 0
      %3728 = vmatpush2.bf16.msra.mxu0 0
      %3729 = vmatprep.subr.bf16.mxu0 0
      %3730 = vmatpush2.bf16.msra.mxu0 0
      %3731 = vmatprep.subr.bf16.mxu0 0
      %3732 = vmatpush2.bf16.msra.mxu0 0
      %3733 = vmatprep.subr.bf16.mxu0 0
      %3734 = vmatpush2.bf16.msra.mxu0 0
      %3735 = vmatprep.subr.bf16.mxu0 0
      %3736 = vmatpush2.bf16.msra.mxu0 0
      %3737 = vmatprep.subr.bf16.mxu0 0
      %3738 = vmatpush2.bf16.msra.mxu0 0
      %3739 = vmatprep.subr.bf16.mxu0 0
      %3740 = vmatpush2.bf16.msra.mxu0 0
      %3741 = vmatprep.mubr.bf16.mxu0 0
      %3742 = vmatmul.mubr.bf16.gmra.mxu0 %v3701
      %v3743 = vpop.f32.mrf.mxu0
      %v3744 = vadd.f32 0.0, %v3743
      %v3745 = vpop.f32.mrf.mxu0
      %v3746 = vpop.f32.mrf.mxu0
      %v3747 = vadd.f32 0.0, %v3746
      %v3748 = vpop.f32.mrf.mxu0
      %3749 = vmatprep.mubr.bf16.mxu0 0
      %3750 = vmatmul.mubr.bf16.gmra.mxu0 %v3702
      %v3751 = vpop.f32.mrf.mxu0
      %v3752 = vadd.f32 0.0, %v3751
      %v3753 = vpop.f32.mrf.mxu0
      %v3754 = vpop.f32.mrf.mxu0
      %v3755 = vadd.f32 0.0, %v3754
      %v3756 = vpop.f32.mrf.mxu0
      %3757 = vmatprep.mubr.bf16.mxu0 0
      %3758 = vmatmul.mubr.bf16.gmra.mxu0 %v3703
      %v3759 = vpop.f32.mrf.mxu0
      %v3760 = vadd.f32 0.0, %v3759
      %v3761 = vpop.f32.mrf.mxu0
      %v3762 = vpop.f32.mrf.mxu0
      %v3763 = vadd.f32 0.0, %v3762
      %v3764 = vpop.f32.mrf.mxu0
      %3765 = vmatprep.mubr.bf16.mxu0 0
      %3766 = vmatmul.mubr.bf16.gmra.mxu0 %v3704
      %v3767 = vpop.f32.mrf.mxu0
      %v3768 = vadd.f32 0.0, %v3767
      %v3769 = vpop.f32.mrf.mxu0
      %v3770 = vpop.f32.mrf.mxu0
      %v3771 = vadd.f32 0.0, %v3770
      %v3772 = vpop.f32.mrf.mxu0
      %3773 = vdwg.mxu0
      %v3774 = vadd.f32 %v3677, %v3744
      %v3775 = vadd.f32 %v3678, %v3747
      %v3776 = vadd.f32 %v3679, %v3752
      %v3777 = vadd.f32 %v3680, %v3755
      %v3778 = vadd.f32 %v3681, %v3760
      %v3779 = vadd.f32 %v3682, %v3763
      %v3780 = vadd.f32 %v3683, %v3768
      %v3781 = vadd.f32 %v3684, %v3771
      %vm3782 = vcmask 277504
      %3783 = vst.msk [vmem:[#allocation5] sm:$0xff] %vm3782, %v3774
      %3784 = vst.msk [vmem:[#allocation5 + $0x8] sm:$0xff] %vm3782, %v3775
      %3785 = vst.msk [vmem:[#allocation5 + $0x10] sm:$0xff] %vm3782, %v3776
      %3786 = vst.msk [vmem:[#allocation5 + $0x18] sm:$0xff] %vm3782, %v3777
      %3787 = vst.msk [vmem:[#allocation5 + $0x20] sm:$0xff] %vm3782, %v3778
      %3788 = vst.msk [vmem:[#allocation5 + $0x28] sm:$0xff] %vm3782, %v3779
      %3789 = vst.msk [vmem:[#allocation5 + $0x30] sm:$0xff] %vm3782, %v3780
      %3790 = vst.msk [vmem:[#allocation5 + $0x38] sm:$0xff] %vm3782, %v3781
      %p3791 = scmp.eq.s32.totalorder %s18, 1
      // Predicated region
      $region53: #{tpu_custom_call.1} parent=47 // pred_check
        %p3792 = pneg %p3791
      $region54: #{tpu_custom_call.1} parent=47 // pred_check_branch
        %3794 = sbr.rel (%p3792) target = $region56
      $region55: #{tpu_custom_call.1} parent=47 // pred_region
        %v3795 = vld [vmem:[#allocation5] sm:$0xff]
        %v3796 = vld [vmem:[#allocation5 + $0x8] sm:$0xff]
        %v3797 = vld [vmem:[#allocation5 + $0x10] sm:$0xff]
        %v3798 = vld [vmem:[#allocation5 + $0x18] sm:$0xff]
        %v3799 = vld [vmem:[#allocation5 + $0x20] sm:$0xff]
        %v3800 = vld [vmem:[#allocation5 + $0x28] sm:$0xff]
        %v3801 = vld [vmem:[#allocation5 + $0x30] sm:$0xff]
        %v3802 = vld [vmem:[#allocation5 + $0x38] sm:$0xff]
        %v3803 = vadd.f32 %v3795, 1e-16
        %v3804 = vadd.f32 %v3796, 1e-16
        %v3805 = vadd.f32 %v3797, 1e-16
        %v3806 = vadd.f32 %v3798, 1e-16
        %v3807 = vadd.f32 %v3799, 1e-16
        %v3808 = vadd.f32 %v3800, 1e-16
        %v3809 = vadd.f32 %v3801, 1e-16
        %v3810 = vadd.f32 %v3802, 1e-16
        %v3811 = vrcp.pop %v3803
        %v3812 = vmul.f32 1.0, %v3811
        %v3813 = vrcp.pop %v3804
        %v3814 = vmul.f32 1.0, %v3813
        %v3815 = vrcp.pop %v3805
        %v3816 = vmul.f32 1.0, %v3815
        %v3817 = vrcp.pop %v3806
        %v3818 = vmul.f32 1.0, %v3817
        %v3819 = vrcp.pop %v3807
        %v3820 = vmul.f32 1.0, %v3819
        %v3821 = vrcp.pop %v3808
        %v3822 = vmul.f32 1.0, %v3821
        %v3823 = vrcp.pop %v3809
        %v3824 = vmul.f32 1.0, %v3823
        %v3825 = vrcp.pop %v3810
        %v3826 = vmul.f32 1.0, %v3825
        %v3827 = vld [vmem:[#allocation4] sm:$0xff]
        %v3828 = vld [vmem:[#allocation4 + $0x8] sm:$0xff]
        %v3829 = vld [vmem:[#allocation4 + $0x10] sm:$0xff]
        %v3830 = vld [vmem:[#allocation4 + $0x18] sm:$0xff]
        %v3831 = vld [vmem:[#allocation4 + $0x20] sm:$0xff]
        %v3832 = vld [vmem:[#allocation4 + $0x28] sm:$0xff]
        %v3833 = vld [vmem:[#allocation4 + $0x30] sm:$0xff]
        %v3834 = vld [vmem:[#allocation4 + $0x38] sm:$0xff]
        %3836 = vset.pattern.permute.xlu0 32
        %3837 = vperm.xlu0 %3836, %v3812
        %v3838 = vpop.permute.xlu0 %3837
        %3841 = vset.pattern.permute.xlu0 32
        %3842 = vperm.xlu0 %3841, %v3814
        %v3843 = vpop.permute.xlu0 %3842
        %3846 = vset.pattern.permute.xlu0 32
        %3847 = vperm.xlu0 %3846, %v3816
        %v3848 = vpop.permute.xlu0 %3847
        %3851 = vset.pattern.permute.xlu0 32
        %3852 = vperm.xlu0 %3851, %v3818
        %v3853 = vpop.permute.xlu0 %3852
        %3856 = vset.pattern.permute.xlu0 32
        %3857 = vperm.xlu0 %3856, %v3820
        %v3858 = vpop.permute.xlu0 %3857
        %3861 = vset.pattern.permute.xlu0 32
        %3862 = vperm.xlu0 %3861, %v3822
        %v3863 = vpop.permute.xlu0 %3862
        %3866 = vset.pattern.permute.xlu0 32
        %3867 = vperm.xlu0 %3866, %v3824
        %v3868 = vpop.permute.xlu0 %3867
        %3871 = vset.pattern.permute.xlu0 32
        %3872 = vperm.xlu0 %3871, %v3826
        %v3873 = vpop.permute.xlu0 %3872
        %v3875 = vmul.f32 %v3795, %v3838
        %v3876 = vmul.f32 %v3796, %v3843
        %v3877 = vmul.f32 %v3797, %v3848
        %v3878 = vmul.f32 %v3798, %v3853
        %v3879 = vmul.f32 %v3799, %v3858
        %v3880 = vmul.f32 %v3800, %v3863
        %v3881 = vmul.f32 %v3801, %v3868
        %v3882 = vmul.f32 %v3802, %v3873
        %v3883 = vadd.f32 %v3875, %v3827
        %v3884 = vadd.f32 %v3876, %v3828
        %v3885 = vadd.f32 %v3877, %v3829
        %v3886 = vadd.f32 %v3878, %v3830
        %v3887 = vadd.f32 %v3879, %v3831
        %v3888 = vadd.f32 %v3880, %v3832
        %v3889 = vadd.f32 %v3881, %v3833
        %v3890 = vadd.f32 %v3882, %v3834
        %3891 = vset.pattern.permute.xlu0 33
        %3892 = vperm.xlu0 %3891, %v3812
        %v3893 = vpop.permute.xlu0 %3892
        %3895 = vset.pattern.permute.xlu0 33
        %3896 = vperm.xlu0 %3895, %v3814
        %v3897 = vpop.permute.xlu0 %3896
        %3899 = vset.pattern.permute.xlu0 33
        %3900 = vperm.xlu0 %3899, %v3816
        %v3901 = vpop.permute.xlu0 %3900
        %3903 = vset.pattern.permute.xlu0 33
        %3904 = vperm.xlu0 %3903, %v3818
        %v3905 = vpop.permute.xlu0 %3904
        %3907 = vset.pattern.permute.xlu0 33
        %3908 = vperm.xlu0 %3907, %v3820
        %v3909 = vpop.permute.xlu0 %3908
        %3911 = vset.pattern.permute.xlu0 33
        %3912 = vperm.xlu0 %3911, %v3822
        %v3913 = vpop.permute.xlu0 %3912
        %3915 = vset.pattern.permute.xlu0 33
        %3916 = vperm.xlu0 %3915, %v3824
        %v3917 = vpop.permute.xlu0 %3916
        %3919 = vset.pattern.permute.xlu0 33
        %3920 = vperm.xlu0 %3919, %v3826
        %v3921 = vpop.permute.xlu0 %3920
        %v3923 = vmul.f32 %v3795, %v3893
        %v3924 = vmul.f32 %v3796, %v3897
        %v3925 = vmul.f32 %v3797, %v3901
        %v3926 = vmul.f32 %v3798, %v3905
        %v3927 = vmul.f32 %v3799, %v3909
        %v3928 = vmul.f32 %v3800, %v3913
        %v3929 = vmul.f32 %v3801, %v3917
        %v3930 = vmul.f32 %v3802, %v3921
        %v3931 = vadd.f32 %v3923, %v3827
        %v3932 = vadd.f32 %v3924, %v3828
        %v3933 = vadd.f32 %v3925, %v3829
        %v3934 = vadd.f32 %v3926, %v3830
        %v3935 = vadd.f32 %v3927, %v3831
        %v3936 = vadd.f32 %v3928, %v3832
        %v3937 = vadd.f32 %v3929, %v3833
        %v3938 = vadd.f32 %v3930, %v3834
        %3947 = vrot.lane.b32.xlu0 %v3931, 112
        %v3948 = vpop.permute.xlu0 %3947
        %3949 = vrot.lane.b32.xlu0 %v3932, 112
        %v3950 = vpop.permute.xlu0 %3949
        %3951 = vrot.lane.b32.xlu0 %v3933, 112
        %v3952 = vpop.permute.xlu0 %3951
        %3953 = vrot.lane.b32.xlu0 %v3934, 112
        %v3954 = vpop.permute.xlu0 %3953
        %3955 = vrot.lane.b32.xlu0 %v3935, 112
        %v3956 = vpop.permute.xlu0 %3955
        %3957 = vrot.lane.b32.xlu0 %v3936, 112
        %v3958 = vpop.permute.xlu0 %3957
        %3959 = vrot.lane.b32.xlu0 %v3937, 112
        %v3960 = vpop.permute.xlu0 %3959
        %3961 = vrot.lane.b32.xlu0 %v3938, 112
        %v3962 = vpop.permute.xlu0 %3961
        %v3971 = vadd.f32 %v3883, %v3948
        %v3972 = vadd.f32 %v3884, %v3950
        %v3973 = vadd.f32 %v3885, %v3952
        %v3974 = vadd.f32 %v3886, %v3954
        %v3975 = vadd.f32 %v3887, %v3956
        %v3976 = vadd.f32 %v3888, %v3958
        %v3977 = vadd.f32 %v3889, %v3960
        %v3978 = vadd.f32 %v3890, %v3962
        %v3979 = vmul.f32 %v3971, 0.5
        %v3980 = vmul.f32 %v3972, 0.5
        %v3981 = vmul.f32 %v3973, 0.5
        %v3982 = vmul.f32 %v3974, 0.5
        %v3983 = vmul.f32 %v3975, 0.5
        %v3984 = vmul.f32 %v3976, 0.5
        %v3985 = vmul.f32 %v3977, 0.5
        %v3986 = vmul.f32 %v3978, 0.5
        %v3987 = vld [vmem:[%s6] sm:$0x1]
        %v3989 = vlaneseq
        %v3990 = vshrl.u32 %v3989, 7
        %v3991 = vsub.s32 0, %v3990
        %v3992 = vrot.slane %v3987, %v3991
        %v3994 = vadd.f32 %v3979, %v3992
        %v3995 = vadd.f32 %v3980, %v3992
        %v3996 = vadd.f32 %v3981, %v3992
        %v3997 = vadd.f32 %v3982, %v3992
        %v3998 = vadd.f32 %v3983, %v3992
        %v3999 = vadd.f32 %v3984, %v3992
        %v4000 = vadd.f32 %v3985, %v3992
        %v4001 = vadd.f32 %v3986, %v3992
        %vm4002 = vcmp.gt.f32.partialorder %v3994, 0.0
        %vm4003 = vcmp.gt.f32.partialorder %v3995, 0.0
        %vm4004 = vcmp.gt.f32.partialorder %v3996, 0.0
        %vm4005 = vcmp.gt.f32.partialorder %v3997, 0.0
        %vm4006 = vcmp.gt.f32.partialorder %v3998, 0.0
        %vm4007 = vcmp.gt.f32.partialorder %v3999, 0.0
        %vm4008 = vcmp.gt.f32.partialorder %v4000, 0.0
        %vm4009 = vcmp.gt.f32.partialorder %v4001, 0.0
        %v4010 = vmul.f32 %v3994, 1.442695
        %v4011 = vpow.pop %v4010
        %v4012 = vmul.f32 %v3995, 1.442695
        %v4013 = vpow.pop %v4012
        %v4014 = vmul.f32 %v3996, 1.442695
        %v4015 = vpow.pop %v4014
        %v4016 = vmul.f32 %v3997, 1.442695
        %v4017 = vpow.pop %v4016
        %v4018 = vmul.f32 %v3998, 1.442695
        %v4019 = vpow.pop %v4018
        %v4020 = vmul.f32 %v3999, 1.442695
        %v4021 = vpow.pop %v4020
        %v4022 = vmul.f32 %v4000, 1.442695
        %v4023 = vpow.pop %v4022
        %v4024 = vmul.f32 %v4001, 1.442695
        %v4025 = vpow.pop %v4024
        %v4026 = vsub.f32 %v4011, 1.0
        %v4027 = vsub.f32 %v4013, 1.0
        %v4028 = vsub.f32 %v4015, 1.0
        %v4029 = vsub.f32 %v4017, 1.0
        %v4030 = vsub.f32 %v4019, 1.0
        %v4031 = vsub.f32 %v4021, 1.0
        %v4032 = vsub.f32 %v4023, 1.0
        %v4033 = vsub.f32 %v4025, 1.0
        %v4034 = vsel %vm4002, %v3994, %v4026
        %v4035 = vsel %vm4003, %v3995, %v4027
        %v4036 = vsel %vm4004, %v3996, %v4028
        %v4037 = vsel %vm4005, %v3997, %v4029
        %v4038 = vsel %vm4006, %v3998, %v4030
        %v4039 = vsel %vm4007, %v3999, %v4031
        %v4040 = vsel %vm4008, %v4000, %v4032
        %v4041 = vsel %vm4009, %v4001, %v4033
        %4042 = vst.msk [vmem:[%s7] sm:$0xff] %vm3635, %v4034
        %4043 = vst.msk [vmem:[%s7 + $0x8] sm:$0xff] %vm3635, %v4035
        %4044 = vst.msk [vmem:[%s7 + $0x10] sm:$0xff] %vm3635, %v4036
        %4045 = vst.msk [vmem:[%s7 + $0x18] sm:$0xff] %vm3635, %v4037
        %4046 = vst.msk [vmem:[%s7 + $0x20] sm:$0xff] %vm3635, %v4038
        %4047 = vst.msk [vmem:[%s7 + $0x28] sm:$0xff] %vm3635, %v4039
        %4048 = vst.msk [vmem:[%s7 + $0x30] sm:$0xff] %vm3635, %v4040
        %4049 = vst.msk [vmem:[%s7 + $0x38] sm:$0xff] %vm3635, %v4041
      $region56: #{tpu_custom_call.1} parent=47 // pred_fallthru
        _
      // Predicated region
      $region57: #{tpu_custom_call.1} parent=47 // pred_check
        %p4050 = pneg %p188
      $region58: #{tpu_custom_call.1} parent=47 // pred_check_branch
        %4052 = sbr.rel (%p4050) target = $region60
      $region59: #{tpu_custom_call.1} parent=47 // pred_region
        _
      $region60: #{tpu_custom_call.1} parent=47 // pred_fallthru
        _
      // Predicated region
      $region61: #{tpu_custom_call.1} parent=47 // pred_check
        %p4053 = pneg %p188
      $region62: #{tpu_custom_call.1} parent=47 // pred_check_branch
        %4055 = sbr.rel (%p4053) target = $region64
      $region63: #{tpu_custom_call.1} parent=47 // pred_region
        _
      $region64: #{tpu_custom_call.1} parent=47 // pred_fallthru
        _
    $region48: #{tpu_custom_call.1} parent=5 // pred_fallthru
      _
    %p4056 = scmp.le.s32.totalorder 2, %s13
    // Predicated region
    $region65: #{tpu_custom_call.1} parent=5 // pred_check
      %p4057 = pneg %p4056
    $region66: #{tpu_custom_call.1} parent=5 // pred_check_branch
      %4059 = sbr.rel (%p4057) target = $region68
    $region67: #{tpu_custom_call.1} parent=5 // pred_region
      %s4060 = ssub.s32 %s13, 2
    $region68: #{tpu_custom_call.1} parent=5 // pred_fallthru
      _
  $region6: #{tpu_custom_call.1} parent=0 // loop_footer
    %s17 = sadd.s32 1, %s13
  $region7: #{tpu_custom_call.1} parent=0 // loop_footer_branch
    %12 = sbr.rel target = $region3
  $region8: #{tpu_custom_call.1} parent=0 // loop_exit
    _

</llo_original>
